<compile_context>
chip_gen: v5e
topology: v5e:2x2
jax: 0.10.0
libtpu: 0.0.40
codegen_flags: <defaults>
</compile_context>

<pallas_src>
import functools

import jax
import jax.numpy as jnp
import numpy as np
from jax import lax
from jax.experimental import pallas as pl
from jax.experimental.pallas import tpu as pltpu


# ----------------------------- shared math helpers -----------------------------
def _layernorm(v, g, b, eps=1e-5):
    mu = jnp.mean(v, axis=-1, keepdims=True)
    c = v - mu
    var = jnp.mean(c * c, axis=-1, keepdims=True)
    return c * lax.rsqrt(var + eps) * g + b


def _leaky_relu(v):
    return jnp.where(v > 0, v, 0.01 * v)  # nn.LeakyReLU default slope


# --------------------------------- Pallas kernel --------------------------------
def _block_gt_kernel(
    x_ref, xj_ref, m_ref, mj_ref, e_ref,
    ln_g_ref, ln_b_ref, wn_ref, bn_ref, we_ref, be_ref,
    wo_ref, bo_ref, w1_ref, b1_ref, w2_ref, b2_ref, seg_ref, segt_ref,
    x_out_ref, e_out_ref,
    xcat_ref,
    *, num_heads, d_head, fast_layout,
):
    f32, bf16 = jnp.float32, jnp.bfloat16
    TB, N, d = x_ref.shape
    TJ = xj_ref.shape[1]
    H, dh = num_heads, d_head
    j = pl.program_id(1)

    def lin(v, w, b):
        # bf16 MXU operands, f32 accumulation.
        return jnp.dot(v.astype(bf16), w, preferred_element_type=f32) + b

    # ---------------- node-side projections (recomputed per j step) ----------------
    # O(N*d^2) MXU work, negligible next to the O(N*TJ*d^2) edge work of the same step;
    # avoids a (TB, N, 5d) persistent scratch.
    m = m_ref[...]                                      # (TB, N, 1)
    mrow = m.reshape(TB * N, 1)
    xn = _layernorm(x_ref[...].reshape(TB * N, d), ln_g_ref[0], ln_b_ref[0])
    proj = lin(xn, wn_ref[...], bn_ref[...])            # (TB*N, 5d): [Q | K | V | Ni | Nj]
    Q4 = (proj[:, 0 * d:1 * d] * mrow).reshape(TB, N, 1, d)
    Ni4 = proj[:, 3 * d:4 * d].reshape(TB, N, 1, d)

    # Same projections restricted to the TJ nodes of this j-tile (delivered as a second
    # BlockSpec view of x / node_mask, so no in-kernel dynamic slicing is needed).
    mj = mj_ref[...]                                    # (TB, TJ, 1)
    mjrow = mj.reshape(TB * TJ, 1)
    xnj = _layernorm(xj_ref[...].reshape(TB * TJ, d), ln_g_ref[0], ln_b_ref[0])
    projj = lin(xnj, wn_ref[...], bn_ref[...])          # (TB*TJ, 5d)
    K4 = (projj[:, 1 * d:2 * d] * mjrow).reshape(TB, 1, TJ, d)
    Vt = (projj[:, 2 * d:3 * d] * mjrow).reshape(TB, TJ, d)
    Nj4 = projj[:, 4 * d:5 * d].reshape(TB, 1, TJ, d)

    # --------------------------------- edge tile -----------------------------------
    # e block is (TB, N, TJ*d) (lane-dense) or (TB, N, TJ, d); either way row order is
    # ((b*N + i)*TJ + j_local).
    e2 = e_ref[...].astype(f32).reshape(TB * N * TJ, d)
    en = _layernorm(e2, ln_g_ref[1], ln_b_ref[1])
    E4 = lin(en, we_ref[...], be_ref[...]).reshape(TB, N, TJ, d)

    emask4 = m.reshape(TB, N, 1, 1) * mj.reshape(TB, 1, TJ, 1)   # (TB, N, TJ, 1)
    emask2 = emask4.reshape(TB * N * TJ, 1)
    e_head4 = (Ni4 + Nj4 + E4) * emask4                          # == concat over heads
    e_head2 = e_head4.reshape(TB * N * TJ, d)

    # ------------------------------ attention scores -------------------------------
    # att[b,i,j,h] = sum_{c in head h} Q[b,i,c]*e_head[b,i,j,c]*K[b,j,c] / sqrt(dh)
    # (the 1/sqrt(dh) scale is folded into seg_ref).
    P2 = (Q4 * e_head4 * K4).reshape(TB * N * TJ, d)
    att4 = jnp.dot(P2.astype(jnp.bfloat16), seg_ref[...],
                   preferred_element_type=f32).reshape(TB, N, TJ, H)
    att4 = jnp.where(emask4 > 0.0, att4, -1e9)

    # softmax over the *query* axis i (dim=1 of (B,N,N)), as in the PyTorch module.
    if fast_layout:
        att3 = att4.reshape(TB, N, TJ * H)               # lane-merged slab: sublane reduce
        att3 = att3 - jnp.max(att3, axis=1, keepdims=True)
        p3 = jnp.exp(att3)
        att3 = p3 * pl.reciprocal(jnp.sum(p3, axis=1, keepdims=True), approx=True)
        att4 = att3.reshape(TB, N, TJ, H)
    else:
        att4 = att4 - jnp.max(att4, axis=1, keepdims=True)
        p4 = jnp.exp(att4)
        att4 = p4 * pl.reciprocal(jnp.sum(p4, axis=1, keepdims=True), approx=True)

    # ----------------- value sum, accumulated over j-tiles in scratch ---------------
    if fast_layout:
        # Per-head batched matmuls on the MXU; no O(N*TJ*d) re-expansion temporary.
        xc = [jnp.einsum("bij,bjc->bic",
                         att4[..., h].astype(bf16),
                         Vt[:, :, h * dh:(h + 1) * dh].astype(bf16),
                         preferred_element_type=f32)
              for h in range(H)]
        xc_step = jnp.concatenate(xc, axis=-1)            # (TB, N, d)
    else:
        # Conservative path: expand per-head probabilities back to d lanes and reduce.
        attE = jnp.dot(att4.reshape(TB * N * TJ, H).astype(bf16), segt_ref[...],
                       preferred_element_type=f32).reshape(TB, N, TJ, d)
        xc_step = jnp.sum(attE * Vt.reshape(TB, 1, TJ, d), axis=2)

    @pl.when(j == 0)
    def _init():
        xcat_ref[...] = jnp.zeros_like(xcat_ref)

    xcat_ref[...] += xc_step

    # --------------------------------- edge branch ----------------------------------
    e_mha = lin(e_head2, wo_ref[1], bo_ref[1]) * emask2
    e1 = en + e_mha
    e1n = _layernorm(e1, ln_g_ref[3], ln_b_ref[3])
    he = _leaky_relu(lin(e1n, w1_ref[1], b1_ref[1]))
    e_out = e1 + lin(he, w2_ref[1], b2_ref[1]) * emask2
    e_out_ref[...] = e_out.reshape(e_out_ref.shape).astype(e_out_ref.dtype)

    # --------------------------- node branch (last j step) --------------------------
    @pl.when(j == pl.num_programs(1) - 1)
    def _finalize():
        x_mha = lin(xcat_ref[...].reshape(TB * N, d), wo_ref[0], bo_ref[0]) * mrow
        x1 = xn + x_mha
        x1n = _layernorm(x1, ln_g_ref[2], ln_b_ref[2])
        hx = _leaky_relu(lin(x1n, w1_ref[0], b1_ref[0]))
        x_out = x1 + lin(hx, w2_ref[0], b2_ref[0]) * mrow
        x_out_ref[...] = x_out.reshape(TB, N, d)


# ------------------------------------ wrapper ------------------------------------
def block_gt_pallas(x, e, node_mask, params, num_heads, *, tb=None, tj=None,
                    flat_e=True, budget_bytes=None):
    """BlockGT forward.  Returns (x_out f32 (B,N,d), e_out bf16 (B,N,N,d))."""
    B, N, d = x.shape
    assert d % num_heads == 0
    dh = d // num_heads
    f32, bf16 = jnp.float32, jnp.bfloat16
    MiB = 1024 * 1024

    x = x.astype(f32)
    m = node_mask.astype(f32).reshape(B, N, 1)

    # --- pack weights: node projections fused into one (d, 5d) matmul; matmul weights bf16
    p = params
    order = (0, 1, 2, 4, 5)                               # Q, K, V, Ni, Nj
    w_node = jnp.concatenate([p["pw"][i] for i in order], axis=1).astype(bf16)
    b_node = jnp.concatenate([p["pb"][i] for i in order], axis=1).astype(f32)
    w_e, b_e = p["pw"][3].astype(bf16), p["pb"][3].astype(f32)

    # per-head segment-sum selector; 1/sqrt(d_head) folded into seg (review item)
    heads = jnp.arange(d) // dh
    sel = (heads[:, None] == jnp.arange(num_heads)[None, :]).astype(f32)   # (d, H)
    seg = (sel / np.sqrt(dh)).astype(bf16)
    segt = sel.T.astype(bf16)                              # unscaled selector (fallback)

    weights = [p["ln_g"].astype(f32), p["ln_b"].astype(f32), w_node, b_node, w_e, b_e,
               p["wow"].astype(bf16), p["wob"].astype(f32),
               p["w1"].astype(bf16), p["b1"].astype(f32),
               p["w2"].astype(bf16), p["b2"].astype(f32), seg, segt]

    # ----------------- tile selection under an explicit, chip-aware VMEM budget -----------------
    if budget_bytes is None:
        vmem_cap = 64 * MiB                               # safe default (v7x-sized)
        try:
            vmem_cap = int(pltpu.get_tpu_info().vmem_capacity_bytes)
        except Exception:
            pass
        budget_bytes = min(max(vmem_cap // 3, 8 * MiB), 48 * MiB)

    def vmem_bytes(tb_, tj_):
        tile = tb_ * N * tj_ * d
        edge = tile * (2 * 2 + 2 * 2 + 14 * 4)            # bf16 e in/out x2 buffers + ~14 f32 temps
        node = tb_ * N * (5 * d + 8 * d) * 4 * 2
        wbytes = 2 * sum(int(np.prod(w.shape)) * w.dtype.itemsize for w in weights)
        return edge + node + wbytes

    def legal_tj(t):
        return (N % t == 0) and ((t % 8 == 0 and (t * d) % 128 == 0) or t == N)

    if tj is None:
        cands = sorted({t for t in range(8, N + 1, 8) if legal_tj(t)} | {N})
        tj = cands[0]
        for t in cands:                                   # largest legal tile that fits
            if vmem_bytes(1, t) <= budget_bytes:
                tj = t
    TJ = int(tj)
    assert N % TJ == 0 and legal_tj(TJ)

    if tb is None:
        tb = 1
        cap = max(1, B // 2)                              # keep >= 2 batch steps (megacore)
        for t in range(1, B + 1):
            if B % t == 0 and t <= cap and vmem_bytes(t, TJ) <= budget_bytes:
                tb = t
    TB = int(tb)
    assert B % TB == 0

    # ----------------------------------- specs -----------------------------------
    def const_spec(a):
        nd = a.ndim
        return pl.BlockSpec(a.shape, lambda b, j, nd=nd: (0,) * nd)

    e_bf = e.astype(bf16)
    if flat_e:
        # Lane-dense edge layout: contiguous HBM DMAs, full-lane e_out stores.
        e_in = e_bf.reshape(B, N, N * d)
        e_in_spec = pl.BlockSpec((TB, N, TJ * d), lambda b, j: (b, 0, j))
        e_out_spec = pl.BlockSpec((TB, N, TJ * d), lambda b, j: (b, 0, j))
        e_out_shape = jax.ShapeDtypeStruct((B, N, N * d), bf16)
    else:
        e_in = e_bf
        e_in_spec = pl.BlockSpec((TB, N, TJ, d), lambda b, j: (b, 0, j, 0))
        e_out_spec = pl.BlockSpec((TB, N, TJ, d), lambda b, j: (b, 0, j, 0))
        e_out_shape = jax.ShapeDtypeStruct((B, N, N, d), bf16)

    in_specs = [
        pl.BlockSpec((TB, N, d), lambda b, j: (b, 0, 0)),      # x, full node axis
        pl.BlockSpec((TB, TJ, d), lambda b, j: (b, j, 0)),     # x, j-tile of the node axis
        pl.BlockSpec((TB, N, 1), lambda b, j: (b, 0, 0)),      # node_mask, full
        pl.BlockSpec((TB, TJ, 1), lambda b, j: (b, j, 0)),     # node_mask, j-tile
        e_in_spec,
    ] + [const_spec(w) for w in weights]

    out_shape = (jax.ShapeDtypeStruct((B, N, d), f32), e_out_shape)
    out_specs = (pl.BlockSpec((TB, N, d), lambda b, j: (b, 0, 0)), e_out_spec)

    kernel = functools.partial(_block_gt_kernel, num_heads=num_heads, d_head=dh,
                               fast_layout=flat_e)
    need = vmem_bytes(TB, TJ)
    vmem_limit = int(max(32 * MiB, min(2 * need, 2 * budget_bytes)))

    x_out, e_out = pl.pallas_call(
        kernel,
        grid=(B // TB, N // TJ),
        in_specs=in_specs,
        out_specs=out_specs,
        out_shape=out_shape,
        scratch_shapes=[pltpu.VMEM((TB, N, d), f32)],          # x_cat accumulator over j
        compiler_params=pltpu.CompilerParams(
            dimension_semantics=("parallel", "arbitrary"),
            vmem_limit_bytes=vmem_limit),
    )(x, x, m, m, e_in, *weights)

    if flat_e:
        e_out = e_out.reshape(B, N, N, d)
    return x_out, e_out


# --------------------------- pure-JAX reference (for checking) -------------------
def reference_blockgt(x, e, node_mask, p, num_heads):
    B, N, d = x.shape
    dh = d // num_heads
    xm = node_mask[:, :, None]
    em1 = xm[:, :, None, :]
    em2 = xm[:, None, :, :]

    xn = _layernorm(x, p["ln_g"][0], p["ln_b"][0])
    en = _layernorm(e, p["ln_g"][1], p["ln_b"][1])

    Q = (xn @ p["pw"][0] + p["pb"][0]) * xm
    K = (xn @ p["pw"][1] + p["pb"][1]) * xm
    V = (xn @ p["pw"][2] + p["pb"][2]) * xm
    E = (en @ p["pw"][3] + p["pb"][3]) * em1 * em2
    Ni = (xn @ p["pw"][4] + p["pb"][4])[:, :, None, :] * em1
    Nj = (xn @ p["pw"][5] + p["pb"][5])[:, None, :, :] * em2
    e_cat = (Ni + Nj + E) * em1 * em2

    am = (node_mask[:, :, None] * node_mask[:, None, :]) > 0
    x_heads = []
    for h in range(num_heads):
        sl = slice(h * dh, (h + 1) * dh)
        att = jnp.sum(Q[:, :, None, sl] * e_cat[..., sl] * K[:, None, :, sl],
                      axis=3) / jnp.sqrt(jnp.float32(dh))
        att = jnp.where(am, att, -1e9)
        att = jax.nn.softmax(att, axis=1)
        x_heads.append(jnp.einsum("bij,bjc->bic", att, V[:, :, sl]) * xm)

    x_mha = (jnp.concatenate(x_heads, axis=2) @ p["wow"][0] + p["wob"][0]) * xm
    e_mha = (e_cat @ p["wow"][1] + p["wob"][1]) * em1 * em2

    x1 = xn + x_mha
    x1n = _layernorm(x1, p["ln_g"][2], p["ln_b"][2])
    hx = _leaky_relu(x1n @ p["w1"][0] + p["b1"][0])
    x_out = x1 + (hx @ p["w2"][0] + p["b2"][0]) * xm

    e1 = en + e_mha
    e1n = _layernorm(e1, p["ln_g"][3], p["ln_b"][3])
    he = _leaky_relu(e1n @ p["w1"][1] + p["b1"][1])
    e_out = e1 + (he @ p["w2"][1] + p["b2"][1]) * em1 * em2
    return x_out, e_out


# --------------------------------- param init ------------------------------------
def init_params(key, d):
    ks = jax.random.split(key, 10)
    f32 = jnp.float32
    s = 0.1
    return {
        "ln_g": 1.0 + 0.1 * jax.random.normal(ks[0], (4, 1, d), f32),  # LNx,LNe,LNx2,LNe2
        "ln_b": 0.1 * jax.random.normal(ks[1], (4, 1, d), f32),
        "pw": s * jax.random.normal(ks[2], (6, d, d), f32),            # Q,K,V,E,Ni,Nj
        "pb": s * jax.random.normal(ks[3], (6, 1, d), f32),
        "wow": s * jax.random.normal(ks[4], (2, d, d), f32),           # WOx, WOe
        "wob": s * jax.random.normal(ks[5], (2, 1, d), f32),
        "w1": s * jax.random.normal(ks[6], (2, d, 4 * d), f32),        # MLPx, MLPe layer 1
        "b1": s * jax.random.normal(ks[7], (2, 1, 4 * d), f32),
        "w2": s * jax.random.normal(ks[8], (2, 4 * d, d), f32),        # MLPx, MLPe layer 2
        "b2": s * jax.random.normal(ks[9], (2, 1, d), f32),
    }


if __name__ == "__main__":
    B, N, d, H = 2, 16, 32, 4
    key = jax.random.PRNGKey(0)
    kx, ke, kp = jax.random.split(key, 3)
    x = jax.random.normal(kx, (B, N, d), jnp.float32)
    e = jax.random.normal(ke, (B, N, N, d), jnp.float32)
    node_mask = jnp.ones((B, N), jnp.float32).at[1, N - 5:].set(0.0)
    params = init_params(kp, d)

    # tj=8 forces two j-grid steps so the x_cat accumulator path is exercised.
    # Lane-dense (B, N, N*d) edge layout first; if this Mosaic build rejects the in-kernel
    # minor-dim reshapes it needs, fall back to the conservative 4-D layout.
    try:
        x_out, e_out = block_gt_pallas(x, e, node_mask, params, H, tj=8, flat_e=True)
        jax.block_until_ready((x_out, e_out))
    except Exception:
        x_out, e_out = block_gt_pallas(x, e, node_mask, params, H, tj=8, flat_e=False)
        jax.block_until_ready((x_out, e_out))

    x_ref, e_ref = reference_blockgt(x, e, node_mask, params, H)
    # bf16 MXU operands / bf16 e HBM I/O -> compare against the f32 reference at 5e-2.
    np.testing.assert_allclose(np.asarray(x_out), np.asarray(x_ref), rtol=5e-2, atol=5e-2)
    np.testing.assert_allclose(np.asarray(e_out.astype(jnp.float32)), np.asarray(e_ref),
                               rtol=5e-2, atol=5e-2)

    print("KERNEL_OK")
</pallas_src>

<mosaic_0001>
module attributes {stable_mosaic.version = 11 : i64} {
  func.func @_block_gt_kernel(%arg0: i32, %arg1: i32, %arg2: memref<1x16x32xf32, #tpu.memory_space<vmem>>, %arg3: memref<1x8x32xf32, #tpu.memory_space<vmem>>, %arg4: memref<1x16x1xf32, #tpu.memory_space<vmem>>, %arg5: memref<1x8x1xf32, #tpu.memory_space<vmem>>, %arg6: memref<1x16x256xbf16, #tpu.memory_space<vmem>>, %arg7: memref<4x1x32xf32, #tpu.memory_space<vmem>>, %arg8: memref<4x1x32xf32, #tpu.memory_space<vmem>>, %arg9: memref<32x160xbf16, #tpu.memory_space<vmem>>, %arg10: memref<1x160xf32, #tpu.memory_space<vmem>>, %arg11: memref<32x32xbf16, #tpu.memory_space<vmem>>, %arg12: memref<1x32xf32, #tpu.memory_space<vmem>>, %arg13: memref<2x32x32xbf16, #tpu.memory_space<vmem>>, %arg14: memref<2x1x32xf32, #tpu.memory_space<vmem>>, %arg15: memref<2x32x128xbf16, #tpu.memory_space<vmem>>, %arg16: memref<2x1x128xf32, #tpu.memory_space<vmem>>, %arg17: memref<2x128x32xbf16, #tpu.memory_space<vmem>>, %arg18: memref<2x1x32xf32, #tpu.memory_space<vmem>>, %arg19: memref<32x4xbf16, #tpu.memory_space<vmem>>, %arg20: memref<4x32xbf16, #tpu.memory_space<vmem>>, %arg21: memref<1x16x32xf32, #tpu.memory_space<vmem>>, %arg22: memref<1x16x256xbf16, #tpu.memory_space<vmem>>, %arg23: memref<1x16x32xf32, #tpu.memory_space<vmem>>) attributes {dimension_semantics = [#tpu.dimension_semantics<parallel>, #tpu.dimension_semantics<arbitrary>], iteration_bounds = array<i64: 2, 2>, scalar_prefetch = 0 : i64, scratch_operands = 1 : i64, tpu.core_type = #tpu.core_type<tc>, window_params = [{transform_indices = @transform_0, window_bounds = array<i64: 1, 16, 32>}, {transform_indices = @transform_1, window_bounds = array<i64: 1, 8, 32>}, {transform_indices = @transform_2, window_bounds = array<i64: 1, 16, 1>}, {transform_indices = @transform_3, window_bounds = array<i64: 1, 8, 1>}, {transform_indices = @transform_4, window_bounds = array<i64: 1, 16, 256>}, {pipeline_mode = #tpu.pipeline_mode<synchronous>, transform_indices = @transform_5, window_bounds = array<i64: 4, 1, 32>}, {pipeline_mode = #tpu.pipeline_mode<synchronous>, transform_indices = @transform_6, window_bounds = array<i64: 4, 1, 32>}, {pipeline_mode = #tpu.pipeline_mode<synchronous>, transform_indices = @transform_7, window_bounds = array<i64: 32, 160>}, {pipeline_mode = #tpu.pipeline_mode<synchronous>, transform_indices = @transform_8, window_bounds = array<i64: 1, 160>}, {pipeline_mode = #tpu.pipeline_mode<synchronous>, transform_indices = @transform_9, window_bounds = array<i64: 32, 32>}, {pipeline_mode = #tpu.pipeline_mode<synchronous>, transform_indices = @transform_10, window_bounds = array<i64: 1, 32>}, {pipeline_mode = #tpu.pipeline_mode<synchronous>, transform_indices = @transform_11, window_bounds = array<i64: 2, 32, 32>}, {pipeline_mode = #tpu.pipeline_mode<synchronous>, transform_indices = @transform_12, window_bounds = array<i64: 2, 1, 32>}, {pipeline_mode = #tpu.pipeline_mode<synchronous>, transform_indices = @transform_13, window_bounds = array<i64: 2, 32, 128>}, {pipeline_mode = #tpu.pipeline_mode<synchronous>, transform_indices = @transform_14, window_bounds = array<i64: 2, 1, 128>}, {pipeline_mode = #tpu.pipeline_mode<synchronous>, transform_indices = @transform_15, window_bounds = array<i64: 2, 128, 32>}, {pipeline_mode = #tpu.pipeline_mode<synchronous>, transform_indices = @transform_16, window_bounds = array<i64: 2, 1, 32>}, {pipeline_mode = #tpu.pipeline_mode<synchronous>, transform_indices = @transform_17, window_bounds = array<i64: 32, 4>}, {pipeline_mode = #tpu.pipeline_mode<synchronous>, transform_indices = @transform_18, window_bounds = array<i64: 4, 32>}, {transform_indices = @transform_19, window_bounds = array<i64: 1, 16, 32>}, {transform_indices = @transform_20, window_bounds = array<i64: 1, 16, 256>}]} {
    %c0 = arith.constant 0 : index
    %c0_0 = arith.constant 0 : index
    %c0_1 = arith.constant 0 : index
    %0 = vector.load %arg4[%c0, %c0_0, %c0_1] : memref<1x16x1xf32, #tpu.memory_space<vmem>>, vector<1x16x1xf32>
    %1 = vector.shape_cast %0 : vector<1x16x1xf32> to vector<16x1xf32>
    %c0_2 = arith.constant 0 : index
    %c0_3 = arith.constant 0 : index
    %c0_4 = arith.constant 0 : index
    %2 = vector.load %arg2[%c0_2, %c0_3, %c0_4] : memref<1x16x32xf32, #tpu.memory_space<vmem>>, vector<1x16x32xf32>
    %3 = vector.shape_cast %2 : vector<1x16x32xf32> to vector<16x32xf32>
    %c0_5 = arith.constant 0 : index
    %c0_6 = arith.constant 0 : index
    %c0_7 = arith.constant 0 : index
    %4 = vector.load %arg7[%c0_5, %c0_6, %c0_7] : memref<4x1x32xf32, #tpu.memory_space<vmem>>, vector<1x1x32xf32>
    %5 = vector.shape_cast %4 : vector<1x1x32xf32> to vector<1x32xf32>
    %c0_8 = arith.constant 0 : index
    %c0_9 = arith.constant 0 : index
    %c0_10 = arith.constant 0 : index
    %6 = vector.load %arg8[%c0_8, %c0_9, %c0_10] : memref<4x1x32xf32, #tpu.memory_space<vmem>>, vector<1x1x32xf32>
    %7 = vector.shape_cast %6 : vector<1x1x32xf32> to vector<1x32xf32>
    %cst = arith.constant dense<0.000000e+00> : vector<16xf32>
    %8 = vector.multi_reduction <add>, %3, %cst [1] : vector<16x32xf32> to vector<16xf32>
    %9 = vector.shape_cast %8 : vector<16xf32> to vector<16x1xf32>
    %cst_11 = arith.constant 3.200000e+01 : f32
    %10 = vector.broadcast %cst_11 : f32 to vector<16x1xf32>
    %11 = arith.divf %9, %10 : vector<16x1xf32>
    %12 = vector.broadcast %11 : vector<16x1xf32> to vector<16x32xf32>
    %13 = arith.subf %3, %12 : vector<16x32xf32>
    %14 = arith.mulf %13, %13 : vector<16x32xf32>
    %cst_12 = arith.constant dense<0.000000e+00> : vector<16xf32>
    %15 = vector.multi_reduction <add>, %14, %cst_12 [1] : vector<16x32xf32> to vector<16xf32>
    %16 = vector.shape_cast %15 : vector<16xf32> to vector<16x1xf32>
    %cst_13 = arith.constant 3.200000e+01 : f32
    %17 = vector.broadcast %cst_13 : f32 to vector<16x1xf32>
    %18 = arith.divf %16, %17 : vector<16x1xf32>
    %cst_14 = arith.constant 9.99999974E-6 : f32
    %19 = vector.broadcast %cst_14 : f32 to vector<16x1xf32>
    %20 = arith.addf %18, %19 : vector<16x1xf32>
    %21 = math.rsqrt %20 : vector<16x1xf32>
    %22 = vector.broadcast %21 : vector<16x1xf32> to vector<16x32xf32>
    %23 = arith.mulf %13, %22 : vector<16x32xf32>
    %24 = vector.broadcast %5 : vector<1x32xf32> to vector<16x32xf32>
    %25 = arith.mulf %23, %24 : vector<16x32xf32>
    %26 = vector.broadcast %7 : vector<1x32xf32> to vector<16x32xf32>
    %27 = arith.addf %25, %26 : vector<16x32xf32>
    %c0_15 = arith.constant 0 : index
    %c0_16 = arith.constant 0 : index
    %28 = vector.load %arg9[%c0_15, %c0_16] : memref<32x160xbf16, #tpu.memory_space<vmem>>, vector<32x160xbf16>
    %c0_17 = arith.constant 0 : index
    %c0_18 = arith.constant 0 : index
    %29 = vector.load %arg10[%c0_17, %c0_18] : memref<1x160xf32, #tpu.memory_space<vmem>>, vector<1x160xf32>
    %30 = arith.truncf %27 : vector<16x32xf32> to vector<16x32xbf16>
    %cst_19 = arith.constant dense<0.000000e+00> : vector<16x160xf32>
    %31 = tpu.matmul %30, %28, %cst_19 {dimension_numbers = #tpu.dot_dimension_numbers<[1], [0], [0], [1], [0, 0, 1, 1], [], []>} : vector<16x32xbf16>, vector<32x160xbf16>, vector<16x160xf32> -> vector<16x160xf32>
    %32 = vector.broadcast %29 : vector<1x160xf32> to vector<16x160xf32>
    %33 = arith.addf %31, %32 : vector<16x160xf32>
    %34 = vector.extract_strided_slice %33 {offsets = [0, 0], sizes = [16, 32], strides = [1, 1]} : vector<16x160xf32> to vector<16x32xf32>
    %35 = vector.broadcast %1 : vector<16x1xf32> to vector<16x32xf32>
    %36 = arith.mulf %34, %35 : vector<16x32xf32>
    %37 = vector.shape_cast %36 : vector<16x32xf32> to vector<1x16x1x32xf32>
    %38 = vector.extract_strided_slice %33 {offsets = [0, 96], sizes = [16, 32], strides = [1, 1]} : vector<16x160xf32> to vector<16x32xf32>
    %39 = vector.shape_cast %38 : vector<16x32xf32> to vector<1x16x1x32xf32>
    %c0_20 = arith.constant 0 : index
    %c0_21 = arith.constant 0 : index
    %c0_22 = arith.constant 0 : index
    %40 = vector.load %arg5[%c0_20, %c0_21, %c0_22] : memref<1x8x1xf32, #tpu.memory_space<vmem>>, vector<1x8x1xf32>
    %41 = vector.shape_cast %40 : vector<1x8x1xf32> to vector<8x1xf32>
    %c0_23 = arith.constant 0 : index
    %c0_24 = arith.constant 0 : index
    %c0_25 = arith.constant 0 : index
    %42 = vector.load %arg3[%c0_23, %c0_24, %c0_25] : memref<1x8x32xf32, #tpu.memory_space<vmem>>, vector<1x8x32xf32>
    %43 = vector.shape_cast %42 : vector<1x8x32xf32> to vector<8x32xf32>
    %c0_26 = arith.constant 0 : index
    %c0_27 = arith.constant 0 : index
    %c0_28 = arith.constant 0 : index
    %44 = vector.load %arg7[%c0_26, %c0_27, %c0_28] : memref<4x1x32xf32, #tpu.memory_space<vmem>>, vector<1x1x32xf32>
    %45 = vector.shape_cast %44 : vector<1x1x32xf32> to vector<1x32xf32>
    %c0_29 = arith.constant 0 : index
    %c0_30 = arith.constant 0 : index
    %c0_31 = arith.constant 0 : index
    %46 = vector.load %arg8[%c0_29, %c0_30, %c0_31] : memref<4x1x32xf32, #tpu.memory_space<vmem>>, vector<1x1x32xf32>
    %47 = vector.shape_cast %46 : vector<1x1x32xf32> to vector<1x32xf32>
    %cst_32 = arith.constant dense<0.000000e+00> : vector<8xf32>
    %48 = vector.multi_reduction <add>, %43, %cst_32 [1] : vector<8x32xf32> to vector<8xf32>
    %49 = vector.shape_cast %48 : vector<8xf32> to vector<8x1xf32>
    %cst_33 = arith.constant 3.200000e+01 : f32
    %50 = vector.broadcast %cst_33 : f32 to vector<8x1xf32>
    %51 = arith.divf %49, %50 : vector<8x1xf32>
    %52 = vector.broadcast %51 : vector<8x1xf32> to vector<8x32xf32>
    %53 = arith.subf %43, %52 : vector<8x32xf32>
    %54 = arith.mulf %53, %53 : vector<8x32xf32>
    %cst_34 = arith.constant dense<0.000000e+00> : vector<8xf32>
    %55 = vector.multi_reduction <add>, %54, %cst_34 [1] : vector<8x32xf32> to vector<8xf32>
    %56 = vector.shape_cast %55 : vector<8xf32> to vector<8x1xf32>
    %cst_35 = arith.constant 3.200000e+01 : f32
    %57 = vector.broadcast %cst_35 : f32 to vector<8x1xf32>
    %58 = arith.divf %56, %57 : vector<8x1xf32>
    %cst_36 = arith.constant 9.99999974E-6 : f32
    %59 = vector.broadcast %cst_36 : f32 to vector<8x1xf32>
    %60 = arith.addf %58, %59 : vector<8x1xf32>
    %61 = math.rsqrt %60 : vector<8x1xf32>
    %62 = vector.broadcast %61 : vector<8x1xf32> to vector<8x32xf32>
    %63 = arith.mulf %53, %62 : vector<8x32xf32>
    %64 = vector.broadcast %45 : vector<1x32xf32> to vector<8x32xf32>
    %65 = arith.mulf %63, %64 : vector<8x32xf32>
    %66 = vector.broadcast %47 : vector<1x32xf32> to vector<8x32xf32>
    %67 = arith.addf %65, %66 : vector<8x32xf32>
    %c0_37 = arith.constant 0 : index
    %c0_38 = arith.constant 0 : index
    %68 = vector.load %arg9[%c0_37, %c0_38] : memref<32x160xbf16, #tpu.memory_space<vmem>>, vector<32x160xbf16>
    %c0_39 = arith.constant 0 : index
    %c0_40 = arith.constant 0 : index
    %69 = vector.load %arg10[%c0_39, %c0_40] : memref<1x160xf32, #tpu.memory_space<vmem>>, vector<1x160xf32>
    %70 = arith.truncf %67 : vector<8x32xf32> to vector<8x32xbf16>
    %cst_41 = arith.constant dense<0.000000e+00> : vector<8x160xf32>
    %71 = tpu.matmul %70, %68, %cst_41 {dimension_numbers = #tpu.dot_dimension_numbers<[1], [0], [0], [1], [0, 0, 1, 1], [], []>} : vector<8x32xbf16>, vector<32x160xbf16>, vector<8x160xf32> -> vector<8x160xf32>
    %72 = vector.broadcast %69 : vector<1x160xf32> to vector<8x160xf32>
    %73 = arith.addf %71, %72 : vector<8x160xf32>
    %74 = vector.extract_strided_slice %73 {offsets = [0, 32], sizes = [8, 32], strides = [1, 1]} : vector<8x160xf32> to vector<8x32xf32>
    %75 = vector.broadcast %41 : vector<8x1xf32> to vector<8x32xf32>
    %76 = arith.mulf %74, %75 : vector<8x32xf32>
    %77 = vector.shape_cast %76 : vector<8x32xf32> to vector<1x1x8x32xf32>
    %78 = vector.extract_strided_slice %73 {offsets = [0, 64], sizes = [8, 32], strides = [1, 1]} : vector<8x160xf32> to vector<8x32xf32>
    %79 = vector.broadcast %41 : vector<8x1xf32> to vector<8x32xf32>
    %80 = arith.mulf %78, %79 : vector<8x32xf32>
    %81 = vector.shape_cast %80 : vector<8x32xf32> to vector<1x8x32xf32>
    %82 = vector.extract_strided_slice %73 {offsets = [0, 128], sizes = [8, 32], strides = [1, 1]} : vector<8x160xf32> to vector<8x32xf32>
    %83 = vector.shape_cast %82 : vector<8x32xf32> to vector<1x1x8x32xf32>
    %c0_42 = arith.constant 0 : index
    %c0_43 = arith.constant 0 : index
    %c0_44 = arith.constant 0 : index
    %84 = vector.load %arg6[%c0_42, %c0_43, %c0_44] : memref<1x16x256xbf16, #tpu.memory_space<vmem>>, vector<1x16x256xbf16>
    %85 = arith.extf %84 : vector<1x16x256xbf16> to vector<1x16x256xf32>
    %86 = vector.shape_cast %85 : vector<1x16x256xf32> to vector<128x32xf32>
    %c1 = arith.constant 1 : index
    %c0_45 = arith.constant 0 : index
    %c0_46 = arith.constant 0 : index
    %87 = vector.load %arg7[%c1, %c0_45, %c0_46] : memref<4x1x32xf32, #tpu.memory_space<vmem>>, vector<1x1x32xf32>
    %88 = vector.shape_cast %87 : vector<1x1x32xf32> to vector<1x32xf32>
    %c1_47 = arith.constant 1 : index
    %c0_48 = arith.constant 0 : index
    %c0_49 = arith.constant 0 : index
    %89 = vector.load %arg8[%c1_47, %c0_48, %c0_49] : memref<4x1x32xf32, #tpu.memory_space<vmem>>, vector<1x1x32xf32>
    %90 = vector.shape_cast %89 : vector<1x1x32xf32> to vector<1x32xf32>
    %cst_50 = arith.constant dense<0.000000e+00> : vector<128xf32>
    %91 = vector.multi_reduction <add>, %86, %cst_50 [1] : vector<128x32xf32> to vector<128xf32>
    %92 = vector.shape_cast %91 : vector<128xf32> to vector<128x1xf32>
    %cst_51 = arith.constant 3.200000e+01 : f32
    %93 = vector.broadcast %cst_51 : f32 to vector<128x1xf32>
    %94 = arith.divf %92, %93 : vector<128x1xf32>
    %95 = vector.broadcast %94 : vector<128x1xf32> to vector<128x32xf32>
    %96 = arith.subf %86, %95 : vector<128x32xf32>
    %97 = arith.mulf %96, %96 : vector<128x32xf32>
    %cst_52 = arith.constant dense<0.000000e+00> : vector<128xf32>
    %98 = vector.multi_reduction <add>, %97, %cst_52 [1] : vector<128x32xf32> to vector<128xf32>
    %99 = vector.shape_cast %98 : vector<128xf32> to vector<128x1xf32>
    %cst_53 = arith.constant 3.200000e+01 : f32
    %100 = vector.broadcast %cst_53 : f32 to vector<128x1xf32>
    %101 = arith.divf %99, %100 : vector<128x1xf32>
    %cst_54 = arith.constant 9.99999974E-6 : f32
    %102 = vector.broadcast %cst_54 : f32 to vector<128x1xf32>
    %103 = arith.addf %101, %102 : vector<128x1xf32>
    %104 = math.rsqrt %103 : vector<128x1xf32>
    %105 = vector.broadcast %104 : vector<128x1xf32> to vector<128x32xf32>
    %106 = arith.mulf %96, %105 : vector<128x32xf32>
    %107 = vector.broadcast %88 : vector<1x32xf32> to vector<128x32xf32>
    %108 = arith.mulf %106, %107 : vector<128x32xf32>
    %109 = vector.broadcast %90 : vector<1x32xf32> to vector<128x32xf32>
    %110 = arith.addf %108, %109 : vector<128x32xf32>
    %c0_55 = arith.constant 0 : index
    %c0_56 = arith.constant 0 : index
    %111 = vector.load %arg11[%c0_55, %c0_56] : memref<32x32xbf16, #tpu.memory_space<vmem>>, vector<32x32xbf16>
    %c0_57 = arith.constant 0 : index
    %c0_58 = arith.constant 0 : index
    %112 = vector.load %arg12[%c0_57, %c0_58] : memref<1x32xf32, #tpu.memory_space<vmem>>, vector<1x32xf32>
    %113 = arith.truncf %110 : vector<128x32xf32> to vector<128x32xbf16>
    %cst_59 = arith.constant dense<0.000000e+00> : vector<128x32xf32>
    %114 = tpu.matmul %113, %111, %cst_59 {dimension_numbers = #tpu.dot_dimension_numbers<[1], [0], [0], [1], [0, 0, 1, 1], [], []>} : vector<128x32xbf16>, vector<32x32xbf16>, vector<128x32xf32> -> vector<128x32xf32>
    %115 = vector.broadcast %112 : vector<1x32xf32> to vector<128x32xf32>
    %116 = arith.addf %114, %115 : vector<128x32xf32>
    %117 = vector.shape_cast %116 : vector<128x32xf32> to vector<1x16x8x32xf32>
    %118 = vector.shape_cast %0 : vector<1x16x1xf32> to vector<1x16x1x1xf32>
    %119 = vector.shape_cast %40 : vector<1x8x1xf32> to vector<1x1x8x1xf32>
    %120 = vector.broadcast %118 : vector<1x16x1x1xf32> to vector<1x16x8x1xf32>
    %121 = vector.broadcast %119 : vector<1x1x8x1xf32> to vector<1x16x8x1xf32>
    %122 = arith.mulf %120, %121 : vector<1x16x8x1xf32>
    %123 = vector.shape_cast %122 : vector<1x16x8x1xf32> to vector<128x1xf32>
    %124 = vector.broadcast %39 : vector<1x16x1x32xf32> to vector<1x16x8x32xf32>
    %125 = vector.broadcast %83 : vector<1x1x8x32xf32> to vector<1x16x8x32xf32>
    %126 = arith.addf %124, %125 : vector<1x16x8x32xf32>
    %127 = arith.addf %126, %117 : vector<1x16x8x32xf32>
    %128 = vector.broadcast %122 : vector<1x16x8x1xf32> to vector<1x16x8x32xf32>
    %129 = arith.mulf %127, %128 : vector<1x16x8x32xf32>
    %130 = vector.shape_cast %129 : vector<1x16x8x32xf32> to vector<128x32xf32>
    %131 = vector.broadcast %37 : vector<1x16x1x32xf32> to vector<1x16x8x32xf32>
    %132 = arith.mulf %131, %129 : vector<1x16x8x32xf32>
    %133 = vector.broadcast %77 : vector<1x1x8x32xf32> to vector<1x16x8x32xf32>
    %134 = arith.mulf %132, %133 : vector<1x16x8x32xf32>
    %135 = vector.shape_cast %134 : vector<1x16x8x32xf32> to vector<128x32xf32>
    %136 = arith.truncf %135 : vector<128x32xf32> to vector<128x32xbf16>
    %c0_60 = arith.constant 0 : index
    %c0_61 = arith.constant 0 : index
    %137 = vector.load %arg19[%c0_60, %c0_61] : memref<32x4xbf16, #tpu.memory_space<vmem>>, vector<32x4xbf16>
    %cst_62 = arith.constant dense<0.000000e+00> : vector<128x4xf32>
    %138 = tpu.matmul %136, %137, %cst_62 {dimension_numbers = #tpu.dot_dimension_numbers<[1], [0], [0], [1], [0, 0, 1, 1], [], []>} : vector<128x32xbf16>, vector<32x4xbf16>, vector<128x4xf32> -> vector<128x4xf32>
    %139 = vector.shape_cast %138 : vector<128x4xf32> to vector<1x16x8x4xf32>
    %cst_63 = arith.constant 0.000000e+00 : f32
    %140 = vector.broadcast %cst_63 : f32 to vector<1x16x8x1xf32>
    %141 = arith.cmpf ogt, %122, %140 : vector<1x16x8x1xf32>
    %cst_64 = arith.constant -1.000000e+09 : f32
    %142 = vector.shape_cast %141 : vector<1x16x8x1xi1> to vector<1x16x8x1xi1>
    %143 = vector.broadcast %142 : vector<1x16x8x1xi1> to vector<1x16x8x4xi1>
    %144 = vector.broadcast %cst_64 : f32 to vector<1x16x8x4xf32>
    %145 = arith.select %143, %139, %144 : vector<1x16x8x4xi1>, vector<1x16x8x4xf32>
    %146 = vector.shape_cast %145 : vector<1x16x8x4xf32> to vector<1x16x32xf32>
    %cst_65 = arith.constant dense<0xFF800000> : vector<1x32xf32>
    %147 = vector.multi_reduction <maximumf>, %146, %cst_65 [1] : vector<1x16x32xf32> to vector<1x32xf32>
    %148 = vector.shape_cast %147 : vector<1x32xf32> to vector<1x1x32xf32>
    %149 = vector.broadcast %148 : vector<1x1x32xf32> to vector<1x16x32xf32>
    %150 = arith.subf %146, %149 : vector<1x16x32xf32>
    %151 = math.exp %150 : vector<1x16x32xf32>
    %cst_66 = arith.constant dense<0.000000e+00> : vector<1x32xf32>
    %152 = vector.multi_reduction <add>, %151, %cst_66 [1] : vector<1x16x32xf32> to vector<1x32xf32>
    %153 = vector.shape_cast %152 : vector<1x32xf32> to vector<1x1x32xf32>
    %154 = tpu.reciprocal %153 {approx = true} : vector<1x1x32xf32> -> vector<1x1x32xf32>
    %155 = vector.broadcast %154 : vector<1x1x32xf32> to vector<1x16x32xf32>
    %156 = arith.mulf %151, %155 : vector<1x16x32xf32>
    %157 = vector.shape_cast %156 : vector<1x16x32xf32> to vector<1x16x8x4xf32>
    %158 = vector.extract_strided_slice %157 {offsets = [0, 0, 0, 0], sizes = [1, 16, 8, 1], strides = [1, 1, 1, 1]} : vector<1x16x8x4xf32> to vector<1x16x8x1xf32>
    %159 = vector.shape_cast %158 : vector<1x16x8x1xf32> to vector<1x16x8xf32>
    %160 = arith.truncf %159 : vector<1x16x8xf32> to vector<1x16x8xbf16>
    %161 = vector.extract_strided_slice %81 {offsets = [0, 0, 0], sizes = [1, 8, 8], strides = [1, 1, 1]} : vector<1x8x32xf32> to vector<1x8x8xf32>
    %162 = arith.truncf %161 : vector<1x8x8xf32> to vector<1x8x8xbf16>
    "tpu.trace_start"() <{level = 10 : i32, message = "bij,bjc->bic"}> : () -> ()
    %cst_67 = arith.constant dense<0.000000e+00> : vector<1x16x8xf32>
    %163 = tpu.matmul %160, %162, %cst_67 {dimension_numbers = #tpu.dot_dimension_numbers<[2], [1], [1], [2], [0, 0, 0, 1, 1, 2], [0], [0]>} : vector<1x16x8xbf16>, vector<1x8x8xbf16>, vector<1x16x8xf32> -> vector<1x16x8xf32>
    "tpu.trace_stop"() : () -> ()
    %164 = vector.extract_strided_slice %157 {offsets = [0, 0, 0, 1], sizes = [1, 16, 8, 1], strides = [1, 1, 1, 1]} : vector<1x16x8x4xf32> to vector<1x16x8x1xf32>
    %165 = vector.shape_cast %164 : vector<1x16x8x1xf32> to vector<1x16x8xf32>
    %166 = arith.truncf %165 : vector<1x16x8xf32> to vector<1x16x8xbf16>
    %167 = vector.extract_strided_slice %81 {offsets = [0, 0, 8], sizes = [1, 8, 8], strides = [1, 1, 1]} : vector<1x8x32xf32> to vector<1x8x8xf32>
    %168 = arith.truncf %167 : vector<1x8x8xf32> to vector<1x8x8xbf16>
    "tpu.trace_start"() <{level = 10 : i32, message = "bij,bjc->bic"}> : () -> ()
    %cst_68 = arith.constant dense<0.000000e+00> : vector<1x16x8xf32>
    %169 = tpu.matmul %166, %168, %cst_68 {dimension_numbers = #tpu.dot_dimension_numbers<[2], [1], [1], [2], [0, 0, 0, 1, 1, 2], [0], [0]>} : vector<1x16x8xbf16>, vector<1x8x8xbf16>, vector<1x16x8xf32> -> vector<1x16x8xf32>
    "tpu.trace_stop"() : () -> ()
    %170 = vector.extract_strided_slice %157 {offsets = [0, 0, 0, 2], sizes = [1, 16, 8, 1], strides = [1, 1, 1, 1]} : vector<1x16x8x4xf32> to vector<1x16x8x1xf32>
    %171 = vector.shape_cast %170 : vector<1x16x8x1xf32> to vector<1x16x8xf32>
    %172 = arith.truncf %171 : vector<1x16x8xf32> to vector<1x16x8xbf16>
    %173 = vector.extract_strided_slice %81 {offsets = [0, 0, 16], sizes = [1, 8, 8], strides = [1, 1, 1]} : vector<1x8x32xf32> to vector<1x8x8xf32>
    %174 = arith.truncf %173 : vector<1x8x8xf32> to vector<1x8x8xbf16>
    "tpu.trace_start"() <{level = 10 : i32, message = "bij,bjc->bic"}> : () -> ()
    %cst_69 = arith.constant dense<0.000000e+00> : vector<1x16x8xf32>
    %175 = tpu.matmul %172, %174, %cst_69 {dimension_numbers = #tpu.dot_dimension_numbers<[2], [1], [1], [2], [0, 0, 0, 1, 1, 2], [0], [0]>} : vector<1x16x8xbf16>, vector<1x8x8xbf16>, vector<1x16x8xf32> -> vector<1x16x8xf32>
    "tpu.trace_stop"() : () -> ()
    %176 = vector.extract_strided_slice %157 {offsets = [0, 0, 0, 3], sizes = [1, 16, 8, 1], strides = [1, 1, 1, 1]} : vector<1x16x8x4xf32> to vector<1x16x8x1xf32>
    %177 = vector.shape_cast %176 : vector<1x16x8x1xf32> to vector<1x16x8xf32>
    %178 = arith.truncf %177 : vector<1x16x8xf32> to vector<1x16x8xbf16>
    %179 = vector.extract_strided_slice %81 {offsets = [0, 0, 24], sizes = [1, 8, 8], strides = [1, 1, 1]} : vector<1x8x32xf32> to vector<1x8x8xf32>
    %180 = arith.truncf %179 : vector<1x8x8xf32> to vector<1x8x8xbf16>
    "tpu.trace_start"() <{level = 10 : i32, message = "bij,bjc->bic"}> : () -> ()
    %cst_70 = arith.constant dense<0.000000e+00> : vector<1x16x8xf32>
    %181 = tpu.matmul %178, %180, %cst_70 {dimension_numbers = #tpu.dot_dimension_numbers<[2], [1], [1], [2], [0, 0, 0, 1, 1, 2], [0], [0]>} : vector<1x16x8xbf16>, vector<1x8x8xbf16>, vector<1x16x8xf32> -> vector<1x16x8xf32>
    "tpu.trace_stop"() : () -> ()
    %182 = tpu.concatenate %163, %169, %175, %181 in 2 : vector<1x16x8xf32>, vector<1x16x8xf32>, vector<1x16x8xf32>, vector<1x16x8xf32> -> vector<1x16x32xf32>
    %c0_i32 = arith.constant 0 : i32
    %183 = arith.cmpi eq, %arg1, %c0_i32 : i32
    %184 = arith.extui %183 : i1 to i32
    %c0_i32_71 = arith.constant 0 : i32
    %185 = arith.cmpi ne, %184, %c0_i32_71 : i32
    scf.if %185 {
      %cst_115 = arith.constant 0.000000e+00 : f32
      %254 = vector.broadcast %cst_115 : f32 to vector<1x16x32xf32>
      %c0_116 = arith.constant 0 : index
      %c0_117 = arith.constant 0 : index
      %c0_118 = arith.constant 0 : index
      %255 = vector.load %arg23[%c0_116, %c0_117, %c0_118] : memref<1x16x32xf32, #tpu.memory_space<vmem>>, vector<1x16x32xf32>
      tpu.vector_store %arg23[%c0_116, %c0_117, %c0_118], %254 {strides = array<i32>} : memref<1x16x32xf32, #tpu.memory_space<vmem>>, vector<1x16x32xf32>,
    } else {
    }
    %c0_72 = arith.constant 0 : index
    %c0_73 = arith.constant 0 : index
    %c0_74 = arith.constant 0 : index
    %186 = vector.load %arg23[%c0_72, %c0_73, %c0_74] : memref<1x16x32xf32, #tpu.memory_space<vmem>>, vector<1x16x32xf32>
    %187 = arith.addf %186, %182 : vector<1x16x32xf32>
    %c0_75 = arith.constant 0 : index
    %c0_76 = arith.constant 0 : index
    %c0_77 = arith.constant 0 : index
    %188 = vector.load %arg23[%c0_75, %c0_76, %c0_77] : memref<1x16x32xf32, #tpu.memory_space<vmem>>, vector<1x16x32xf32>
    tpu.vector_store %arg23[%c0_75, %c0_76, %c0_77], %187 {strides = array<i32>} : memref<1x16x32xf32, #tpu.memory_space<vmem>>, vector<1x16x32xf32>,
    %c1_78 = arith.constant 1 : index
    %c0_79 = arith.constant 0 : index
    %c0_80 = arith.constant 0 : index
    %189 = vector.load %arg13[%c1_78, %c0_79, %c0_80] : memref<2x32x32xbf16, #tpu.memory_space<vmem>>, vector<1x32x32xbf16>
    %190 = vector.shape_cast %189 : vector<1x32x32xbf16> to vector<32x32xbf16>
    %c1_81 = arith.constant 1 : index
    %c0_82 = arith.constant 0 : index
    %c0_83 = arith.constant 0 : index
    %191 = vector.load %arg14[%c1_81, %c0_82, %c0_83] : memref<2x1x32xf32, #tpu.memory_space<vmem>>, vector<1x1x32xf32>
    %192 = vector.shape_cast %191 : vector<1x1x32xf32> to vector<1x32xf32>
    %193 = arith.truncf %130 : vector<128x32xf32> to vector<128x32xbf16>
    %cst_84 = arith.constant dense<0.000000e+00> : vector<128x32xf32>
    %194 = tpu.matmul %193, %190, %cst_84 {dimension_numbers = #tpu.dot_dimension_numbers<[1], [0], [0], [1], [0, 0, 1, 1], [], []>} : vector<128x32xbf16>, vector<32x32xbf16>, vector<128x32xf32> -> vector<128x32xf32>
    %195 = vector.broadcast %192 : vector<1x32xf32> to vector<128x32xf32>
    %196 = arith.addf %194, %195 : vector<128x32xf32>
    %197 = vector.broadcast %123 : vector<128x1xf32> to vector<128x32xf32>
    %198 = arith.mulf %196, %197 : vector<128x32xf32>
    %199 = arith.addf %110, %198 : vector<128x32xf32>
    %c3 = arith.constant 3 : index
    %c0_85 = arith.constant 0 : index
    %c0_86 = arith.constant 0 : index
    %200 = vector.load %arg7[%c3, %c0_85, %c0_86] : memref<4x1x32xf32, #tpu.memory_space<vmem>>, vector<1x1x32xf32>
    %201 = vector.shape_cast %200 : vector<1x1x32xf32> to vector<1x32xf32>
    %c3_87 = arith.constant 3 : index
    %c0_88 = arith.constant 0 : index
    %c0_89 = arith.constant 0 : index
    %202 = vector.load %arg8[%c3_87, %c0_88, %c0_89] : memref<4x1x32xf32, #tpu.memory_space<vmem>>, vector<1x1x32xf32>
    %203 = vector.shape_cast %202 : vector<1x1x32xf32> to vector<1x32xf32>
    %cst_90 = arith.constant dense<0.000000e+00> : vector<128xf32>
    %204 = vector.multi_reduction <add>, %199, %cst_90 [1] : vector<128x32xf32> to vector<128xf32>
    %205 = vector.shape_cast %204 : vector<128xf32> to vector<128x1xf32>
    %cst_91 = arith.constant 3.200000e+01 : f32
    %206 = vector.broadcast %cst_91 : f32 to vector<128x1xf32>
    %207 = arith.divf %205, %206 : vector<128x1xf32>
    %208 = vector.broadcast %207 : vector<128x1xf32> to vector<128x32xf32>
    %209 = arith.subf %199, %208 : vector<128x32xf32>
    %210 = arith.mulf %209, %209 : vector<128x32xf32>
    %cst_92 = arith.constant dense<0.000000e+00> : vector<128xf32>
    %211 = vector.multi_reduction <add>, %210, %cst_92 [1] : vector<128x32xf32> to vector<128xf32>
    %212 = vector.shape_cast %211 : vector<128xf32> to vector<128x1xf32>
    %cst_93 = arith.constant 3.200000e+01 : f32
    %213 = vector.broadcast %cst_93 : f32 to vector<128x1xf32>
    %214 = arith.divf %212, %213 : vector<128x1xf32>
    %cst_94 = arith.constant 9.99999974E-6 : f32
    %215 = vector.broadcast %cst_94 : f32 to vector<128x1xf32>
    %216 = arith.addf %214, %215 : vector<128x1xf32>
    %217 = math.rsqrt %216 : vector<128x1xf32>
    %218 = vector.broadcast %217 : vector<128x1xf32> to vector<128x32xf32>
    %219 = arith.mulf %209, %218 : vector<128x32xf32>
    %220 = vector.broadcast %201 : vector<1x32xf32> to vector<128x32xf32>
    %221 = arith.mulf %219, %220 : vector<128x32xf32>
    %222 = vector.broadcast %203 : vector<1x32xf32> to vector<128x32xf32>
    %223 = arith.addf %221, %222 : vector<128x32xf32>
    %c1_95 = arith.constant 1 : index
    %c0_96 = arith.constant 0 : index
    %c0_97 = arith.constant 0 : index
    %224 = vector.load %arg15[%c1_95, %c0_96, %c0_97] : memref<2x32x128xbf16, #tpu.memory_space<vmem>>, vector<1x32x128xbf16>
    %225 = vector.shape_cast %224 : vector<1x32x128xbf16> to vector<32x128xbf16>
    %c1_98 = arith.constant 1 : index
    %c0_99 = arith.constant 0 : index
    %c0_100 = arith.constant 0 : index
    %226 = vector.load %arg16[%c1_98, %c0_99, %c0_100] : memref<2x1x128xf32, #tpu.memory_space<vmem>>, vector<1x1x128xf32>
    %227 = vector.shape_cast %226 : vector<1x1x128xf32> to vector<1x128xf32>
    %228 = arith.truncf %223 : vector<128x32xf32> to vector<128x32xbf16>
    %cst_101 = arith.constant dense<0.000000e+00> : vector<128x128xf32>
    %229 = tpu.matmul %228, %225, %cst_101 {dimension_numbers = #tpu.dot_dimension_numbers<[1], [0], [0], [1], [0, 0, 1, 1], [], []>} : vector<128x32xbf16>, vector<32x128xbf16>, vector<128x128xf32> -> vector<128x128xf32>
    %230 = vector.broadcast %227 : vector<1x128xf32> to vector<128x128xf32>
    %231 = arith.addf %229, %230 : vector<128x128xf32>
    %cst_102 = arith.constant 0.000000e+00 : f32
    %232 = vector.broadcast %cst_102 : f32 to vector<128x128xf32>
    %233 = arith.cmpf ogt, %231, %232 : vector<128x128xf32>
    %cst_103 = arith.constant 0.00999999977 : f32
    %234 = vector.broadcast %cst_103 : f32 to vector<128x128xf32>
    %235 = arith.mulf %234, %231 : vector<128x128xf32>
    %236 = arith.select %233, %231, %235 : vector<128x128xi1>, vector<128x128xf32>
    %c1_104 = arith.constant 1 : index
    %c0_105 = arith.constant 0 : index
    %c0_106 = arith.constant 0 : index
    %237 = vector.load %arg17[%c1_104, %c0_105, %c0_106] : memref<2x128x32xbf16, #tpu.memory_space<vmem>>, vector<1x128x32xbf16>
    %238 = vector.shape_cast %237 : vector<1x128x32xbf16> to vector<128x32xbf16>
    %c1_107 = arith.constant 1 : index
    %c0_108 = arith.constant 0 : index
    %c0_109 = arith.constant 0 : index
    %239 = vector.load %arg18[%c1_107, %c0_108, %c0_109] : memref<2x1x32xf32, #tpu.memory_space<vmem>>, vector<1x1x32xf32>
    %240 = vector.shape_cast %239 : vector<1x1x32xf32> to vector<1x32xf32>
    %241 = arith.truncf %236 : vector<128x128xf32> to vector<128x128xbf16>
    %cst_110 = arith.constant dense<0.000000e+00> : vector<128x32xf32>
    %242 = tpu.matmul %241, %238, %cst_110 {dimension_numbers = #tpu.dot_dimension_numbers<[1], [0], [0], [1], [0, 0, 1, 1], [], []>} : vector<128x128xbf16>, vector<128x32xbf16>, vector<128x32xf32> -> vector<128x32xf32>
    %243 = vector.broadcast %240 : vector<1x32xf32> to vector<128x32xf32>
    %244 = arith.addf %242, %243 : vector<128x32xf32>
    %245 = vector.broadcast %123 : vector<128x1xf32> to vector<128x32xf32>
    %246 = arith.mulf %244, %245 : vector<128x32xf32>
    %247 = arith.addf %199, %246 : vector<128x32xf32>
    %248 = vector.shape_cast %247 : vector<128x32xf32> to vector<1x16x256xf32>
    %249 = arith.truncf %248 : vector<1x16x256xf32> to vector<1x16x256xbf16>
    %c0_111 = arith.constant 0 : index
    %c0_112 = arith.constant 0 : index
    %c0_113 = arith.constant 0 : index
    %250 = vector.load %arg22[%c0_111, %c0_112, %c0_113] : memref<1x16x256xbf16, #tpu.memory_space<vmem>>, vector<1x16x256xbf16>
    tpu.vector_store %arg22[%c0_111, %c0_112, %c0_113], %249 {strides = array<i32>} : memref<1x16x256xbf16, #tpu.memory_space<vmem>>, vector<1x16x256xbf16>,
    %c1_i32 = arith.constant 1 : i32
    %251 = arith.cmpi eq, %arg1, %c1_i32 : i32
    %252 = arith.extui %251 : i1 to i32
    %c0_i32_114 = arith.constant 0 : i32
    %253 = arith.cmpi ne, %252, %c0_i32_114 : i32
    scf.if %253 {
      %c0_115 = arith.constant 0 : index
      %c0_116 = arith.constant 0 : index
      %c0_117 = arith.constant 0 : index
      %254 = vector.load %arg23[%c0_115, %c0_116, %c0_117] : memref<1x16x32xf32, #tpu.memory_space<vmem>>, vector<1x16x32xf32>
      %255 = vector.shape_cast %254 : vector<1x16x32xf32> to vector<16x32xf32>
      %c0_118 = arith.constant 0 : index
      %c0_119 = arith.constant 0 : index
      %c0_120 = arith.constant 0 : index
      %256 = vector.load %arg13[%c0_118, %c0_119, %c0_120] : memref<2x32x32xbf16, #tpu.memory_space<vmem>>, vector<1x32x32xbf16>
      %257 = vector.shape_cast %256 : vector<1x32x32xbf16> to vector<32x32xbf16>
      %c0_121 = arith.constant 0 : index
      %c0_122 = arith.constant 0 : index
      %c0_123 = arith.constant 0 : index
      %258 = vector.load %arg14[%c0_121, %c0_122, %c0_123] : memref<2x1x32xf32, #tpu.memory_space<vmem>>, vector<1x1x32xf32>
      %259 = vector.shape_cast %258 : vector<1x1x32xf32> to vector<1x32xf32>
      %260 = arith.truncf %255 : vector<16x32xf32> to vector<16x32xbf16>
      %cst_124 = arith.constant dense<0.000000e+00> : vector<16x32xf32>
      %261 = tpu.matmul %260, %257, %cst_124 {dimension_numbers = #tpu.dot_dimension_numbers<[1], [0], [0], [1], [0, 0, 1, 1], [], []>} : vector<16x32xbf16>, vector<32x32xbf16>, vector<16x32xf32> -> vector<16x32xf32>
      %262 = vector.broadcast %259 : vector<1x32xf32> to vector<16x32xf32>
      %263 = arith.addf %261, %262 : vector<16x32xf32>
      %264 = vector.broadcast %1 : vector<16x1xf32> to vector<16x32xf32>
      %265 = arith.mulf %263, %264 : vector<16x32xf32>
      %266 = arith.addf %27, %265 : vector<16x32xf32>
      %c2 = arith.constant 2 : index
      %c0_125 = arith.constant 0 : index
      %c0_126 = arith.constant 0 : index
      %267 = vector.load %arg7[%c2, %c0_125, %c0_126] : memref<4x1x32xf32, #tpu.memory_space<vmem>>, vector<1x1x32xf32>
      %268 = vector.shape_cast %267 : vector<1x1x32xf32> to vector<1x32xf32>
      %c2_127 = arith.constant 2 : index
      %c0_128 = arith.constant 0 : index
      %c0_129 = arith.constant 0 : index
      %269 = vector.load %arg8[%c2_127, %c0_128, %c0_129] : memref<4x1x32xf32, #tpu.memory_space<vmem>>, vector<1x1x32xf32>
      %270 = vector.shape_cast %269 : vector<1x1x32xf32> to vector<1x32xf32>
      %cst_130 = arith.constant dense<0.000000e+00> : vector<16xf32>
      %271 = vector.multi_reduction <add>, %266, %cst_130 [1] : vector<16x32xf32> to vector<16xf32>
      %272 = vector.shape_cast %271 : vector<16xf32> to vector<16x1xf32>
      %cst_131 = arith.constant 3.200000e+01 : f32
      %273 = vector.broadcast %cst_131 : f32 to vector<16x1xf32>
      %274 = arith.divf %272, %273 : vector<16x1xf32>
      %275 = vector.broadcast %274 : vector<16x1xf32> to vector<16x32xf32>
      %276 = arith.subf %266, %275 : vector<16x32xf32>
      %277 = arith.mulf %276, %276 : vector<16x32xf32>
      %cst_132 = arith.constant dense<0.000000e+00> : vector<16xf32>
      %278 = vector.multi_reduction <add>, %277, %cst_132 [1] : vector<16x32xf32> to vector<16xf32>
      %279 = vector.shape_cast %278 : vector<16xf32> to vector<16x1xf32>
      %cst_133 = arith.constant 3.200000e+01 : f32
      %280 = vector.broadcast %cst_133 : f32 to vector<16x1xf32>
      %281 = arith.divf %279, %280 : vector<16x1xf32>
      %cst_134 = arith.constant 9.99999974E-6 : f32
      %282 = vector.broadcast %cst_134 : f32 to vector<16x1xf32>
      %283 = arith.addf %281, %282 : vector<16x1xf32>
      %284 = math.rsqrt %283 : vector<16x1xf32>
      %285 = vector.broadcast %284 : vector<16x1xf32> to vector<16x32xf32>
      %286 = arith.mulf %276, %285 : vector<16x32xf32>
      %287 = vector.broadcast %268 : vector<1x32xf32> to vector<16x32xf32>
      %288 = arith.mulf %286, %287 : vector<16x32xf32>
      %289 = vector.broadcast %270 : vector<1x32xf32> to vector<16x32xf32>
      %290 = arith.addf %288, %289 : vector<16x32xf32>
      %c0_135 = arith.constant 0 : index
      %c0_136 = arith.constant 0 : index
      %c0_137 = arith.constant 0 : index
      %291 = vector.load %arg15[%c0_135, %c0_136, %c0_137] : memref<2x32x128xbf16, #tpu.memory_space<vmem>>, vector<1x32x128xbf16>
      %292 = vector.shape_cast %291 : vector<1x32x128xbf16> to vector<32x128xbf16>
      %c0_138 = arith.constant 0 : index
      %c0_139 = arith.constant 0 : index
      %c0_140 = arith.constant 0 : index
      %293 = vector.load %arg16[%c0_138, %c0_139, %c0_140] : memref<2x1x128xf32, #tpu.memory_space<vmem>>, vector<1x1x128xf32>
      %294 = vector.shape_cast %293 : vector<1x1x128xf32> to vector<1x128xf32>
      %295 = arith.truncf %290 : vector<16x32xf32> to vector<16x32xbf16>
      %cst_141 = arith.constant dense<0.000000e+00> : vector<16x128xf32>
      %296 = tpu.matmul %295, %292, %cst_141 {dimension_numbers = #tpu.dot_dimension_numbers<[1], [0], [0], [1], [0, 0, 1, 1], [], []>} : vector<16x32xbf16>, vector<32x128xbf16>, vector<16x128xf32> -> vector<16x128xf32>
      %297 = vector.broadcast %294 : vector<1x128xf32> to vector<16x128xf32>
      %298 = arith.addf %296, %297 : vector<16x128xf32>
      %cst_142 = arith.constant 0.000000e+00 : f32
      %299 = vector.broadcast %cst_142 : f32 to vector<16x128xf32>
      %300 = arith.cmpf ogt, %298, %299 : vector<16x128xf32>
      %cst_143 = arith.constant 0.00999999977 : f32
      %301 = vector.broadcast %cst_143 : f32 to vector<16x128xf32>
      %302 = arith.mulf %301, %298 : vector<16x128xf32>
      %303 = arith.select %300, %298, %302 : vector<16x128xi1>, vector<16x128xf32>
      %c0_144 = arith.constant 0 : index
      %c0_145 = arith.constant 0 : index
      %c0_146 = arith.constant 0 : index
      %304 = vector.load %arg17[%c0_144, %c0_145, %c0_146] : memref<2x128x32xbf16, #tpu.memory_space<vmem>>, vector<1x128x32xbf16>
      %305 = vector.shape_cast %304 : vector<1x128x32xbf16> to vector<128x32xbf16>
      %c0_147 = arith.constant 0 : index
      %c0_148 = arith.constant 0 : index
      %c0_149 = arith.constant 0 : index
      %306 = vector.load %arg18[%c0_147, %c0_148, %c0_149] : memref<2x1x32xf32, #tpu.memory_space<vmem>>, vector<1x1x32xf32>
      %307 = vector.shape_cast %306 : vector<1x1x32xf32> to vector<1x32xf32>
      %308 = arith.truncf %303 : vector<16x128xf32> to vector<16x128xbf16>
      %cst_150 = arith.constant dense<0.000000e+00> : vector<16x32xf32>
      %309 = tpu.matmul %308, %305, %cst_150 {dimension_numbers = #tpu.dot_dimension_numbers<[1], [0], [0], [1], [0, 0, 1, 1], [], []>} : vector<16x128xbf16>, vector<128x32xbf16>, vector<16x32xf32> -> vector<16x32xf32>
      %310 = vector.broadcast %307 : vector<1x32xf32> to vector<16x32xf32>
      %311 = arith.addf %309, %310 : vector<16x32xf32>
      %312 = vector.broadcast %1 : vector<16x1xf32> to vector<16x32xf32>
      %313 = arith.mulf %311, %312 : vector<16x32xf32>
      %314 = arith.addf %266, %313 : vector<16x32xf32>
      %315 = vector.shape_cast %314 : vector<16x32xf32> to vector<1x16x32xf32>
      %c0_151 = arith.constant 0 : index
      %c0_152 = arith.constant 0 : index
      %c0_153 = arith.constant 0 : index
      %316 = vector.load %arg21[%c0_151, %c0_152, %c0_153] : memref<1x16x32xf32, #tpu.memory_space<vmem>>, vector<1x16x32xf32>
      tpu.vector_store %arg21[%c0_151, %c0_152, %c0_153], %315 {strides = array<i32>} : memref<1x16x32xf32, #tpu.memory_space<vmem>>, vector<1x16x32xf32>,
    } else {
    }
    return
  }
  func.func @transform_0(%arg0: i32, %arg1: i32) -> (i32, i32, i32) {
    %c0_i32 = arith.constant 0 : i32
    %c0_i32_0 = arith.constant 0 : i32
    %c0_i32_1 = arith.constant 0 : i32
    return %arg0, %c0_i32, %c0_i32_0 : i32, i32, i32
  }
  func.func @transform_1(%arg0: i32, %arg1: i32) -> (i32, i32, i32) {
    %c0_i32 = arith.constant 0 : i32
    %c0_i32_0 = arith.constant 0 : i32
    return %arg0, %arg1, %c0_i32 : i32, i32, i32
  }
  func.func @transform_2(%arg0: i32, %arg1: i32) -> (i32, i32, i32) {
    %c0_i32 = arith.constant 0 : i32
    %c0_i32_0 = arith.constant 0 : i32
    %c0_i32_1 = arith.constant 0 : i32
    return %arg0, %c0_i32, %c0_i32_0 : i32, i32, i32
  }
  func.func @transform_3(%arg0: i32, %arg1: i32) -> (i32, i32, i32) {
    %c0_i32 = arith.constant 0 : i32
    %c0_i32_0 = arith.constant 0 : i32
    return %arg0, %arg1, %c0_i32 : i32, i32, i32
  }
  func.func @transform_4(%arg0: i32, %arg1: i32) -> (i32, i32, i32) {
    %c0_i32 = arith.constant 0 : i32
    %c0_i32_0 = arith.constant 0 : i32
    return %arg0, %c0_i32, %arg1 : i32, i32, i32
  }
  func.func @transform_5(%arg0: i32, %arg1: i32) -> (i32, i32, i32) {
    %c0_i32 = arith.constant 0 : i32
    %c0_i32_0 = arith.constant 0 : i32
    %c0_i32_1 = arith.constant 0 : i32
    %c0_i32_2 = arith.constant 0 : i32
    return %c0_i32, %c0_i32_0, %c0_i32_1 : i32, i32, i32
  }
  func.func @transform_6(%arg0: i32, %arg1: i32) -> (i32, i32, i32) {
    %c0_i32 = arith.constant 0 : i32
    %c0_i32_0 = arith.constant 0 : i32
    %c0_i32_1 = arith.constant 0 : i32
    %c0_i32_2 = arith.constant 0 : i32
    return %c0_i32, %c0_i32_0, %c0_i32_1 : i32, i32, i32
  }
  func.func @transform_7(%arg0: i32, %arg1: i32) -> (i32, i32) {
    %c0_i32 = arith.constant 0 : i32
    %c0_i32_0 = arith.constant 0 : i32
    %c0_i32_1 = arith.constant 0 : i32
    return %c0_i32, %c0_i32_0 : i32, i32
  }
  func.func @transform_8(%arg0: i32, %arg1: i32) -> (i32, i32) {
    %c0_i32 = arith.constant 0 : i32
    %c0_i32_0 = arith.constant 0 : i32
    %c0_i32_1 = arith.constant 0 : i32
    return %c0_i32, %c0_i32_0 : i32, i32
  }
  func.func @transform_9(%arg0: i32, %arg1: i32) -> (i32, i32) {
    %c0_i32 = arith.constant 0 : i32
    %c0_i32_0 = arith.constant 0 : i32
    %c0_i32_1 = arith.constant 0 : i32
    return %c0_i32, %c0_i32_0 : i32, i32
  }
  func.func @transform_10(%arg0: i32, %arg1: i32) -> (i32, i32) {
    %c0_i32 = arith.constant 0 : i32
    %c0_i32_0 = arith.constant 0 : i32
    %c0_i32_1 = arith.constant 0 : i32
    return %c0_i32, %c0_i32_0 : i32, i32
  }
  func.func @transform_11(%arg0: i32, %arg1: i32) -> (i32, i32, i32) {
    %c0_i32 = arith.constant 0 : i32
    %c0_i32_0 = arith.constant 0 : i32
    %c0_i32_1 = arith.constant 0 : i32
    %c0_i32_2 = arith.constant 0 : i32
    return %c0_i32, %c0_i32_0, %c0_i32_1 : i32, i32, i32
  }
  func.func @transform_12(%arg0: i32, %arg1: i32) -> (i32, i32, i32) {
    %c0_i32 = arith.constant 0 : i32
    %c0_i32_0 = arith.constant 0 : i32
    %c0_i32_1 = arith.constant 0 : i32
    %c0_i32_2 = arith.constant 0 : i32
    return %c0_i32, %c0_i32_0, %c0_i32_1 : i32, i32, i32
  }
  func.func @transform_13(%arg0: i32, %arg1: i32) -> (i32, i32, i32) {
    %c0_i32 = arith.constant 0 : i32
    %c0_i32_0 = arith.constant 0 : i32
    %c0_i32_1 = arith.constant 0 : i32
    %c0_i32_2 = arith.constant 0 : i32
    return %c0_i32, %c0_i32_0, %c0_i32_1 : i32, i32, i32
  }
  func.func @transform_14(%arg0: i32, %arg1: i32) -> (i32, i32, i32) {
    %c0_i32 = arith.constant 0 : i32
    %c0_i32_0 = arith.constant 0 : i32
    %c0_i32_1 = arith.constant 0 : i32
    %c0_i32_2 = arith.constant 0 : i32
    return %c0_i32, %c0_i32_0, %c0_i32_1 : i32, i32, i32
  }
  func.func @transform_15(%arg0: i32, %arg1: i32) -> (i32, i32, i32) {
    %c0_i32 = arith.constant 0 : i32
    %c0_i32_0 = arith.constant 0 : i32
    %c0_i32_1 = arith.constant 0 : i32
    %c0_i32_2 = arith.constant 0 : i32
    return %c0_i32, %c0_i32_0, %c0_i32_1 : i32, i32, i32
  }
  func.func @transform_16(%arg0: i32, %arg1: i32) -> (i32, i32, i32) {
    %c0_i32 = arith.constant 0 : i32
    %c0_i32_0 = arith.constant 0 : i32
    %c0_i32_1 = arith.constant 0 : i32
    %c0_i32_2 = arith.constant 0 : i32
    return %c0_i32, %c0_i32_0, %c0_i32_1 : i32, i32, i32
  }
  func.func @transform_17(%arg0: i32, %arg1: i32) -> (i32, i32) {
    %c0_i32 = arith.constant 0 : i32
    %c0_i32_0 = arith.constant 0 : i32
    %c0_i32_1 = arith.constant 0 : i32
    return %c0_i32, %c0_i32_0 : i32, i32
  }
  func.func @transform_18(%arg0: i32, %arg1: i32) -> (i32, i32) {
    %c0_i32 = arith.constant 0 : i32
    %c0_i32_0 = arith.constant 0 : i32
    %c0_i32_1 = arith.constant 0 : i32
    return %c0_i32, %c0_i32_0 : i32, i32
  }
  func.func @transform_19(%arg0: i32, %arg1: i32) -> (i32, i32, i32) {
    %c0_i32 = arith.constant 0 : i32
    %c0_i32_0 = arith.constant 0 : i32
    %c0_i32_1 = arith.constant 0 : i32
    return %arg0, %c0_i32, %c0_i32_0 : i32, i32, i32
  }
  func.func @transform_20(%arg0: i32, %arg1: i32) -> (i32, i32, i32) {
    %c0_i32 = arith.constant 0 : i32
    %c0_i32_0 = arith.constant 0 : i32
    return %arg0, %c0_i32, %arg1 : i32, i32, i32
  }
}

module attributes {stable_mosaic.version = 11 : i64} {
  func.func @_block_gt_kernel(%arg0: i32, %arg1: i32, %arg2: memref<1x16x32xf32, #tpu.memory_space<vmem>>, %arg3: memref<1x8x32xf32, #tpu.memory_space<vmem>>, %arg4: memref<1x16x1xf32, #tpu.memory_space<vmem>>, %arg5: memref<1x8x1xf32, #tpu.memory_space<vmem>>, %arg6: memref<1x16x8x32xbf16, #tpu.memory_space<vmem>>, %arg7: memref<4x1x32xf32, #tpu.memory_space<vmem>>, %arg8: memref<4x1x32xf32, #tpu.memory_space<vmem>>, %arg9: memref<32x160xbf16, #tpu.memory_space<vmem>>, %arg10: memref<1x160xf32, #tpu.memory_space<vmem>>, %arg11: memref<32x32xbf16, #tpu.memory_space<vmem>>, %arg12: memref<1x32xf32, #tpu.memory_space<vmem>>, %arg13: memref<2x32x32xbf16, #tpu.memory_space<vmem>>, %arg14: memref<2x1x32xf32, #tpu.memory_space<vmem>>, %arg15: memref<2x32x128xbf16, #tpu.memory_space<vmem>>, %arg16: memref<2x1x128xf32, #tpu.memory_space<vmem>>, %arg17: memref<2x128x32xbf16, #tpu.memory_space<vmem>>, %arg18: memref<2x1x32xf32, #tpu.memory_space<vmem>>, %arg19: memref<32x4xbf16, #tpu.memory_space<vmem>>, %arg20: memref<4x32xbf16, #tpu.memory_space<vmem>>, %arg21: memref<1x16x32xf32, #tpu.memory_space<vmem>>, %arg22: memref<1x16x8x32xbf16, #tpu.memory_space<vmem>>, %arg23: memref<1x16x32xf32, #tpu.memory_space<vmem>>) attributes {dimension_semantics = [#tpu.dimension_semantics<parallel>, #tpu.dimension_semantics<arbitrary>], iteration_bounds = array<i64: 2, 2>, scalar_prefetch = 0 : i64, scratch_operands = 1 : i64, tpu.core_type = #tpu.core_type<tc>, window_params = [{transform_indices = @transform_0, window_bounds = array<i64: 1, 16, 32>}, {transform_indices = @transform_1, window_bounds = array<i64: 1, 8, 32>}, {transform_indices = @transform_2, window_bounds = array<i64: 1, 16, 1>}, {transform_indices = @transform_3, window_bounds = array<i64: 1, 8, 1>}, {transform_indices = @transform_4, window_bounds = array<i64: 1, 16, 8, 32>}, {pipeline_mode = #tpu.pipeline_mode<synchronous>, transform_indices = @transform_5, window_bounds = array<i64: 4, 1, 32>}, {pipeline_mode = #tpu.pipeline_mode<synchronous>, transform_indices = @transform_6, window_bounds = array<i64: 4, 1, 32>}, {pipeline_mode = #tpu.pipeline_mode<synchronous>, transform_indices = @transform_7, window_bounds = array<i64: 32, 160>}, {pipeline_mode = #tpu.pipeline_mode<synchronous>, transform_indices = @transform_8, window_bounds = array<i64: 1, 160>}, {pipeline_mode = #tpu.pipeline_mode<synchronous>, transform_indices = @transform_9, window_bounds = array<i64: 32, 32>}, {pipeline_mode = #tpu.pipeline_mode<synchronous>, transform_indices = @transform_10, window_bounds = array<i64: 1, 32>}, {pipeline_mode = #tpu.pipeline_mode<synchronous>, transform_indices = @transform_11, window_bounds = array<i64: 2, 32, 32>}, {pipeline_mode = #tpu.pipeline_mode<synchronous>, transform_indices = @transform_12, window_bounds = array<i64: 2, 1, 32>}, {pipeline_mode = #tpu.pipeline_mode<synchronous>, transform_indices = @transform_13, window_bounds = array<i64: 2, 32, 128>}, {pipeline_mode = #tpu.pipeline_mode<synchronous>, transform_indices = @transform_14, window_bounds = array<i64: 2, 1, 128>}, {pipeline_mode = #tpu.pipeline_mode<synchronous>, transform_indices = @transform_15, window_bounds = array<i64: 2, 128, 32>}, {pipeline_mode = #tpu.pipeline_mode<synchronous>, transform_indices = @transform_16, window_bounds = array<i64: 2, 1, 32>}, {pipeline_mode = #tpu.pipeline_mode<synchronous>, transform_indices = @transform_17, window_bounds = array<i64: 32, 4>}, {pipeline_mode = #tpu.pipeline_mode<synchronous>, transform_indices = @transform_18, window_bounds = array<i64: 4, 32>}, {transform_indices = @transform_19, window_bounds = array<i64: 1, 16, 32>}, {transform_indices = @transform_20, window_bounds = array<i64: 1, 16, 8, 32>}]} {
    %c0 = arith.constant 0 : index
    %c0_0 = arith.constant 0 : index
    %c0_1 = arith.constant 0 : index
    %0 = vector.load %arg4[%c0, %c0_0, %c0_1] : memref<1x16x1xf32, #tpu.memory_space<vmem>>, vector<1x16x1xf32>
    %1 = vector.shape_cast %0 : vector<1x16x1xf32> to vector<16x1xf32>
    %c0_2 = arith.constant 0 : index
    %c0_3 = arith.constant 0 : index
    %c0_4 = arith.constant 0 : index
    %2 = vector.load %arg2[%c0_2, %c0_3, %c0_4] : memref<1x16x32xf32, #tpu.memory_space<vmem>>, vector<1x16x32xf32>
    %3 = vector.shape_cast %2 : vector<1x16x32xf32> to vector<16x32xf32>
    %c0_5 = arith.constant 0 : index
    %c0_6 = arith.constant 0 : index
    %c0_7 = arith.constant 0 : index
    %4 = vector.load %arg7[%c0_5, %c0_6, %c0_7] : memref<4x1x32xf32, #tpu.memory_space<vmem>>, vector<1x1x32xf32>
    %5 = vector.shape_cast %4 : vector<1x1x32xf32> to vector<1x32xf32>
    %c0_8 = arith.constant 0 : index
    %c0_9 = arith.constant 0 : index
    %c0_10 = arith.constant 0 : index
    %6 = vector.load %arg8[%c0_8, %c0_9, %c0_10] : memref<4x1x32xf32, #tpu.memory_space<vmem>>, vector<1x1x32xf32>
    %7 = vector.shape_cast %6 : vector<1x1x32xf32> to vector<1x32xf32>
    %cst = arith.constant dense<0.000000e+00> : vector<16xf32>
    %8 = vector.multi_reduction <add>, %3, %cst [1] : vector<16x32xf32> to vector<16xf32>
    %9 = vector.shape_cast %8 : vector<16xf32> to vector<16x1xf32>
    %cst_11 = arith.constant 3.200000e+01 : f32
    %10 = vector.broadcast %cst_11 : f32 to vector<16x1xf32>
    %11 = arith.divf %9, %10 : vector<16x1xf32>
    %12 = vector.broadcast %11 : vector<16x1xf32> to vector<16x32xf32>
    %13 = arith.subf %3, %12 : vector<16x32xf32>
    %14 = arith.mulf %13, %13 : vector<16x32xf32>
    %cst_12 = arith.constant dense<0.000000e+00> : vector<16xf32>
    %15 = vector.multi_reduction <add>, %14, %cst_12 [1] : vector<16x32xf32> to vector<16xf32>
    %16 = vector.shape_cast %15 : vector<16xf32> to vector<16x1xf32>
    %cst_13 = arith.constant 3.200000e+01 : f32
    %17 = vector.broadcast %cst_13 : f32 to vector<16x1xf32>
    %18 = arith.divf %16, %17 : vector<16x1xf32>
    %cst_14 = arith.constant 9.99999974E-6 : f32
    %19 = vector.broadcast %cst_14 : f32 to vector<16x1xf32>
    %20 = arith.addf %18, %19 : vector<16x1xf32>
    %21 = math.rsqrt %20 : vector<16x1xf32>
    %22 = vector.broadcast %21 : vector<16x1xf32> to vector<16x32xf32>
    %23 = arith.mulf %13, %22 : vector<16x32xf32>
    %24 = vector.broadcast %5 : vector<1x32xf32> to vector<16x32xf32>
    %25 = arith.mulf %23, %24 : vector<16x32xf32>
    %26 = vector.broadcast %7 : vector<1x32xf32> to vector<16x32xf32>
    %27 = arith.addf %25, %26 : vector<16x32xf32>
    %c0_15 = arith.constant 0 : index
    %c0_16 = arith.constant 0 : index
    %28 = vector.load %arg9[%c0_15, %c0_16] : memref<32x160xbf16, #tpu.memory_space<vmem>>, vector<32x160xbf16>
    %c0_17 = arith.constant 0 : index
    %c0_18 = arith.constant 0 : index
    %29 = vector.load %arg10[%c0_17, %c0_18] : memref<1x160xf32, #tpu.memory_space<vmem>>, vector<1x160xf32>
    %30 = arith.truncf %27 : vector<16x32xf32> to vector<16x32xbf16>
    %cst_19 = arith.constant dense<0.000000e+00> : vector<16x160xf32>
    %31 = tpu.matmul %30, %28, %cst_19 {dimension_numbers = #tpu.dot_dimension_numbers<[1], [0], [0], [1], [0, 0, 1, 1], [], []>} : vector<16x32xbf16>, vector<32x160xbf16>, vector<16x160xf32> -> vector<16x160xf32>
    %32 = vector.broadcast %29 : vector<1x160xf32> to vector<16x160xf32>
    %33 = arith.addf %31, %32 : vector<16x160xf32>
    %34 = vector.extract_strided_slice %33 {offsets = [0, 0], sizes = [16, 32], strides = [1, 1]} : vector<16x160xf32> to vector<16x32xf32>
    %35 = vector.broadcast %1 : vector<16x1xf32> to vector<16x32xf32>
    %36 = arith.mulf %34, %35 : vector<16x32xf32>
    %37 = vector.shape_cast %36 : vector<16x32xf32> to vector<1x16x1x32xf32>
    %38 = vector.extract_strided_slice %33 {offsets = [0, 96], sizes = [16, 32], strides = [1, 1]} : vector<16x160xf32> to vector<16x32xf32>
    %39 = vector.shape_cast %38 : vector<16x32xf32> to vector<1x16x1x32xf32>
    %c0_20 = arith.constant 0 : index
    %c0_21 = arith.constant 0 : index
    %c0_22 = arith.constant 0 : index
    %40 = vector.load %arg5[%c0_20, %c0_21, %c0_22] : memref<1x8x1xf32, #tpu.memory_space<vmem>>, vector<1x8x1xf32>
    %41 = vector.shape_cast %40 : vector<1x8x1xf32> to vector<8x1xf32>
    %c0_23 = arith.constant 0 : index
    %c0_24 = arith.constant 0 : index
    %c0_25 = arith.constant 0 : index
    %42 = vector.load %arg3[%c0_23, %c0_24, %c0_25] : memref<1x8x32xf32, #tpu.memory_space<vmem>>, vector<1x8x32xf32>
    %43 = vector.shape_cast %42 : vector<1x8x32xf32> to vector<8x32xf32>
    %c0_26 = arith.constant 0 : index
    %c0_27 = arith.constant 0 : index
    %c0_28 = arith.constant 0 : index
    %44 = vector.load %arg7[%c0_26, %c0_27, %c0_28] : memref<4x1x32xf32, #tpu.memory_space<vmem>>, vector<1x1x32xf32>
    %45 = vector.shape_cast %44 : vector<1x1x32xf32> to vector<1x32xf32>
    %c0_29 = arith.constant 0 : index
    %c0_30 = arith.constant 0 : index
    %c0_31 = arith.constant 0 : index
    %46 = vector.load %arg8[%c0_29, %c0_30, %c0_31] : memref<4x1x32xf32, #tpu.memory_space<vmem>>, vector<1x1x32xf32>
    %47 = vector.shape_cast %46 : vector<1x1x32xf32> to vector<1x32xf32>
    %cst_32 = arith.constant dense<0.000000e+00> : vector<8xf32>
    %48 = vector.multi_reduction <add>, %43, %cst_32 [1] : vector<8x32xf32> to vector<8xf32>
    %49 = vector.shape_cast %48 : vector<8xf32> to vector<8x1xf32>
    %cst_33 = arith.constant 3.200000e+01 : f32
    %50 = vector.broadcast %cst_33 : f32 to vector<8x1xf32>
    %51 = arith.divf %49, %50 : vector<8x1xf32>
    %52 = vector.broadcast %51 : vector<8x1xf32> to vector<8x32xf32>
    %53 = arith.subf %43, %52 : vector<8x32xf32>
    %54 = arith.mulf %53, %53 : vector<8x32xf32>
    %cst_34 = arith.constant dense<0.000000e+00> : vector<8xf32>
    %55 = vector.multi_reduction <add>, %54, %cst_34 [1] : vector<8x32xf32> to vector<8xf32>
    %56 = vector.shape_cast %55 : vector<8xf32> to vector<8x1xf32>
    %cst_35 = arith.constant 3.200000e+01 : f32
    %57 = vector.broadcast %cst_35 : f32 to vector<8x1xf32>
    %58 = arith.divf %56, %57 : vector<8x1xf32>
    %cst_36 = arith.constant 9.99999974E-6 : f32
    %59 = vector.broadcast %cst_36 : f32 to vector<8x1xf32>
    %60 = arith.addf %58, %59 : vector<8x1xf32>
    %61 = math.rsqrt %60 : vector<8x1xf32>
    %62 = vector.broadcast %61 : vector<8x1xf32> to vector<8x32xf32>
    %63 = arith.mulf %53, %62 : vector<8x32xf32>
    %64 = vector.broadcast %45 : vector<1x32xf32> to vector<8x32xf32>
    %65 = arith.mulf %63, %64 : vector<8x32xf32>
    %66 = vector.broadcast %47 : vector<1x32xf32> to vector<8x32xf32>
    %67 = arith.addf %65, %66 : vector<8x32xf32>
    %c0_37 = arith.constant 0 : index
    %c0_38 = arith.constant 0 : index
    %68 = vector.load %arg9[%c0_37, %c0_38] : memref<32x160xbf16, #tpu.memory_space<vmem>>, vector<32x160xbf16>
    %c0_39 = arith.constant 0 : index
    %c0_40 = arith.constant 0 : index
    %69 = vector.load %arg10[%c0_39, %c0_40] : memref<1x160xf32, #tpu.memory_space<vmem>>, vector<1x160xf32>
    %70 = arith.truncf %67 : vector<8x32xf32> to vector<8x32xbf16>
    %cst_41 = arith.constant dense<0.000000e+00> : vector<8x160xf32>
    %71 = tpu.matmul %70, %68, %cst_41 {dimension_numbers = #tpu.dot_dimension_numbers<[1], [0], [0], [1], [0, 0, 1, 1], [], []>} : vector<8x32xbf16>, vector<32x160xbf16>, vector<8x160xf32> -> vector<8x160xf32>
    %72 = vector.broadcast %69 : vector<1x160xf32> to vector<8x160xf32>
    %73 = arith.addf %71, %72 : vector<8x160xf32>
    %74 = vector.extract_strided_slice %73 {offsets = [0, 32], sizes = [8, 32], strides = [1, 1]} : vector<8x160xf32> to vector<8x32xf32>
    %75 = vector.broadcast %41 : vector<8x1xf32> to vector<8x32xf32>
    %76 = arith.mulf %74, %75 : vector<8x32xf32>
    %77 = vector.shape_cast %76 : vector<8x32xf32> to vector<1x1x8x32xf32>
    %78 = vector.extract_strided_slice %73 {offsets = [0, 64], sizes = [8, 32], strides = [1, 1]} : vector<8x160xf32> to vector<8x32xf32>
    %79 = vector.broadcast %41 : vector<8x1xf32> to vector<8x32xf32>
    %80 = arith.mulf %78, %79 : vector<8x32xf32>
    %81 = vector.shape_cast %80 : vector<8x32xf32> to vector<1x8x32xf32>
    %82 = vector.extract_strided_slice %73 {offsets = [0, 128], sizes = [8, 32], strides = [1, 1]} : vector<8x160xf32> to vector<8x32xf32>
    %83 = vector.shape_cast %82 : vector<8x32xf32> to vector<1x1x8x32xf32>
    %c0_42 = arith.constant 0 : index
    %c0_43 = arith.constant 0 : index
    %c0_44 = arith.constant 0 : index
    %c0_45 = arith.constant 0 : index
    %84 = vector.load %arg6[%c0_42, %c0_43, %c0_44, %c0_45] : memref<1x16x8x32xbf16, #tpu.memory_space<vmem>>, vector<1x16x8x32xbf16>
    %85 = arith.extf %84 : vector<1x16x8x32xbf16> to vector<1x16x8x32xf32>
    %86 = vector.shape_cast %85 : vector<1x16x8x32xf32> to vector<128x32xf32>
    %c1 = arith.constant 1 : index
    %c0_46 = arith.constant 0 : index
    %c0_47 = arith.constant 0 : index
    %87 = vector.load %arg7[%c1, %c0_46, %c0_47] : memref<4x1x32xf32, #tpu.memory_space<vmem>>, vector<1x1x32xf32>
    %88 = vector.shape_cast %87 : vector<1x1x32xf32> to vector<1x32xf32>
    %c1_48 = arith.constant 1 : index
    %c0_49 = arith.constant 0 : index
    %c0_50 = arith.constant 0 : index
    %89 = vector.load %arg8[%c1_48, %c0_49, %c0_50] : memref<4x1x32xf32, #tpu.memory_space<vmem>>, vector<1x1x32xf32>
    %90 = vector.shape_cast %89 : vector<1x1x32xf32> to vector<1x32xf32>
    %cst_51 = arith.constant dense<0.000000e+00> : vector<128xf32>
    %91 = vector.multi_reduction <add>, %86, %cst_51 [1] : vector<128x32xf32> to vector<128xf32>
    %92 = vector.shape_cast %91 : vector<128xf32> to vector<128x1xf32>
    %cst_52 = arith.constant 3.200000e+01 : f32
    %93 = vector.broadcast %cst_52 : f32 to vector<128x1xf32>
    %94 = arith.divf %92, %93 : vector<128x1xf32>
    %95 = vector.broadcast %94 : vector<128x1xf32> to vector<128x32xf32>
    %96 = arith.subf %86, %95 : vector<128x32xf32>
    %97 = arith.mulf %96, %96 : vector<128x32xf32>
    %cst_53 = arith.constant dense<0.000000e+00> : vector<128xf32>
    %98 = vector.multi_reduction <add>, %97, %cst_53 [1] : vector<128x32xf32> to vector<128xf32>
    %99 = vector.shape_cast %98 : vector<128xf32> to vector<128x1xf32>
    %cst_54 = arith.constant 3.200000e+01 : f32
    %100 = vector.broadcast %cst_54 : f32 to vector<128x1xf32>
    %101 = arith.divf %99, %100 : vector<128x1xf32>
    %cst_55 = arith.constant 9.99999974E-6 : f32
    %102 = vector.broadcast %cst_55 : f32 to vector<128x1xf32>
    %103 = arith.addf %101, %102 : vector<128x1xf32>
    %104 = math.rsqrt %103 : vector<128x1xf32>
    %105 = vector.broadcast %104 : vector<128x1xf32> to vector<128x32xf32>
    %106 = arith.mulf %96, %105 : vector<128x32xf32>
    %107 = vector.broadcast %88 : vector<1x32xf32> to vector<128x32xf32>
    %108 = arith.mulf %106, %107 : vector<128x32xf32>
    %109 = vector.broadcast %90 : vector<1x32xf32> to vector<128x32xf32>
    %110 = arith.addf %108, %109 : vector<128x32xf32>
    %c0_56 = arith.constant 0 : index
    %c0_57 = arith.constant 0 : index
    %111 = vector.load %arg11[%c0_56, %c0_57] : memref<32x32xbf16, #tpu.memory_space<vmem>>, vector<32x32xbf16>
    %c0_58 = arith.constant 0 : index
    %c0_59 = arith.constant 0 : index
    %112 = vector.load %arg12[%c0_58, %c0_59] : memref<1x32xf32, #tpu.memory_space<vmem>>, vector<1x32xf32>
    %113 = arith.truncf %110 : vector<128x32xf32> to vector<128x32xbf16>
    %cst_60 = arith.constant dense<0.000000e+00> : vector<128x32xf32>
    %114 = tpu.matmul %113, %111, %cst_60 {dimension_numbers = #tpu.dot_dimension_numbers<[1], [0], [0], [1], [0, 0, 1, 1], [], []>} : vector<128x32xbf16>, vector<32x32xbf16>, vector<128x32xf32> -> vector<128x32xf32>
    %115 = vector.broadcast %112 : vector<1x32xf32> to vector<128x32xf32>
    %116 = arith.addf %114, %115 : vector<128x32xf32>
    %117 = vector.shape_cast %116 : vector<128x32xf32> to vector<1x16x8x32xf32>
    %118 = vector.shape_cast %0 : vector<1x16x1xf32> to vector<1x16x1x1xf32>
    %119 = vector.shape_cast %40 : vector<1x8x1xf32> to vector<1x1x8x1xf32>
    %120 = vector.broadcast %118 : vector<1x16x1x1xf32> to vector<1x16x8x1xf32>
    %121 = vector.broadcast %119 : vector<1x1x8x1xf32> to vector<1x16x8x1xf32>
    %122 = arith.mulf %120, %121 : vector<1x16x8x1xf32>
    %123 = vector.shape_cast %122 : vector<1x16x8x1xf32> to vector<128x1xf32>
    %124 = vector.broadcast %39 : vector<1x16x1x32xf32> to vector<1x16x8x32xf32>
    %125 = vector.broadcast %83 : vector<1x1x8x32xf32> to vector<1x16x8x32xf32>
    %126 = arith.addf %124, %125 : vector<1x16x8x32xf32>
    %127 = arith.addf %126, %117 : vector<1x16x8x32xf32>
    %128 = vector.broadcast %122 : vector<1x16x8x1xf32> to vector<1x16x8x32xf32>
    %129 = arith.mulf %127, %128 : vector<1x16x8x32xf32>
    %130 = vector.shape_cast %129 : vector<1x16x8x32xf32> to vector<128x32xf32>
    %131 = vector.broadcast %37 : vector<1x16x1x32xf32> to vector<1x16x8x32xf32>
    %132 = arith.mulf %131, %129 : vector<1x16x8x32xf32>
    %133 = vector.broadcast %77 : vector<1x1x8x32xf32> to vector<1x16x8x32xf32>
    %134 = arith.mulf %132, %133 : vector<1x16x8x32xf32>
    %135 = vector.shape_cast %134 : vector<1x16x8x32xf32> to vector<128x32xf32>
    %136 = arith.truncf %135 : vector<128x32xf32> to vector<128x32xbf16>
    %c0_61 = arith.constant 0 : index
    %c0_62 = arith.constant 0 : index
    %137 = vector.load %arg19[%c0_61, %c0_62] : memref<32x4xbf16, #tpu.memory_space<vmem>>, vector<32x4xbf16>
    %cst_63 = arith.constant dense<0.000000e+00> : vector<128x4xf32>
    %138 = tpu.matmul %136, %137, %cst_63 {dimension_numbers = #tpu.dot_dimension_numbers<[1], [0], [0], [1], [0, 0, 1, 1], [], []>} : vector<128x32xbf16>, vector<32x4xbf16>, vector<128x4xf32> -> vector<128x4xf32>
    %139 = vector.shape_cast %138 : vector<128x4xf32> to vector<1x16x8x4xf32>
    %cst_64 = arith.constant 0.000000e+00 : f32
    %140 = vector.broadcast %cst_64 : f32 to vector<1x16x8x1xf32>
    %141 = arith.cmpf ogt, %122, %140 : vector<1x16x8x1xf32>
    %cst_65 = arith.constant -1.000000e+09 : f32
    %142 = vector.shape_cast %141 : vector<1x16x8x1xi1> to vector<1x16x8x1xi1>
    %143 = vector.broadcast %142 : vector<1x16x8x1xi1> to vector<1x16x8x4xi1>
    %144 = vector.broadcast %cst_65 : f32 to vector<1x16x8x4xf32>
    %145 = arith.select %143, %139, %144 : vector<1x16x8x4xi1>, vector<1x16x8x4xf32>
    %cst_66 = arith.constant dense<0xFF800000> : vector<1x8x4xf32>
    %146 = vector.multi_reduction <maximumf>, %145, %cst_66 [1] : vector<1x16x8x4xf32> to vector<1x8x4xf32>
    %147 = vector.shape_cast %146 : vector<1x8x4xf32> to vector<1x1x8x4xf32>
    %148 = vector.broadcast %147 : vector<1x1x8x4xf32> to vector<1x16x8x4xf32>
    %149 = arith.subf %145, %148 : vector<1x16x8x4xf32>
    %150 = math.exp %149 : vector<1x16x8x4xf32>
    %cst_67 = arith.constant dense<0.000000e+00> : vector<1x8x4xf32>
    %151 = vector.multi_reduction <add>, %150, %cst_67 [1] : vector<1x16x8x4xf32> to vector<1x8x4xf32>
    %152 = vector.shape_cast %151 : vector<1x8x4xf32> to vector<1x1x8x4xf32>
    %153 = tpu.reciprocal %152 {approx = true} : vector<1x1x8x4xf32> -> vector<1x1x8x4xf32>
    %154 = vector.broadcast %153 : vector<1x1x8x4xf32> to vector<1x16x8x4xf32>
    %155 = arith.mulf %150, %154 : vector<1x16x8x4xf32>
    %156 = vector.shape_cast %155 : vector<1x16x8x4xf32> to vector<128x4xf32>
    %157 = arith.truncf %156 : vector<128x4xf32> to vector<128x4xbf16>
    %c0_68 = arith.constant 0 : index
    %c0_69 = arith.constant 0 : index
    %158 = vector.load %arg20[%c0_68, %c0_69] : memref<4x32xbf16, #tpu.memory_space<vmem>>, vector<4x32xbf16>
    %cst_70 = arith.constant dense<0.000000e+00> : vector<128x32xf32>
    %159 = tpu.matmul %157, %158, %cst_70 {dimension_numbers = #tpu.dot_dimension_numbers<[1], [0], [0], [1], [0, 0, 1, 1], [], []>} : vector<128x4xbf16>, vector<4x32xbf16>, vector<128x32xf32> -> vector<128x32xf32>
    %160 = vector.shape_cast %159 : vector<128x32xf32> to vector<1x16x8x32xf32>
    %161 = vector.shape_cast %81 : vector<1x8x32xf32> to vector<1x1x8x32xf32>
    %162 = vector.broadcast %161 : vector<1x1x8x32xf32> to vector<1x16x8x32xf32>
    %163 = arith.mulf %160, %162 : vector<1x16x8x32xf32>
    %cst_71 = arith.constant dense<0.000000e+00> : vector<1x16x32xf32>
    %164 = vector.multi_reduction <add>, %163, %cst_71 [2] : vector<1x16x8x32xf32> to vector<1x16x32xf32>
    %c0_i32 = arith.constant 0 : i32
    %165 = arith.cmpi eq, %arg1, %c0_i32 : i32
    %166 = arith.extui %165 : i1 to i32
    %c0_i32_72 = arith.constant 0 : i32
    %167 = arith.cmpi ne, %166, %c0_i32_72 : i32
    scf.if %167 {
      %cst_117 = arith.constant 0.000000e+00 : f32
      %236 = vector.broadcast %cst_117 : f32 to vector<1x16x32xf32>
      %c0_118 = arith.constant 0 : index
      %c0_119 = arith.constant 0 : index
      %c0_120 = arith.constant 0 : index
      %237 = vector.load %arg23[%c0_118, %c0_119, %c0_120] : memref<1x16x32xf32, #tpu.memory_space<vmem>>, vector<1x16x32xf32>
      tpu.vector_store %arg23[%c0_118, %c0_119, %c0_120], %236 {strides = array<i32>} : memref<1x16x32xf32, #tpu.memory_space<vmem>>, vector<1x16x32xf32>,
    } else {
    }
    %c0_73 = arith.constant 0 : index
    %c0_74 = arith.constant 0 : index
    %c0_75 = arith.constant 0 : index
    %168 = vector.load %arg23[%c0_73, %c0_74, %c0_75] : memref<1x16x32xf32, #tpu.memory_space<vmem>>, vector<1x16x32xf32>
    %169 = arith.addf %168, %164 : vector<1x16x32xf32>
    %c0_76 = arith.constant 0 : index
    %c0_77 = arith.constant 0 : index
    %c0_78 = arith.constant 0 : index
    %170 = vector.load %arg23[%c0_76, %c0_77, %c0_78] : memref<1x16x32xf32, #tpu.memory_space<vmem>>, vector<1x16x32xf32>
    tpu.vector_store %arg23[%c0_76, %c0_77, %c0_78], %169 {strides = array<i32>} : memref<1x16x32xf32, #tpu.memory_space<vmem>>, vector<1x16x32xf32>,
    %c1_79 = arith.constant 1 : index
    %c0_80 = arith.constant 0 : index
    %c0_81 = arith.constant 0 : index
    %171 = vector.load %arg13[%c1_79, %c0_80, %c0_81] : memref<2x32x32xbf16, #tpu.memory_space<vmem>>, vector<1x32x32xbf16>
    %172 = vector.shape_cast %171 : vector<1x32x32xbf16> to vector<32x32xbf16>
    %c1_82 = arith.constant 1 : index
    %c0_83 = arith.constant 0 : index
    %c0_84 = arith.constant 0 : index
    %173 = vector.load %arg14[%c1_82, %c0_83, %c0_84] : memref<2x1x32xf32, #tpu.memory_space<vmem>>, vector<1x1x32xf32>
    %174 = vector.shape_cast %173 : vector<1x1x32xf32> to vector<1x32xf32>
    %175 = arith.truncf %130 : vector<128x32xf32> to vector<128x32xbf16>
    %cst_85 = arith.constant dense<0.000000e+00> : vector<128x32xf32>
    %176 = tpu.matmul %175, %172, %cst_85 {dimension_numbers = #tpu.dot_dimension_numbers<[1], [0], [0], [1], [0, 0, 1, 1], [], []>} : vector<128x32xbf16>, vector<32x32xbf16>, vector<128x32xf32> -> vector<128x32xf32>
    %177 = vector.broadcast %174 : vector<1x32xf32> to vector<128x32xf32>
    %178 = arith.addf %176, %177 : vector<128x32xf32>
    %179 = vector.broadcast %123 : vector<128x1xf32> to vector<128x32xf32>
    %180 = arith.mulf %178, %179 : vector<128x32xf32>
    %181 = arith.addf %110, %180 : vector<128x32xf32>
    %c3 = arith.constant 3 : index
    %c0_86 = arith.constant 0 : index
    %c0_87 = arith.constant 0 : index
    %182 = vector.load %arg7[%c3, %c0_86, %c0_87] : memref<4x1x32xf32, #tpu.memory_space<vmem>>, vector<1x1x32xf32>
    %183 = vector.shape_cast %182 : vector<1x1x32xf32> to vector<1x32xf32>
    %c3_88 = arith.constant 3 : index
    %c0_89 = arith.constant 0 : index
    %c0_90 = arith.constant 0 : index
    %184 = vector.load %arg8[%c3_88, %c0_89, %c0_90] : memref<4x1x32xf32, #tpu.memory_space<vmem>>, vector<1x1x32xf32>
    %185 = vector.shape_cast %184 : vector<1x1x32xf32> to vector<1x32xf32>
    %cst_91 = arith.constant dense<0.000000e+00> : vector<128xf32>
    %186 = vector.multi_reduction <add>, %181, %cst_91 [1] : vector<128x32xf32> to vector<128xf32>
    %187 = vector.shape_cast %186 : vector<128xf32> to vector<128x1xf32>
    %cst_92 = arith.constant 3.200000e+01 : f32
    %188 = vector.broadcast %cst_92 : f32 to vector<128x1xf32>
    %189 = arith.divf %187, %188 : vector<128x1xf32>
    %190 = vector.broadcast %189 : vector<128x1xf32> to vector<128x32xf32>
    %191 = arith.subf %181, %190 : vector<128x32xf32>
    %192 = arith.mulf %191, %191 : vector<128x32xf32>
    %cst_93 = arith.constant dense<0.000000e+00> : vector<128xf32>
    %193 = vector.multi_reduction <add>, %192, %cst_93 [1] : vector<128x32xf32> to vector<128xf32>
    %194 = vector.shape_cast %193 : vector<128xf32> to vector<128x1xf32>
    %cst_94 = arith.constant 3.200000e+01 : f32
    %195 = vector.broadcast %cst_94 : f32 to vector<128x1xf32>
    %196 = arith.divf %194, %195 : vector<128x1xf32>
    %cst_95 = arith.constant 9.99999974E-6 : f32
    %197 = vector.broadcast %cst_95 : f32 to vector<128x1xf32>
    %198 = arith.addf %196, %197 : vector<128x1xf32>
    %199 = math.rsqrt %198 : vector<128x1xf32>
    %200 = vector.broadcast %199 : vector<128x1xf32> to vector<128x32xf32>
    %201 = arith.mulf %191, %200 : vector<128x32xf32>
    %202 = vector.broadcast %183 : vector<1x32xf32> to vector<128x32xf32>
    %203 = arith.mulf %201, %202 : vector<128x32xf32>
    %204 = vector.broadcast %185 : vector<1x32xf32> to vector<128x32xf32>
    %205 = arith.addf %203, %204 : vector<128x32xf32>
    %c1_96 = arith.constant 1 : index
    %c0_97 = arith.constant 0 : index
    %c0_98 = arith.constant 0 : index
    %206 = vector.load %arg15[%c1_96, %c0_97, %c0_98] : memref<2x32x128xbf16, #tpu.memory_space<vmem>>, vector<1x32x128xbf16>
    %207 = vector.shape_cast %206 : vector<1x32x128xbf16> to vector<32x128xbf16>
    %c1_99 = arith.constant 1 : index
    %c0_100 = arith.constant 0 : index
    %c0_101 = arith.constant 0 : index
    %208 = vector.load %arg16[%c1_99, %c0_100, %c0_101] : memref<2x1x128xf32, #tpu.memory_space<vmem>>, vector<1x1x128xf32>
    %209 = vector.shape_cast %208 : vector<1x1x128xf32> to vector<1x128xf32>
    %210 = arith.truncf %205 : vector<128x32xf32> to vector<128x32xbf16>
    %cst_102 = arith.constant dense<0.000000e+00> : vector<128x128xf32>
    %211 = tpu.matmul %210, %207, %cst_102 {dimension_numbers = #tpu.dot_dimension_numbers<[1], [0], [0], [1], [0, 0, 1, 1], [], []>} : vector<128x32xbf16>, vector<32x128xbf16>, vector<128x128xf32> -> vector<128x128xf32>
    %212 = vector.broadcast %209 : vector<1x128xf32> to vector<128x128xf32>
    %213 = arith.addf %211, %212 : vector<128x128xf32>
    %cst_103 = arith.constant 0.000000e+00 : f32
    %214 = vector.broadcast %cst_103 : f32 to vector<128x128xf32>
    %215 = arith.cmpf ogt, %213, %214 : vector<128x128xf32>
    %cst_104 = arith.constant 0.00999999977 : f32
    %216 = vector.broadcast %cst_104 : f32 to vector<128x128xf32>
    %217 = arith.mulf %216, %213 : vector<128x128xf32>
    %218 = arith.select %215, %213, %217 : vector<128x128xi1>, vector<128x128xf32>
    %c1_105 = arith.constant 1 : index
    %c0_106 = arith.constant 0 : index
    %c0_107 = arith.constant 0 : index
    %219 = vector.load %arg17[%c1_105, %c0_106, %c0_107] : memref<2x128x32xbf16, #tpu.memory_space<vmem>>, vector<1x128x32xbf16>
    %220 = vector.shape_cast %219 : vector<1x128x32xbf16> to vector<128x32xbf16>
    %c1_108 = arith.constant 1 : index
    %c0_109 = arith.constant 0 : index
    %c0_110 = arith.constant 0 : index
    %221 = vector.load %arg18[%c1_108, %c0_109, %c0_110] : memref<2x1x32xf32, #tpu.memory_space<vmem>>, vector<1x1x32xf32>
    %222 = vector.shape_cast %221 : vector<1x1x32xf32> to vector<1x32xf32>
    %223 = arith.truncf %218 : vector<128x128xf32> to vector<128x128xbf16>
    %cst_111 = arith.constant dense<0.000000e+00> : vector<128x32xf32>
    %224 = tpu.matmul %223, %220, %cst_111 {dimension_numbers = #tpu.dot_dimension_numbers<[1], [0], [0], [1], [0, 0, 1, 1], [], []>} : vector<128x128xbf16>, vector<128x32xbf16>, vector<128x32xf32> -> vector<128x32xf32>
    %225 = vector.broadcast %222 : vector<1x32xf32> to vector<128x32xf32>
    %226 = arith.addf %224, %225 : vector<128x32xf32>
    %227 = vector.broadcast %123 : vector<128x1xf32> to vector<128x32xf32>
    %228 = arith.mulf %226, %227 : vector<128x32xf32>
    %229 = arith.addf %181, %228 : vector<128x32xf32>
    %230 = vector.shape_cast %229 : vector<128x32xf32> to vector<1x16x8x32xf32>
    %231 = arith.truncf %230 : vector<1x16x8x32xf32> to vector<1x16x8x32xbf16>
    %c0_112 = arith.constant 0 : index
    %c0_113 = arith.constant 0 : index
    %c0_114 = arith.constant 0 : index
    %c0_115 = arith.constant 0 : index
    %232 = vector.load %arg22[%c0_112, %c0_113, %c0_114, %c0_115] : memref<1x16x8x32xbf16, #tpu.memory_space<vmem>>, vector<1x16x8x32xbf16>
    tpu.vector_store %arg22[%c0_112, %c0_113, %c0_114, %c0_115], %231 {strides = array<i32>} : memref<1x16x8x32xbf16, #tpu.memory_space<vmem>>, vector<1x16x8x32xbf16>,
    %c1_i32 = arith.constant 1 : i32
    %233 = arith.cmpi eq, %arg1, %c1_i32 : i32
    %234 = arith.extui %233 : i1 to i32
    %c0_i32_116 = arith.constant 0 : i32
    %235 = arith.cmpi ne, %234, %c0_i32_116 : i32
    scf.if %235 {
      %c0_117 = arith.constant 0 : index
      %c0_118 = arith.constant 0 : index
      %c0_119 = arith.constant 0 : index
      %236 = vector.load %arg23[%c0_117, %c0_118, %c0_119] : memref<1x16x32xf32, #tpu.memory_space<vmem>>, vector<1x16x32xf32>
      %237 = vector.shape_cast %236 : vector<1x16x32xf32> to vector<16x32xf32>
      %c0_120 = arith.constant 0 : index
      %c0_121 = arith.constant 0 : index
      %c0_122 = arith.constant 0 : index
      %238 = vector.load %arg13[%c0_120, %c0_121, %c0_122] : memref<2x32x32xbf16, #tpu.memory_space<vmem>>, vector<1x32x32xbf16>
      %239 = vector.shape_cast %238 : vector<1x32x32xbf16> to vector<32x32xbf16>
      %c0_123 = arith.constant 0 : index
      %c0_124 = arith.constant 0 : index
      %c0_125 = arith.constant 0 : index
      %240 = vector.load %arg14[%c0_123, %c0_124, %c0_125] : memref<2x1x32xf32, #tpu.memory_space<vmem>>, vector<1x1x32xf32>
      %241 = vector.shape_cast %240 : vector<1x1x32xf32> to vector<1x32xf32>
      %242 = arith.truncf %237 : vector<16x32xf32> to vector<16x32xbf16>
      %cst_126 = arith.constant dense<0.000000e+00> : vector<16x32xf32>
      %243 = tpu.matmul %242, %239, %cst_126 {dimension_numbers = #tpu.dot_dimension_numbers<[1], [0], [0], [1], [0, 0, 1, 1], [], []>} : vector<16x32xbf16>, vector<32x32xbf16>, vector<16x32xf32> -> vector<16x32xf32>
      %244 = vector.broadcast %241 : vector<1x32xf32> to vector<16x32xf32>
      %245 = arith.addf %243, %244 : vector<16x32xf32>
      %246 = vector.broadcast %1 : vector<16x1xf32> to vector<16x32xf32>
      %247 = arith.mulf %245, %246 : vector<16x32xf32>
      %248 = arith.addf %27, %247 : vector<16x32xf32>
      %c2 = arith.constant 2 : index
      %c0_127 = arith.constant 0 : index
      %c0_128 = arith.constant 0 : index
      %249 = vector.load %arg7[%c2, %c0_127, %c0_128] : memref<4x1x32xf32, #tpu.memory_space<vmem>>, vector<1x1x32xf32>
      %250 = vector.shape_cast %249 : vector<1x1x32xf32> to vector<1x32xf32>
      %c2_129 = arith.constant 2 : index
      %c0_130 = arith.constant 0 : index
      %c0_131 = arith.constant 0 : index
      %251 = vector.load %arg8[%c2_129, %c0_130, %c0_131] : memref<4x1x32xf32, #tpu.memory_space<vmem>>, vector<1x1x32xf32>
      %252 = vector.shape_cast %251 : vector<1x1x32xf32> to vector<1x32xf32>
      %cst_132 = arith.constant dense<0.000000e+00> : vector<16xf32>
      %253 = vector.multi_reduction <add>, %248, %cst_132 [1] : vector<16x32xf32> to vector<16xf32>
      %254 = vector.shape_cast %253 : vector<16xf32> to vector<16x1xf32>
      %cst_133 = arith.constant 3.200000e+01 : f32
      %255 = vector.broadcast %cst_133 : f32 to vector<16x1xf32>
      %256 = arith.divf %254, %255 : vector<16x1xf32>
      %257 = vector.broadcast %256 : vector<16x1xf32> to vector<16x32xf32>
      %258 = arith.subf %248, %257 : vector<16x32xf32>
      %259 = arith.mulf %258, %258 : vector<16x32xf32>
      %cst_134 = arith.constant dense<0.000000e+00> : vector<16xf32>
      %260 = vector.multi_reduction <add>, %259, %cst_134 [1] : vector<16x32xf32> to vector<16xf32>
      %261 = vector.shape_cast %260 : vector<16xf32> to vector<16x1xf32>
      %cst_135 = arith.constant 3.200000e+01 : f32
      %262 = vector.broadcast %cst_135 : f32 to vector<16x1xf32>
      %263 = arith.divf %261, %262 : vector<16x1xf32>
      %cst_136 = arith.constant 9.99999974E-6 : f32
      %264 = vector.broadcast %cst_136 : f32 to vector<16x1xf32>
      %265 = arith.addf %263, %264 : vector<16x1xf32>
      %266 = math.rsqrt %265 : vector<16x1xf32>
      %267 = vector.broadcast %266 : vector<16x1xf32> to vector<16x32xf32>
      %268 = arith.mulf %258, %267 : vector<16x32xf32>
      %269 = vector.broadcast %250 : vector<1x32xf32> to vector<16x32xf32>
      %270 = arith.mulf %268, %269 : vector<16x32xf32>
      %271 = vector.broadcast %252 : vector<1x32xf32> to vector<16x32xf32>
      %272 = arith.addf %270, %271 : vector<16x32xf32>
      %c0_137 = arith.constant 0 : index
      %c0_138 = arith.constant 0 : index
      %c0_139 = arith.constant 0 : index
      %273 = vector.load %arg15[%c0_137, %c0_138, %c0_139] : memref<2x32x128xbf16, #tpu.memory_space<vmem>>, vector<1x32x128xbf16>
      %274 = vector.shape_cast %273 : vector<1x32x128xbf16> to vector<32x128xbf16>
      %c0_140 = arith.constant 0 : index
      %c0_141 = arith.constant 0 : index
      %c0_142 = arith.constant 0 : index
      %275 = vector.load %arg16[%c0_140, %c0_141, %c0_142] : memref<2x1x128xf32, #tpu.memory_space<vmem>>, vector<1x1x128xf32>
      %276 = vector.shape_cast %275 : vector<1x1x128xf32> to vector<1x128xf32>
      %277 = arith.truncf %272 : vector<16x32xf32> to vector<16x32xbf16>
      %cst_143 = arith.constant dense<0.000000e+00> : vector<16x128xf32>
      %278 = tpu.matmul %277, %274, %cst_143 {dimension_numbers = #tpu.dot_dimension_numbers<[1], [0], [0], [1], [0, 0, 1, 1], [], []>} : vector<16x32xbf16>, vector<32x128xbf16>, vector<16x128xf32> -> vector<16x128xf32>
      %279 = vector.broadcast %276 : vector<1x128xf32> to vector<16x128xf32>
      %280 = arith.addf %278, %279 : vector<16x128xf32>
      %cst_144 = arith.constant 0.000000e+00 : f32
      %281 = vector.broadcast %cst_144 : f32 to vector<16x128xf32>
      %282 = arith.cmpf ogt, %280, %281 : vector<16x128xf32>
      %cst_145 = arith.constant 0.00999999977 : f32
      %283 = vector.broadcast %cst_145 : f32 to vector<16x128xf32>
      %284 = arith.mulf %283, %280 : vector<16x128xf32>
      %285 = arith.select %282, %280, %284 : vector<16x128xi1>, vector<16x128xf32>
      %c0_146 = arith.constant 0 : index
      %c0_147 = arith.constant 0 : index
      %c0_148 = arith.constant 0 : index
      %286 = vector.load %arg17[%c0_146, %c0_147, %c0_148] : memref<2x128x32xbf16, #tpu.memory_space<vmem>>, vector<1x128x32xbf16>
      %287 = vector.shape_cast %286 : vector<1x128x32xbf16> to vector<128x32xbf16>
      %c0_149 = arith.constant 0 : index
      %c0_150 = arith.constant 0 : index
      %c0_151 = arith.constant 0 : index
      %288 = vector.load %arg18[%c0_149, %c0_150, %c0_151] : memref<2x1x32xf32, #tpu.memory_space<vmem>>, vector<1x1x32xf32>
      %289 = vector.shape_cast %288 : vector<1x1x32xf32> to vector<1x32xf32>
      %290 = arith.truncf %285 : vector<16x128xf32> to vector<16x128xbf16>
      %cst_152 = arith.constant dense<0.000000e+00> : vector<16x32xf32>
      %291 = tpu.matmul %290, %287, %cst_152 {dimension_numbers = #tpu.dot_dimension_numbers<[1], [0], [0], [1], [0, 0, 1, 1], [], []>} : vector<16x128xbf16>, vector<128x32xbf16>, vector<16x32xf32> -> vector<16x32xf32>
      %292 = vector.broadcast %289 : vector<1x32xf32> to vector<16x32xf32>
      %293 = arith.addf %291, %292 : vector<16x32xf32>
      %294 = vector.broadcast %1 : vector<16x1xf32> to vector<16x32xf32>
      %295 = arith.mulf %293, %294 : vector<16x32xf32>
      %296 = arith.addf %248, %295 : vector<16x32xf32>
      %297 = vector.shape_cast %296 : vector<16x32xf32> to vector<1x16x32xf32>
      %c0_153 = arith.constant 0 : index
      %c0_154 = arith.constant 0 : index
      %c0_155 = arith.constant 0 : index
      %298 = vector.load %arg21[%c0_153, %c0_154, %c0_155] : memref<1x16x32xf32, #tpu.memory_space<vmem>>, vector<1x16x32xf32>
      tpu.vector_store %arg21[%c0_153, %c0_154, %c0_155], %297 {strides = array<i32>} : memref<1x16x32xf32, #tpu.memory_space<vmem>>, vector<1x16x32xf32>,
    } else {
    }
    return
  }
  func.func @transform_0(%arg0: i32, %arg1: i32) -> (i32, i32, i32) {
    %c0_i32 = arith.constant 0 : i32
    %c0_i32_0 = arith.constant 0 : i32
    %c0_i32_1 = arith.constant 0 : i32
    return %arg0, %c0_i32, %c0_i32_0 : i32, i32, i32
  }
  func.func @transform_1(%arg0: i32, %arg1: i32) -> (i32, i32, i32) {
    %c0_i32 = arith.constant 0 : i32
    %c0_i32_0 = arith.constant 0 : i32
    return %arg0, %arg1, %c0_i32 : i32, i32, i32
  }
  func.func @transform_2(%arg0: i32, %arg1: i32) -> (i32, i32, i32) {
    %c0_i32 = arith.constant 0 : i32
    %c0_i32_0 = arith.constant 0 : i32
    %c0_i32_1 = arith.constant 0 : i32
    return %arg0, %c0_i32, %c0_i32_0 : i32, i32, i32
  }
  func.func @transform_3(%arg0: i32, %arg1: i32) -> (i32, i32, i32) {
    %c0_i32 = arith.constant 0 : i32
    %c0_i32_0 = arith.constant 0 : i32
    return %arg0, %arg1, %c0_i32 : i32, i32, i32
  }
  func.func @transform_4(%arg0: i32, %arg1: i32) -> (i32, i32, i32, i32) {
    %c0_i32 = arith.constant 0 : i32
    %c0_i32_0 = arith.constant 0 : i32
    %c0_i32_1 = arith.constant 0 : i32
    return %arg0, %c0_i32, %arg1, %c0_i32_0 : i32, i32, i32, i32
  }
  func.func @transform_5(%arg0: i32, %arg1: i32) -> (i32, i32, i32) {
    %c0_i32 = arith.constant 0 : i32
    %c0_i32_0 = arith.constant 0 : i32
    %c0_i32_1 = arith.constant 0 : i32
    %c0_i32_2 = arith.constant 0 : i32
    return %c0_i32, %c0_i32_0, %c0_i32_1 : i32, i32, i32
  }
  func.func @transform_6(%arg0: i32, %arg1: i32) -> (i32, i32, i32) {
    %c0_i32 = arith.constant 0 : i32
    %c0_i32_0 = arith.constant 0 : i32
    %c0_i32_1 = arith.constant 0 : i32
    %c0_i32_2 = arith.constant 0 : i32
    return %c0_i32, %c0_i32_0, %c0_i32_1 : i32, i32, i32
  }
  func.func @transform_7(%arg0: i32, %arg1: i32) -> (i32, i32) {
    %c0_i32 = arith.constant 0 : i32
    %c0_i32_0 = arith.constant 0 : i32
    %c0_i32_1 = arith.constant 0 : i32
    return %c0_i32, %c0_i32_0 : i32, i32
  }
  func.func @transform_8(%arg0: i32, %arg1: i32) -> (i32, i32) {
    %c0_i32 = arith.constant 0 : i32
    %c0_i32_0 = arith.constant 0 : i32
    %c0_i32_1 = arith.constant 0 : i32
    return %c0_i32, %c0_i32_0 : i32, i32
  }
  func.func @transform_9(%arg0: i32, %arg1: i32) -> (i32, i32) {
    %c0_i32 = arith.constant 0 : i32
    %c0_i32_0 = arith.constant 0 : i32
    %c0_i32_1 = arith.constant 0 : i32
    return %c0_i32, %c0_i32_0 : i32, i32
  }
  func.func @transform_10(%arg0: i32, %arg1: i32) -> (i32, i32) {
    %c0_i32 = arith.constant 0 : i32
    %c0_i32_0 = arith.constant 0 : i32
    %c0_i32_1 = arith.constant 0 : i32
    return %c0_i32, %c0_i32_0 : i32, i32
  }
  func.func @transform_11(%arg0: i32, %arg1: i32) -> (i32, i32, i32) {
    %c0_i32 = arith.constant 0 : i32
    %c0_i32_0 = arith.constant 0 : i32
    %c0_i32_1 = arith.constant 0 : i32
    %c0_i32_2 = arith.constant 0 : i32
    return %c0_i32, %c0_i32_0, %c0_i32_1 : i32, i32, i32
  }
  func.func @transform_12(%arg0: i32, %arg1: i32) -> (i32, i32, i32) {
    %c0_i32 = arith.constant 0 : i32
    %c0_i32_0 = arith.constant 0 : i32
    %c0_i32_1 = arith.constant 0 : i32
    %c0_i32_2 = arith.constant 0 : i32
    return %c0_i32, %c0_i32_0, %c0_i32_1 : i32, i32, i32
  }
  func.func @transform_13(%arg0: i32, %arg1: i32) -> (i32, i32, i32) {
    %c0_i32 = arith.constant 0 : i32
    %c0_i32_0 = arith.constant 0 : i32
    %c0_i32_1 = arith.constant 0 : i32
    %c0_i32_2 = arith.constant 0 : i32
    return %c0_i32, %c0_i32_0, %c0_i32_1 : i32, i32, i32
  }
  func.func @transform_14(%arg0: i32, %arg1: i32) -> (i32, i32, i32) {
    %c0_i32 = arith.constant 0 : i32
    %c0_i32_0 = arith.constant 0 : i32
    %c0_i32_1 = arith.constant 0 : i32
    %c0_i32_2 = arith.constant 0 : i32
    return %c0_i32, %c0_i32_0, %c0_i32_1 : i32, i32, i32
  }
  func.func @transform_15(%arg0: i32, %arg1: i32) -> (i32, i32, i32) {
    %c0_i32 = arith.constant 0 : i32
    %c0_i32_0 = arith.constant 0 : i32
    %c0_i32_1 = arith.constant 0 : i32
    %c0_i32_2 = arith.constant 0 : i32
    return %c0_i32, %c0_i32_0, %c0_i32_1 : i32, i32, i32
  }
  func.func @transform_16(%arg0: i32, %arg1: i32) -> (i32, i32, i32) {
    %c0_i32 = arith.constant 0 : i32
    %c0_i32_0 = arith.constant 0 : i32
    %c0_i32_1 = arith.constant 0 : i32
    %c0_i32_2 = arith.constant 0 : i32
    return %c0_i32, %c0_i32_0, %c0_i32_1 : i32, i32, i32
  }
  func.func @transform_17(%arg0: i32, %arg1: i32) -> (i32, i32) {
    %c0_i32 = arith.constant 0 : i32
    %c0_i32_0 = arith.constant 0 : i32
    %c0_i32_1 = arith.constant 0 : i32
    return %c0_i32, %c0_i32_0 : i32, i32
  }
  func.func @transform_18(%arg0: i32, %arg1: i32) -> (i32, i32) {
    %c0_i32 = arith.constant 0 : i32
    %c0_i32_0 = arith.constant 0 : i32
    %c0_i32_1 = arith.constant 0 : i32
    return %c0_i32, %c0_i32_0 : i32, i32
  }
  func.func @transform_19(%arg0: i32, %arg1: i32) -> (i32, i32, i32) {
    %c0_i32 = arith.constant 0 : i32
    %c0_i32_0 = arith.constant 0 : i32
    %c0_i32_1 = arith.constant 0 : i32
    return %arg0, %c0_i32, %c0_i32_0 : i32, i32, i32
  }
  func.func @transform_20(%arg0: i32, %arg1: i32) -> (i32, i32, i32, i32) {
    %c0_i32 = arith.constant 0 : i32
    %c0_i32_0 = arith.constant 0 : i32
    %c0_i32_1 = arith.constant 0 : i32
    return %arg0, %c0_i32, %arg1, %c0_i32_0 : i32, i32, i32, i32
  }
}

</mosaic_0001>

<llo_original>
// kernel: tpu_custom_call.1
$region0: #{tpu_custom_call.1}
  #allocation0 [shape = 'u32[]', space=smem, size = 0x4, offset = 0x4, fixed_abs, tag = 'smem constant byte address 0x4 - core index']
  #allocation1 [shape = 'u32[72,128]{1,0:T(1,128)}', space=vmem, size = 0x9000, scoped, tag = 'internal scratch']
  #allocation2 [shape = 'f32[1,16,32]{2,1,0:T(8,128)}', space=vmem, size = 0x2000, scoped, tag = 'scratch operand']
  %s0 = inlined_call_operand.vmem [shape: f32[2,16,32], index: 0, kind: input, shape index: {}]
  %s1 = inlined_call_operand.vmem [shape: f32[2,16,32], index: 1, kind: input, shape index: {}]
  %s2 = inlined_call_operand.vmem [shape: f32[2,16,1], index: 2, kind: input, shape index: {}]
  %s3 = inlined_call_operand.vmem [shape: f32[2,16,1], index: 3, kind: input, shape index: {}]
  %s4 = inlined_call_operand.hbm [shape: bf16[2,16,16,32], index: 4, kind: input, shape index: {}]
  %s5 = inlined_call_operand.vmem [shape: f32[4,1,32], index: 5, kind: input, shape index: {}]
  %s6 = inlined_call_operand.vmem [shape: f32[4,1,32], index: 6, kind: input, shape index: {}]
  %s7 = inlined_call_operand.vmem [shape: bf16[32,160], index: 7, kind: input, shape index: {}]
  %s8 = inlined_call_operand.vmem [shape: f32[1,160], index: 8, kind: input, shape index: {}]
  %s9 = inlined_call_operand.vmem [shape: bf16[32,32], index: 9, kind: input, shape index: {}]
  %s10 = inlined_call_operand.vmem [shape: f32[1,32], index: 10, kind: input, shape index: {}]
  %s11 = inlined_call_operand.vmem [shape: bf16[2,32,32], index: 11, kind: input, shape index: {}]
  %s12 = inlined_call_operand.vmem [shape: f32[2,1,32], index: 12, kind: input, shape index: {}]
  %s13 = inlined_call_operand.vmem [shape: bf16[2,32,128], index: 13, kind: input, shape index: {}]
  %s14 = inlined_call_operand.vmem [shape: f32[2,1,128], index: 14, kind: input, shape index: {}]
  %s15 = inlined_call_operand.vmem [shape: bf16[2,128,32], index: 15, kind: input, shape index: {}]
  %s16 = inlined_call_operand.vmem [shape: f32[2,1,32], index: 16, kind: input, shape index: {}]
  %s17 = inlined_call_operand.vmem [shape: bf16[32,4], index: 17, kind: input, shape index: {}]
  %s18 = inlined_call_operand.vmem [shape: bf16[4,32], index: 18, kind: input, shape index: {}]
  %s19 = inlined_call_operand.hbm [shape: f32[2,16,32], index: 19, kind: output, shape index: {0}]
  %s20 = inlined_call_operand.hbm [shape: bf16[2,16,16,32], index: 20, kind: output, shape index: {1}]
  %21 = xla_tuple %s19, %s20
  %s22 = sld [smem:[#allocation0]]
  $region129: #{tpu_custom_call.1} parent=0
    _
  %s24 = ssub.s32 1, %s22
  %s25 = scalar_select 0, %s24, %s22
  $region1: #{tpu_custom_call.1} parent=0
    #allocation3 [shape = 'u8[65536]{0}', space=vmem, size = 0x10000, scoped, tag = 'input window, operand 4']
    #allocation4 [shape = 's32[2]{0}', space=sflag, size = 0x8, scoped, tag = 'scoped memory for tpu_custom_call.1']
    #allocation5 [shape = 's32[2]{0}', space=sflag, size = 0x8, scoped, tag = 'scoped memory for tpu_custom_call.1']
    #allocation6 [shape = 'u8[16384]{0}', space=vmem, size = 0x4000, scoped, tag = 'output window, operand 0']
    #allocation7 [shape = 'u8[65536]{0}', space=vmem, size = 0x10000, scoped, tag = 'output window, operand 1']
    #allocation8 [shape = 's32[2]{0}', space=sflag, size = 0x8, scoped, tag = 'scoped memory for tpu_custom_call.1']
    %26 = vsyncpa [#allocation4], 0
    %s27 = scalar_lea.sflag [#allocation4], 1
    %28 = vsyncpa %s27, 0
    %29 = vsyncpa [#allocation5], 0
    %s30 = scalar_lea.sflag [#allocation5], 1
    %31 = vsyncpa %s30, 0
    %32 = vsyncpa [#allocation8], 0
    %s33 = scalar_lea.sflag [#allocation8], 1
    %34 = vsyncpa %s33, 0
    loop: start=0, step=1, limit=6
    $region2: #{tpu_custom_call.1} parent=1 // loop_pre_header
      _
    $region3: #{tpu_custom_call.1} parent=1 // loop_header
      %s36 = sphi 0, %s40
      %p37 = scmp.ge.s32.totalorder %s36, 6
      %s43 = sphi 0, %s55
      %s44 = sphi 0, %s51
      %s45 = sphi 0, %s43
      %s46 = sphi 0, %s44
      %s47 = sphi 0, %s45
      %s48 = sphi 0, %s46
      %s58 = sphi 0, %s60
      %s61 = sphi 0, %s58
      %s62 = sphi 0, %s61
      %s78 = sphi 0, %s62
      %s86 = sphi 0, %s88
      %s89 = sphi 0, %s86
      %s90 = sphi 0, %s89
      %s106 = sphi 0, %s90
      %s112 = sphi 0, %s114
      %s115 = sphi 0, %s112
      %s116 = sphi 0, %s115
      %s132 = sphi 0, %s116
      %s140 = sphi 0, %s142
      %s143 = sphi 0, %s140
      %s144 = sphi 0, %s143
      %s160 = sphi 0, %s144
      %s168 = sphi 0, %s170
      %s171 = sphi 0, %s168
      %s172 = sphi 0, %s171
      %s188 = sphi 0, %s172
      %s192 = sphi 0, %s192
      %s194 = sphi 0, %s192
      %s195 = sphi 0, %s194
      %s209 = sphi 0, %s195
      %s213 = sphi 0, %s213
      %s215 = sphi 0, %s213
      %s216 = sphi 0, %s215
      %s230 = sphi 0, %s216
      %s234 = sphi 0, %s234
      %s236 = sphi 0, %s234
      %s237 = sphi 0, %s236
      %s251 = sphi 0, %s237
      %s255 = sphi 0, %s255
      %s257 = sphi 0, %s255
      %s258 = sphi 0, %s257
      %s272 = sphi 0, %s258
      %s276 = sphi 0, %s276
      %s278 = sphi 0, %s276
      %s279 = sphi 0, %s278
      %s293 = sphi 0, %s279
      %s297 = sphi 0, %s297
      %s299 = sphi 0, %s297
      %s300 = sphi 0, %s299
      %s314 = sphi 0, %s300
      %s318 = sphi 0, %s318
      %s320 = sphi 0, %s318
      %s321 = sphi 0, %s320
      %s335 = sphi 0, %s321
      %s339 = sphi 0, %s339
      %s341 = sphi 0, %s339
      %s342 = sphi 0, %s341
      %s356 = sphi 0, %s342
      %s360 = sphi 0, %s360
      %s362 = sphi 0, %s360
      %s363 = sphi 0, %s362
      %s377 = sphi 0, %s363
      %s381 = sphi 0, %s381
      %s383 = sphi 0, %s381
      %s384 = sphi 0, %s383
      %s398 = sphi 0, %s384
      %s402 = sphi 0, %s402
      %s404 = sphi 0, %s402
      %s405 = sphi 0, %s404
      %s419 = sphi 0, %s405
      %s423 = sphi 0, %s423
      %s425 = sphi 0, %s423
      %s426 = sphi 0, %s425
      %s440 = sphi 0, %s426
      %s444 = sphi 0, %s444
      %s446 = sphi 0, %s444
      %s447 = sphi 0, %s446
      %s461 = sphi 0, %s447
      %s465 = sphi 0, %s465
      %s467 = sphi 0, %s465
      %s468 = sphi 0, %s467
      %s482 = sphi 0, %s468
      %s488 = sphi 0, %s490
      %s491 = sphi 0, %s488
      %s492 = sphi 0, %s491
      %s508 = sphi 0, %s492
      %s516 = sphi 0, %s518
      %s519 = sphi 0, %s516
      %s520 = sphi 0, %s519
      %s536 = sphi 0, %s520
    $region4: #{tpu_custom_call.1} parent=1 // loop_header_branch
      %39 = sbr.rel (%p37) target = $region8
    $region5: #{tpu_custom_call.1} parent=1 // loop_body
      %s41 = ssub.s32 %s36, 1
      %s42 = ssub.s32 %s36, 2
      %s49 = sadd.s32 1, %s44
      %p50 = scmp.ge.s32.totalorder %s49, 2
      %s51 = scalar_select %p50, 0, %s49
      %s52 = sadd.s32 1, %s43
      %s53 = scalar_select %p50, %s52, %s43
      %p54 = scmp.ge.s32.totalorder %s53, 2
      %s55 = scalar_select %p54, 0, %s53
      %s56 = ssub.s32 %s43, %s55
      %p57 = scmp.eq.s32.totalorder %s56, 0
      %s59 = sadd.s32 %s58, 1
      %s60 = scalar_select %p57, %s58, %s59
      %p63 = pneg %p57
      %p64 = scmp.eq.s32.totalorder %s36, 3
      %p65 = por %p63, %p64
      %p66 = scmp.ne.s32.totalorder %s58, %s61
      %p67 = scmp.eq.s32.totalorder %s36, 0
      %p68 = por %p66, %p67
      %p69 = scmp.ne.s32.totalorder %s58, %s61
      %p70 = scmp.eq.s32.totalorder %s41, 3
      %p71 = por %p69, %p70
      %p72 = scmp.ne.s32.totalorder %s61, %s62
      %p73 = scmp.eq.s32.totalorder %s41, 0
      %p74 = por %p72, %p73
      %p75 = scmp.ne.s32.totalorder %s61, %s62
      %p76 = scmp.eq.s32.totalorder %s42, 3
      %p77 = por %p75, %p76
      %p79 = scmp.ne.s32.totalorder %s62, %s78
      %p80 = scmp.eq.s32.totalorder %s42, 0
      %p81 = por %p79, %p80
      %s82 = ssub.s32 %s43, %s55
      %s83 = ssub.s32 %s44, %s51
      %s84 = sor.u32 %s82, %s83
      %p85 = scmp.eq.s32.totalorder %s84, 0
      %s87 = sadd.s32 %s86, 1
      %s88 = scalar_select %p85, %s86, %s87
      %p91 = pneg %p85
      %p92 = scmp.eq.s32.totalorder %s36, 3
      %p93 = por %p91, %p92
      %p94 = scmp.ne.s32.totalorder %s86, %s89
      %p95 = scmp.eq.s32.totalorder %s36, 0
      %p96 = por %p94, %p95
      %p97 = scmp.ne.s32.totalorder %s86, %s89
      %p98 = scmp.eq.s32.totalorder %s41, 3
      %p99 = por %p97, %p98
      %p100 = scmp.ne.s32.totalorder %s89, %s90
      %p101 = scmp.eq.s32.totalorder %s41, 0
      %p102 = por %p100, %p101
      %p103 = scmp.ne.s32.totalorder %s89, %s90
      %p104 = scmp.eq.s32.totalorder %s42, 3
      %p105 = por %p103, %p104
      %p107 = scmp.ne.s32.totalorder %s90, %s106
      %p108 = scmp.eq.s32.totalorder %s42, 0
      %p109 = por %p107, %p108
      %s110 = ssub.s32 %s43, %s55
      %p111 = scmp.eq.s32.totalorder %s110, 0
      %s113 = sadd.s32 %s112, 1
      %s114 = scalar_select %p111, %s112, %s113
      %p117 = pneg %p111
      %p118 = scmp.eq.s32.totalorder %s36, 3
      %p119 = por %p117, %p118
      %p120 = scmp.ne.s32.totalorder %s112, %s115
      %p121 = scmp.eq.s32.totalorder %s36, 0
      %p122 = por %p120, %p121
      %p123 = scmp.ne.s32.totalorder %s112, %s115
      %p124 = scmp.eq.s32.totalorder %s41, 3
      %p125 = por %p123, %p124
      %p126 = scmp.ne.s32.totalorder %s115, %s116
      %p127 = scmp.eq.s32.totalorder %s41, 0
      %p128 = por %p126, %p127
      %p129 = scmp.ne.s32.totalorder %s115, %s116
      %p130 = scmp.eq.s32.totalorder %s42, 3
      %p131 = por %p129, %p130
      %p133 = scmp.ne.s32.totalorder %s116, %s132
      %p134 = scmp.eq.s32.totalorder %s42, 0
      %p135 = por %p133, %p134
      %s136 = ssub.s32 %s43, %s55
      %s137 = ssub.s32 %s44, %s51
      %s138 = sor.u32 %s136, %s137
      %p139 = scmp.eq.s32.totalorder %s138, 0
      %s141 = sadd.s32 %s140, 1
      %s142 = scalar_select %p139, %s140, %s141
      %p145 = pneg %p139
      %p146 = scmp.eq.s32.totalorder %s36, 3
      %p147 = por %p145, %p146
      %p148 = scmp.ne.s32.totalorder %s140, %s143
      %p149 = scmp.eq.s32.totalorder %s36, 0
      %p150 = por %p148, %p149
      %p151 = scmp.ne.s32.totalorder %s140, %s143
      %p152 = scmp.eq.s32.totalorder %s41, 3
      %p153 = por %p151, %p152
      %p154 = scmp.ne.s32.totalorder %s143, %s144
      %p155 = scmp.eq.s32.totalorder %s41, 0
      %p156 = por %p154, %p155
      %p157 = scmp.ne.s32.totalorder %s143, %s144
      %p158 = scmp.eq.s32.totalorder %s42, 3
      %p159 = por %p157, %p158
      %p161 = scmp.ne.s32.totalorder %s144, %s160
      %p162 = scmp.eq.s32.totalorder %s42, 0
      %p163 = por %p161, %p162
      %s164 = ssub.s32 %s43, %s55
      %s165 = ssub.s32 %s44, %s51
      %s166 = sor.u32 %s164, %s165
      %p167 = scmp.eq.s32.totalorder %s166, 0
      %s169 = sadd.s32 %s168, 1
      %s170 = scalar_select %p167, %s168, %s169
      %p173 = pneg %p167
      %p174 = scmp.eq.s32.totalorder %s36, 3
      %p175 = por %p173, %p174
      %p176 = scmp.ne.s32.totalorder %s168, %s171
      %p177 = scmp.eq.s32.totalorder %s36, 0
      %p178 = por %p176, %p177
      %p179 = scmp.ne.s32.totalorder %s168, %s171
      %p180 = scmp.eq.s32.totalorder %s41, 3
      %p181 = por %p179, %p180
      %p182 = scmp.ne.s32.totalorder %s171, %s172
      %p183 = scmp.eq.s32.totalorder %s41, 0
      %p184 = por %p182, %p183
      %p185 = scmp.ne.s32.totalorder %s171, %s172
      %p186 = scmp.eq.s32.totalorder %s42, 3
      %p187 = por %p185, %p186
      %p189 = scmp.ne.s32.totalorder %s172, %s188
      %p190 = scmp.eq.s32.totalorder %s42, 0
      %p191 = por %p189, %p190
      %s193 = sadd.s32 %s192, 1
      %p196 = scmp.eq.s32.totalorder %s36, 3
      %p197 = scmp.ne.s32.totalorder %s192, %s194
      %p198 = scmp.eq.s32.totalorder %s36, 0
      %p199 = por %p197, %p198
      %p200 = scmp.ne.s32.totalorder %s192, %s194
      %p201 = scmp.eq.s32.totalorder %s41, 3
      %p202 = por %p200, %p201
      %p203 = scmp.ne.s32.totalorder %s194, %s195
      %p204 = scmp.eq.s32.totalorder %s41, 0
      %p205 = por %p203, %p204
      %p206 = scmp.ne.s32.totalorder %s194, %s195
      %p207 = scmp.eq.s32.totalorder %s42, 3
      %p208 = por %p206, %p207
      %p210 = scmp.ne.s32.totalorder %s195, %s209
      %p211 = scmp.eq.s32.totalorder %s42, 0
      %p212 = por %p210, %p211
      %s214 = sadd.s32 %s213, 1
      %p217 = scmp.eq.s32.totalorder %s36, 3
      %p218 = scmp.ne.s32.totalorder %s213, %s215
      %p219 = scmp.eq.s32.totalorder %s36, 0
      %p220 = por %p218, %p219
      %p221 = scmp.ne.s32.totalorder %s213, %s215
      %p222 = scmp.eq.s32.totalorder %s41, 3
      %p223 = por %p221, %p222
      %p224 = scmp.ne.s32.totalorder %s215, %s216
      %p225 = scmp.eq.s32.totalorder %s41, 0
      %p226 = por %p224, %p225
      %p227 = scmp.ne.s32.totalorder %s215, %s216
      %p228 = scmp.eq.s32.totalorder %s42, 3
      %p229 = por %p227, %p228
      %p231 = scmp.ne.s32.totalorder %s216, %s230
      %p232 = scmp.eq.s32.totalorder %s42, 0
      %p233 = por %p231, %p232
      %s235 = sadd.s32 %s234, 1
      %p238 = scmp.eq.s32.totalorder %s36, 3
      %p239 = scmp.ne.s32.totalorder %s234, %s236
      %p240 = scmp.eq.s32.totalorder %s36, 0
      %p241 = por %p239, %p240
      %p242 = scmp.ne.s32.totalorder %s234, %s236
      %p243 = scmp.eq.s32.totalorder %s41, 3
      %p244 = por %p242, %p243
      %p245 = scmp.ne.s32.totalorder %s236, %s237
      %p246 = scmp.eq.s32.totalorder %s41, 0
      %p247 = por %p245, %p246
      %p248 = scmp.ne.s32.totalorder %s236, %s237
      %p249 = scmp.eq.s32.totalorder %s42, 3
      %p250 = por %p248, %p249
      %p252 = scmp.ne.s32.totalorder %s237, %s251
      %p253 = scmp.eq.s32.totalorder %s42, 0
      %p254 = por %p252, %p253
      %s256 = sadd.s32 %s255, 1
      %p259 = scmp.eq.s32.totalorder %s36, 3
      %p260 = scmp.ne.s32.totalorder %s255, %s257
      %p261 = scmp.eq.s32.totalorder %s36, 0
      %p262 = por %p260, %p261
      %p263 = scmp.ne.s32.totalorder %s255, %s257
      %p264 = scmp.eq.s32.totalorder %s41, 3
      %p265 = por %p263, %p264
      %p266 = scmp.ne.s32.totalorder %s257, %s258
      %p267 = scmp.eq.s32.totalorder %s41, 0
      %p268 = por %p266, %p267
      %p269 = scmp.ne.s32.totalorder %s257, %s258
      %p270 = scmp.eq.s32.totalorder %s42, 3
      %p271 = por %p269, %p270
      %p273 = scmp.ne.s32.totalorder %s258, %s272
      %p274 = scmp.eq.s32.totalorder %s42, 0
      %p275 = por %p273, %p274
      %s277 = sadd.s32 %s276, 1
      %p280 = scmp.eq.s32.totalorder %s36, 3
      %p281 = scmp.ne.s32.totalorder %s276, %s278
      %p282 = scmp.eq.s32.totalorder %s36, 0
      %p283 = por %p281, %p282
      %p284 = scmp.ne.s32.totalorder %s276, %s278
      %p285 = scmp.eq.s32.totalorder %s41, 3
      %p286 = por %p284, %p285
      %p287 = scmp.ne.s32.totalorder %s278, %s279
      %p288 = scmp.eq.s32.totalorder %s41, 0
      %p289 = por %p287, %p288
      %p290 = scmp.ne.s32.totalorder %s278, %s279
      %p291 = scmp.eq.s32.totalorder %s42, 3
      %p292 = por %p290, %p291
      %p294 = scmp.ne.s32.totalorder %s279, %s293
      %p295 = scmp.eq.s32.totalorder %s42, 0
      %p296 = por %p294, %p295
      %s298 = sadd.s32 %s297, 1
      %p301 = scmp.eq.s32.totalorder %s36, 3
      %p302 = scmp.ne.s32.totalorder %s297, %s299
      %p303 = scmp.eq.s32.totalorder %s36, 0
      %p304 = por %p302, %p303
      %p305 = scmp.ne.s32.totalorder %s297, %s299
      %p306 = scmp.eq.s32.totalorder %s41, 3
      %p307 = por %p305, %p306
      %p308 = scmp.ne.s32.totalorder %s299, %s300
      %p309 = scmp.eq.s32.totalorder %s41, 0
      %p310 = por %p308, %p309
      %p311 = scmp.ne.s32.totalorder %s299, %s300
      %p312 = scmp.eq.s32.totalorder %s42, 3
      %p313 = por %p311, %p312
      %p315 = scmp.ne.s32.totalorder %s300, %s314
      %p316 = scmp.eq.s32.totalorder %s42, 0
      %p317 = por %p315, %p316
      %s319 = sadd.s32 %s318, 1
      %p322 = scmp.eq.s32.totalorder %s36, 3
      %p323 = scmp.ne.s32.totalorder %s318, %s320
      %p324 = scmp.eq.s32.totalorder %s36, 0
      %p325 = por %p323, %p324
      %p326 = scmp.ne.s32.totalorder %s318, %s320
      %p327 = scmp.eq.s32.totalorder %s41, 3
      %p328 = por %p326, %p327
      %p329 = scmp.ne.s32.totalorder %s320, %s321
      %p330 = scmp.eq.s32.totalorder %s41, 0
      %p331 = por %p329, %p330
      %p332 = scmp.ne.s32.totalorder %s320, %s321
      %p333 = scmp.eq.s32.totalorder %s42, 3
      %p334 = por %p332, %p333
      %p336 = scmp.ne.s32.totalorder %s321, %s335
      %p337 = scmp.eq.s32.totalorder %s42, 0
      %p338 = por %p336, %p337
      %s340 = sadd.s32 %s339, 1
      %p343 = scmp.eq.s32.totalorder %s36, 3
      %p344 = scmp.ne.s32.totalorder %s339, %s341
      %p345 = scmp.eq.s32.totalorder %s36, 0
      %p346 = por %p344, %p345
      %p347 = scmp.ne.s32.totalorder %s339, %s341
      %p348 = scmp.eq.s32.totalorder %s41, 3
      %p349 = por %p347, %p348
      %p350 = scmp.ne.s32.totalorder %s341, %s342
      %p351 = scmp.eq.s32.totalorder %s41, 0
      %p352 = por %p350, %p351
      %p353 = scmp.ne.s32.totalorder %s341, %s342
      %p354 = scmp.eq.s32.totalorder %s42, 3
      %p355 = por %p353, %p354
      %p357 = scmp.ne.s32.totalorder %s342, %s356
      %p358 = scmp.eq.s32.totalorder %s42, 0
      %p359 = por %p357, %p358
      %s361 = sadd.s32 %s360, 1
      %p364 = scmp.eq.s32.totalorder %s36, 3
      %p365 = scmp.ne.s32.totalorder %s360, %s362
      %p366 = scmp.eq.s32.totalorder %s36, 0
      %p367 = por %p365, %p366
      %p368 = scmp.ne.s32.totalorder %s360, %s362
      %p369 = scmp.eq.s32.totalorder %s41, 3
      %p370 = por %p368, %p369
      %p371 = scmp.ne.s32.totalorder %s362, %s363
      %p372 = scmp.eq.s32.totalorder %s41, 0
      %p373 = por %p371, %p372
      %p374 = scmp.ne.s32.totalorder %s362, %s363
      %p375 = scmp.eq.s32.totalorder %s42, 3
      %p376 = por %p374, %p375
      %p378 = scmp.ne.s32.totalorder %s363, %s377
      %p379 = scmp.eq.s32.totalorder %s42, 0
      %p380 = por %p378, %p379
      %s382 = sadd.s32 %s381, 1
      %p385 = scmp.eq.s32.totalorder %s36, 3
      %p386 = scmp.ne.s32.totalorder %s381, %s383
      %p387 = scmp.eq.s32.totalorder %s36, 0
      %p388 = por %p386, %p387
      %p389 = scmp.ne.s32.totalorder %s381, %s383
      %p390 = scmp.eq.s32.totalorder %s41, 3
      %p391 = por %p389, %p390
      %p392 = scmp.ne.s32.totalorder %s383, %s384
      %p393 = scmp.eq.s32.totalorder %s41, 0
      %p394 = por %p392, %p393
      %p395 = scmp.ne.s32.totalorder %s383, %s384
      %p396 = scmp.eq.s32.totalorder %s42, 3
      %p397 = por %p395, %p396
      %p399 = scmp.ne.s32.totalorder %s384, %s398
      %p400 = scmp.eq.s32.totalorder %s42, 0
      %p401 = por %p399, %p400
      %s403 = sadd.s32 %s402, 1
      %p406 = scmp.eq.s32.totalorder %s36, 3
      %p407 = scmp.ne.s32.totalorder %s402, %s404
      %p408 = scmp.eq.s32.totalorder %s36, 0
      %p409 = por %p407, %p408
      %p410 = scmp.ne.s32.totalorder %s402, %s404
      %p411 = scmp.eq.s32.totalorder %s41, 3
      %p412 = por %p410, %p411
      %p413 = scmp.ne.s32.totalorder %s404, %s405
      %p414 = scmp.eq.s32.totalorder %s41, 0
      %p415 = por %p413, %p414
      %p416 = scmp.ne.s32.totalorder %s404, %s405
      %p417 = scmp.eq.s32.totalorder %s42, 3
      %p418 = por %p416, %p417
      %p420 = scmp.ne.s32.totalorder %s405, %s419
      %p421 = scmp.eq.s32.totalorder %s42, 0
      %p422 = por %p420, %p421
      %s424 = sadd.s32 %s423, 1
      %p427 = scmp.eq.s32.totalorder %s36, 3
      %p428 = scmp.ne.s32.totalorder %s423, %s425
      %p429 = scmp.eq.s32.totalorder %s36, 0
      %p430 = por %p428, %p429
      %p431 = scmp.ne.s32.totalorder %s423, %s425
      %p432 = scmp.eq.s32.totalorder %s41, 3
      %p433 = por %p431, %p432
      %p434 = scmp.ne.s32.totalorder %s425, %s426
      %p435 = scmp.eq.s32.totalorder %s41, 0
      %p436 = por %p434, %p435
      %p437 = scmp.ne.s32.totalorder %s425, %s426
      %p438 = scmp.eq.s32.totalorder %s42, 3
      %p439 = por %p437, %p438
      %p441 = scmp.ne.s32.totalorder %s426, %s440
      %p442 = scmp.eq.s32.totalorder %s42, 0
      %p443 = por %p441, %p442
      %s445 = sadd.s32 %s444, 1
      %p448 = scmp.eq.s32.totalorder %s36, 3
      %p449 = scmp.ne.s32.totalorder %s444, %s446
      %p450 = scmp.eq.s32.totalorder %s36, 0
      %p451 = por %p449, %p450
      %p452 = scmp.ne.s32.totalorder %s444, %s446
      %p453 = scmp.eq.s32.totalorder %s41, 3
      %p454 = por %p452, %p453
      %p455 = scmp.ne.s32.totalorder %s446, %s447
      %p456 = scmp.eq.s32.totalorder %s41, 0
      %p457 = por %p455, %p456
      %p458 = scmp.ne.s32.totalorder %s446, %s447
      %p459 = scmp.eq.s32.totalorder %s42, 3
      %p460 = por %p458, %p459
      %p462 = scmp.ne.s32.totalorder %s447, %s461
      %p463 = scmp.eq.s32.totalorder %s42, 0
      %p464 = por %p462, %p463
      %s466 = sadd.s32 %s465, 1
      %p469 = scmp.eq.s32.totalorder %s36, 3
      %p470 = scmp.ne.s32.totalorder %s465, %s467
      %p471 = scmp.eq.s32.totalorder %s36, 0
      %p472 = por %p470, %p471
      %p473 = scmp.ne.s32.totalorder %s465, %s467
      %p474 = scmp.eq.s32.totalorder %s41, 3
      %p475 = por %p473, %p474
      %p476 = scmp.ne.s32.totalorder %s467, %s468
      %p477 = scmp.eq.s32.totalorder %s41, 0
      %p478 = por %p476, %p477
      %p479 = scmp.ne.s32.totalorder %s467, %s468
      %p480 = scmp.eq.s32.totalorder %s42, 3
      %p481 = por %p479, %p480
      %p483 = scmp.ne.s32.totalorder %s468, %s482
      %p484 = scmp.eq.s32.totalorder %s42, 0
      %p485 = por %p483, %p484
      %s486 = ssub.s32 %s43, %s55
      %p487 = scmp.eq.s32.totalorder %s486, 0
      %s489 = sadd.s32 %s488, 1
      %s490 = scalar_select %p487, %s488, %s489
      %p493 = pneg %p487
      %p494 = scmp.eq.s32.totalorder %s36, 3
      %p495 = por %p493, %p494
      %p496 = scmp.ne.s32.totalorder %s488, %s491
      %p497 = scmp.eq.s32.totalorder %s36, 0
      %p498 = por %p496, %p497
      %p499 = scmp.ne.s32.totalorder %s488, %s491
      %p500 = scmp.eq.s32.totalorder %s41, 3
      %p501 = por %p499, %p500
      %p502 = scmp.ne.s32.totalorder %s491, %s492
      %p503 = scmp.eq.s32.totalorder %s41, 0
      %p504 = por %p502, %p503
      %p505 = scmp.ne.s32.totalorder %s491, %s492
      %p506 = scmp.eq.s32.totalorder %s42, 3
      %p507 = por %p505, %p506
      %p509 = scmp.ne.s32.totalorder %s492, %s508
      %p510 = scmp.eq.s32.totalorder %s42, 0
      %p511 = por %p509, %p510
      %s512 = ssub.s32 %s43, %s55
      %s513 = ssub.s32 %s44, %s51
      %s514 = sor.u32 %s512, %s513
      %p515 = scmp.eq.s32.totalorder %s514, 0
      %s517 = sadd.s32 %s516, 1
      %s518 = scalar_select %p515, %s516, %s517
      %p521 = pneg %p515
      %p522 = scmp.eq.s32.totalorder %s36, 3
      %p523 = por %p521, %p522
      %p524 = scmp.ne.s32.totalorder %s516, %s519
      %p525 = scmp.eq.s32.totalorder %s36, 0
      %p526 = por %p524, %p525
      %p527 = scmp.ne.s32.totalorder %s516, %s519
      %p528 = scmp.eq.s32.totalorder %s41, 3
      %p529 = por %p527, %p528
      %p530 = scmp.ne.s32.totalorder %s519, %s520
      %p531 = scmp.eq.s32.totalorder %s41, 0
      %p532 = por %p530, %p531
      %p533 = scmp.ne.s32.totalorder %s519, %s520
      %p534 = scmp.eq.s32.totalorder %s42, 3
      %p535 = por %p533, %p534
      %p537 = scmp.ne.s32.totalorder %s520, %s536
      %p538 = scmp.eq.s32.totalorder %s42, 0
      %p539 = por %p537, %p538
      %p540 = scmp.le.s32.totalorder 1, %s36
      %p541 = scmp.lt.s32.totalorder %s36, 5
      %p542 = pnand %p540, %p541
      %p543 = pneg %p542
      // Predicated region
      $region9: #{tpu_custom_call.1} parent=5 // pred_check
        _
      $region10: #{tpu_custom_call.1} parent=5 // pred_check_branch
        %545 = sbr.rel (%p542) target = $region12
      $region11: #{tpu_custom_call.1} parent=5 // pred_region
        %s546 = ssub.s32 %s36, 1
        // Predicated region
        $region13: #{tpu_custom_call.1} parent=11 // pred_check
          %p547 = pneg %p205
        $region14: #{tpu_custom_call.1} parent=11 // pred_check_branch
          %549 = sbr.rel (%p547) target = $region16
        $region15: #{tpu_custom_call.1} parent=11 // pred_region
          _
        $region16: #{tpu_custom_call.1} parent=11 // pred_fallthru
          _
        // Predicated region
        $region17: #{tpu_custom_call.1} parent=11 // pred_check
          %p550 = pneg %p226
        $region18: #{tpu_custom_call.1} parent=11 // pred_check_branch
          %552 = sbr.rel (%p550) target = $region20
        $region19: #{tpu_custom_call.1} parent=11 // pred_region
          _
        $region20: #{tpu_custom_call.1} parent=11 // pred_fallthru
          _
        // Predicated region
        $region21: #{tpu_custom_call.1} parent=11 // pred_check
          %p553 = pneg %p247
        $region22: #{tpu_custom_call.1} parent=11 // pred_check_branch
          %555 = sbr.rel (%p553) target = $region24
        $region23: #{tpu_custom_call.1} parent=11 // pred_region
          _
        $region24: #{tpu_custom_call.1} parent=11 // pred_fallthru
          _
        // Predicated region
        $region25: #{tpu_custom_call.1} parent=11 // pred_check
          %p556 = pneg %p268
        $region26: #{tpu_custom_call.1} parent=11 // pred_check_branch
          %558 = sbr.rel (%p556) target = $region28
        $region27: #{tpu_custom_call.1} parent=11 // pred_region
          _
        $region28: #{tpu_custom_call.1} parent=11 // pred_fallthru
          _
        // Predicated region
        $region29: #{tpu_custom_call.1} parent=11 // pred_check
          %p559 = pneg %p289
        $region30: #{tpu_custom_call.1} parent=11 // pred_check_branch
          %561 = sbr.rel (%p559) target = $region32
        $region31: #{tpu_custom_call.1} parent=11 // pred_region
          _
        $region32: #{tpu_custom_call.1} parent=11 // pred_fallthru
          _
        // Predicated region
        $region33: #{tpu_custom_call.1} parent=11 // pred_check
          %p562 = pneg %p310
        $region34: #{tpu_custom_call.1} parent=11 // pred_check_branch
          %564 = sbr.rel (%p562) target = $region36
        $region35: #{tpu_custom_call.1} parent=11 // pred_region
          _
        $region36: #{tpu_custom_call.1} parent=11 // pred_fallthru
          _
        // Predicated region
        $region37: #{tpu_custom_call.1} parent=11 // pred_check
          %p565 = pneg %p331
        $region38: #{tpu_custom_call.1} parent=11 // pred_check_branch
          %567 = sbr.rel (%p565) target = $region40
        $region39: #{tpu_custom_call.1} parent=11 // pred_region
          _
        $region40: #{tpu_custom_call.1} parent=11 // pred_fallthru
          _
        // Predicated region
        $region41: #{tpu_custom_call.1} parent=11 // pred_check
          %p568 = pneg %p352
        $region42: #{tpu_custom_call.1} parent=11 // pred_check_branch
          %570 = sbr.rel (%p568) target = $region44
        $region43: #{tpu_custom_call.1} parent=11 // pred_region
          _
        $region44: #{tpu_custom_call.1} parent=11 // pred_fallthru
          _
        // Predicated region
        $region45: #{tpu_custom_call.1} parent=11 // pred_check
          %p571 = pneg %p373
        $region46: #{tpu_custom_call.1} parent=11 // pred_check_branch
          %573 = sbr.rel (%p571) target = $region48
        $region47: #{tpu_custom_call.1} parent=11 // pred_region
          _
        $region48: #{tpu_custom_call.1} parent=11 // pred_fallthru
          _
        // Predicated region
        $region49: #{tpu_custom_call.1} parent=11 // pred_check
          %p574 = pneg %p394
        $region50: #{tpu_custom_call.1} parent=11 // pred_check_branch
          %576 = sbr.rel (%p574) target = $region52
        $region51: #{tpu_custom_call.1} parent=11 // pred_region
          _
        $region52: #{tpu_custom_call.1} parent=11 // pred_fallthru
          _
        // Predicated region
        $region53: #{tpu_custom_call.1} parent=11 // pred_check
          %p577 = pneg %p415
        $region54: #{tpu_custom_call.1} parent=11 // pred_check_branch
          %579 = sbr.rel (%p577) target = $region56
        $region55: #{tpu_custom_call.1} parent=11 // pred_region
          _
        $region56: #{tpu_custom_call.1} parent=11 // pred_fallthru
          _
        // Predicated region
        $region57: #{tpu_custom_call.1} parent=11 // pred_check
          %p580 = pneg %p436
        $region58: #{tpu_custom_call.1} parent=11 // pred_check_branch
          %582 = sbr.rel (%p580) target = $region60
        $region59: #{tpu_custom_call.1} parent=11 // pred_region
          _
        $region60: #{tpu_custom_call.1} parent=11 // pred_fallthru
          _
        // Predicated region
        $region61: #{tpu_custom_call.1} parent=11 // pred_check
          %p583 = pneg %p457
        $region62: #{tpu_custom_call.1} parent=11 // pred_check_branch
          %585 = sbr.rel (%p583) target = $region64
        $region63: #{tpu_custom_call.1} parent=11 // pred_region
          _
        $region64: #{tpu_custom_call.1} parent=11 // pred_fallthru
          _
        // Predicated region
        $region65: #{tpu_custom_call.1} parent=11 // pred_check
          %p586 = pneg %p478
        $region66: #{tpu_custom_call.1} parent=11 // pred_check_branch
          %588 = sbr.rel (%p586) target = $region68
        $region67: #{tpu_custom_call.1} parent=11 // pred_region
          _
        $region68: #{tpu_custom_call.1} parent=11 // pred_fallthru
          _
      $region12: #{tpu_custom_call.1} parent=5 // pred_fallthru
        _
      %p589 = scmp.lt.s32.totalorder %s36, 4
      // Predicated region
      $region69: #{tpu_custom_call.1} parent=5 // pred_check
        %p590 = pneg %p589
      $region70: #{tpu_custom_call.1} parent=5 // pred_check_branch
        %592 = sbr.rel (%p590) target = $region72
      $region71: #{tpu_custom_call.1} parent=5 // pred_region
        // Predicated region
        $region73: #{tpu_custom_call.1} parent=71 // pred_check
          %p593 = pneg %p68
        $region74: #{tpu_custom_call.1} parent=71 // pred_check_branch
          %595 = sbr.rel (%p593) target = $region76
        $region75: #{tpu_custom_call.1} parent=71 // pred_region
          %p596 = scmp.lt.s32.totalorder %s43, 1
          %s597 = scalar_select %p596, %s43, 1
          %s598 = smul.addr %s597, 2
          %s599 = smul.addr %s598, 8
          %s600 = scalar_lea.vmem %s0, %s599
        $region76: #{tpu_custom_call.1} parent=71 // pred_fallthru
          _
        // Predicated region
        $region77: #{tpu_custom_call.1} parent=71 // pred_check
          %p601 = pneg %p96
        $region78: #{tpu_custom_call.1} parent=71 // pred_check_branch
          %603 = sbr.rel (%p601) target = $region80
        $region79: #{tpu_custom_call.1} parent=71 // pred_region
          %p604 = scmp.lt.s32.totalorder %s43, 1
          %s605 = scalar_select %p604, %s43, 1
          %p606 = scmp.lt.s32.totalorder %s44, 1
          %s607 = scalar_select %p606, %s44, 1
          %s608 = smul.addr %s605, 2
          %s609 = sadd.s32 %s607, %s608
          %s610 = smul.addr %s609, 8
          %s611 = scalar_lea.vmem %s1, %s610
        $region80: #{tpu_custom_call.1} parent=71 // pred_fallthru
          _
        // Predicated region
        $region81: #{tpu_custom_call.1} parent=71 // pred_check
          %p612 = pneg %p122
        $region82: #{tpu_custom_call.1} parent=71 // pred_check_branch
          %614 = sbr.rel (%p612) target = $region84
        $region83: #{tpu_custom_call.1} parent=71 // pred_region
          %p615 = scmp.lt.s32.totalorder %s43, 1
          %s616 = scalar_select %p615, %s43, 1
          %s617 = smul.addr %s616, 2
          %s618 = smul.addr %s617, 8
          %s619 = scalar_lea.vmem %s2, %s618
        $region84: #{tpu_custom_call.1} parent=71 // pred_fallthru
          _
        // Predicated region
        $region85: #{tpu_custom_call.1} parent=71 // pred_check
          %p620 = pneg %p150
        $region86: #{tpu_custom_call.1} parent=71 // pred_check_branch
          %622 = sbr.rel (%p620) target = $region88
        $region87: #{tpu_custom_call.1} parent=71 // pred_region
          %p623 = scmp.lt.s32.totalorder %s43, 1
          %s624 = scalar_select %p623, %s43, 1
          %p625 = scmp.lt.s32.totalorder %s44, 1
          %s626 = scalar_select %p625, %s44, 1
          %s627 = smul.addr %s624, 2
          %s628 = sadd.s32 %s626, %s627
          %s629 = smul.addr %s628, 8
          %s630 = scalar_lea.vmem %s3, %s629
        $region88: #{tpu_custom_call.1} parent=71 // pred_fallthru
          _
        // Predicated region
        $region89: #{tpu_custom_call.1} parent=71 // pred_check
          %p631 = pneg %p178
        $region90: #{tpu_custom_call.1} parent=71 // pred_check_branch
          %633 = sbr.rel (%p631) target = $region92
        $region91: #{tpu_custom_call.1} parent=71 // pred_region
          %s634 = sand.u32 %s168, 1
          %s635 = scalar_lea.sflag [#allocation4], %s634
          %s636 = sand.u32 %s168, 1
          %s637 = smul.addr %s636, 64
          %s638 = scalar_lea.vmem [#allocation3], %s637
          %640 = vsyncadd %s635, 0
          %s641 = smul.addr %s43, 32
          %s642 = sadd.s32 %s44, %s641
          %s643 = smul.addr %s642, 4
          %s644 = scalar_lea.hbm %s4, %s643
          %s645 = sshll.u32 %s644, 4
          %s646 = int_to_ptr.hbm [resolvable:$true] %s645
          %s647 = sshll.u32 %s638, 4
          %s648 = int_to_ptr.vmem [resolvable:$true] %s647
          %653 = dma.hbm_to_vmem [thread:$0]  %s646, 1024, %s648, %s635, 128, 64, 4
        $region92: #{tpu_custom_call.1} parent=71 // pred_fallthru
          _
      $region72: #{tpu_custom_call.1} parent=5 // pred_fallthru
        _
      %p654 = scmp.le.s32.totalorder 1, %s36
      %p655 = scmp.lt.s32.totalorder %s36, 5
      %p656 = pnand %p654, %p655
      %p657 = pneg %p656
      // Predicated region
      $region93: #{tpu_custom_call.1} parent=5 // pred_check
        _
      $region94: #{tpu_custom_call.1} parent=5 // pred_check_branch
        %659 = sbr.rel (%p656) target = $region96
      $region95: #{tpu_custom_call.1} parent=5 // pred_region
        %s660 = ssub.s32 %s36, 1
        %s661 = sand.u32 %s171, 1
        %s662 = scalar_lea.sflag [#allocation4], %s661
        %s663 = sand.u32 %s171, 1
        %s664 = smul.addr %s663, 64
        %s665 = scalar_lea.vmem [#allocation3], %s664
        // Predicated region
        $region97: #{tpu_custom_call.1} parent=95 // pred_check
          %p666 = pneg %p184
        $region98: #{tpu_custom_call.1} parent=95 // pred_check_branch
          %668 = sbr.rel (%p666) target = $region100
        $region99: #{tpu_custom_call.1} parent=95 // pred_region
          %670 = dma.done %s662, 1024
        $region100: #{tpu_custom_call.1} parent=95 // pred_fallthru
          _
        %p671 = scmp.lt.s32.totalorder %s45, 1
        %s672 = scalar_select %p671, %s45, 1
        %s673 = smul.addr %s672, 2
        %s674 = smul.addr %s673, 8
        %s675 = scalar_lea.vmem %s0, %s674
        %p676 = pneg %p74
        %p677 = pneg %p71
        %p678 = scmp.lt.s32.totalorder %s45, 1
        %s679 = scalar_select %p678, %s45, 1
        %p680 = scmp.lt.s32.totalorder %s46, 1
        %s681 = scalar_select %p680, %s46, 1
        %s682 = smul.addr %s679, 2
        %s683 = sadd.s32 %s681, %s682
        %s684 = smul.addr %s683, 8
        %s685 = scalar_lea.vmem %s1, %s684
        %p686 = pneg %p102
        %p687 = pneg %p99
        %p688 = scmp.lt.s32.totalorder %s45, 1
        %s689 = scalar_select %p688, %s45, 1
        %s690 = smul.addr %s689, 2
        %s691 = smul.addr %s690, 8
        %s692 = scalar_lea.vmem %s2, %s691
        %p693 = pneg %p128
        %p694 = pneg %p125
        %p695 = scmp.lt.s32.totalorder %s45, 1
        %s696 = scalar_select %p695, %s45, 1
        %p697 = scmp.lt.s32.totalorder %s46, 1
        %s698 = scalar_select %p697, %s46, 1
        %s699 = smul.addr %s696, 2
        %s700 = sadd.s32 %s698, %s699
        %s701 = smul.addr %s700, 8
        %s702 = scalar_lea.vmem %s3, %s701
        %p703 = pneg %p156
        %p704 = pneg %p153
        %s705 = sand.u32 %s171, 1
        %s706 = scalar_lea.sflag [#allocation4], %s705
        %s707 = sand.u32 %s171, 1
        %s708 = smul.addr %s707, 64
        %s709 = scalar_lea.vmem [#allocation3], %s708
        %p710 = pneg %p184
        %p711 = pneg %p181
        %p712 = pneg %p205
        %p713 = pneg %p202
        %p714 = pneg %p226
        %p715 = pneg %p223
        %p716 = pneg %p247
        %p717 = pneg %p244
        %p718 = pneg %p268
        %p719 = pneg %p265
        %p720 = pneg %p289
        %p721 = pneg %p286
        %p722 = pneg %p310
        %p723 = pneg %p307
        %p724 = pneg %p331
        %p725 = pneg %p328
        %p726 = pneg %p352
        %p727 = pneg %p349
        %p728 = pneg %p373
        %p729 = pneg %p370
        %p730 = pneg %p394
        %p731 = pneg %p391
        %p732 = pneg %p415
        %p733 = pneg %p412
        %p734 = pneg %p436
        %p735 = pneg %p433
        %p736 = pneg %p457
        %p737 = pneg %p454
        %p738 = pneg %p478
        %p739 = pneg %p475
        %p740 = pneg %p504
        %p741 = pneg %p501
        %s742 = sand.u32 %s491, 1
        %s743 = scalar_lea.sflag [#allocation5], %s742
        %s744 = sand.u32 %s491, 1
        %s745 = smul.addr %s744, 16
        %s746 = scalar_lea.vmem [#allocation6], %s745
        %p747 = pneg %p532
        %p748 = pneg %p529
        %s749 = sand.u32 %s519, 1
        %s750 = scalar_lea.sflag [#allocation8], %s749
        %s751 = sand.u32 %s519, 1
        %s752 = smul.addr %s751, 64
        %s753 = scalar_lea.vmem [#allocation7], %s752
        %p754 = scmp.lt.s32.totalorder %s45, 1
        %s755 = scalar_select %p754, %s45, 1
        %s756 = smul.addr %s755, 2
        %s757 = smul.addr %s756, 8
        %s758 = scalar_lea.vmem %s0, %s757
        %p759 = scmp.lt.s32.totalorder %s45, 1
        %s760 = scalar_select %p759, %s45, 1
        %p761 = scmp.lt.s32.totalorder %s46, 1
        %s762 = scalar_select %p761, %s46, 1
        %s763 = smul.addr %s760, 2
        %s764 = sadd.s32 %s762, %s763
        %s765 = smul.addr %s764, 8
        %s766 = scalar_lea.vmem %s1, %s765
        %p767 = scmp.lt.s32.totalorder %s45, 1
        %s768 = scalar_select %p767, %s45, 1
        %s769 = smul.addr %s768, 2
        %s770 = smul.addr %s769, 8
        %s771 = scalar_lea.vmem %s2, %s770
        %p772 = scmp.lt.s32.totalorder %s45, 1
        %s773 = scalar_select %p772, %s45, 1
        %p774 = scmp.lt.s32.totalorder %s46, 1
        %s775 = scalar_select %p774, %s46, 1
        %s776 = smul.addr %s773, 2
        %s777 = sadd.s32 %s775, %s776
        %s778 = smul.addr %s777, 8
        %s779 = scalar_lea.vmem %s3, %s778
        %v781 = vld [vmem:[%s771] sm:$0xff]
        %v782 = vld [vmem:[%s771 + $0x8] sm:$0xff]
        %v783 = vld [vmem:[%s758] sm:$0xff]
        %v784 = vld [vmem:[%s758 + $0x8] sm:$0xff]
        %v785 = vld [vmem:[%s5] sm:$0x1]
        %v786 = vld [vmem:[%s6] sm:$0x1]
        %vm787 = vcmask 261120
        %v788 = vsel %vm787, %v783, 0.0
        %789 = vadd.xlane.f32.xlu0 %v788
        %v790 = vpop.xlane.xlu0 %789
        %v791 = vsel %vm787, %v784, 0.0
        %792 = vadd.xlane.f32.xlu0 %v791
        %v793 = vpop.xlane.xlu0 %792
        %v794 = vrcp.pop 32.0
        %v795 = vmul.f32 32.0, %v794
        %v796 = vsub.f32 1.0, %v795
        %v797 = vmul.f32 %v794, %v796
        %v798 = vadd.f32 %v794, %v797
        %vm799 = vweird.f32 %v794
        %v800 = vsel %vm799, %v794, %v798
        %v801 = vmul.f32 %v790, %v800
        %v802 = vmul.f32 %v793, %v800
        %v803 = vsub.f32 %v783, %v801
        %v804 = vsub.f32 %v784, %v802
        %v805 = vmul.f32 %v803, %v803
        %v806 = vmul.f32 %v804, %v804
        %v807 = vsel %vm787, %v805, 0.0
        %808 = vadd.xlane.f32.xlu0 %v807
        %v809 = vpop.xlane.xlu0 %808
        %v810 = vsel %vm787, %v806, 0.0
        %811 = vadd.xlane.f32.xlu0 %v810
        %v812 = vpop.xlane.xlu0 %811
        %v813 = vmul.f32 %v809, %v800
        %v814 = vmul.f32 %v812, %v800
        %v815 = vadd.f32 %v813, 1e-05
        %v816 = vadd.f32 %v814, 1e-05
        %v817 = vrsqrt.pop %v815
        %v818 = vmul.f32 %v817, %v815
        %v819 = vmul.f32 %v818, %v817
        %v820 = vmul.f32 0.5, %v819
        %v821 = vsub.f32 1.5, %v820
        %v822 = vmul.f32 %v817, %v821
        %vm823 = vweird.f32 %v815
        %vm824 = vweird.f32 %v817
        %vm825 = vmor %vm823, %vm824
        %v826 = vsel %vm825, %v817, %v822
        %v827 = vrsqrt.pop %v816
        %v828 = vmul.f32 %v827, %v816
        %v829 = vmul.f32 %v828, %v827
        %v830 = vmul.f32 0.5, %v829
        %v831 = vsub.f32 1.5, %v830
        %v832 = vmul.f32 %v827, %v831
        %vm833 = vweird.f32 %v816
        %vm834 = vweird.f32 %v827
        %vm835 = vmor %vm833, %vm834
        %v836 = vsel %vm835, %v827, %v832
        %v837 = vmul.f32 %v803, %v826
        %v838 = vmul.f32 %v804, %v836
        %v840 = vperm.slane %v785, 0
        %v842 = vmul.f32 %v837, %v840
        %v843 = vmul.f32 %v838, %v840
        %v845 = vperm.slane %v786, 0
        %v847 = vadd.f32 %v842, %v845
        %v848 = vadd.f32 %v843, %v845
        %v849 = vld [vmem:[%s7] sm:$0xff]
        %v850 = vld [vmem:[%s7 + $0x8] sm:$0xff]
        %v851 = vld [vmem:[%s7 + $0x10] sm:$0xff]
        %v852 = vld [vmem:[%s7 + $0x18] sm:$0xff]
        %v853 = vld [vmem:[%s8] sm:$0x3]
        %v854 = vpack.c.bf16 %v848, %v847
        %v856 = vperm.slane %v853, 0
        %v862 = vunpack.c.l.b16 %v849
        %v863 = vunpack.c.l.b16 %v850
        %v864 = vunpack.c.l.b16 %v851
        %v865 = vunpack.c.l.b16 %v852
        %v866 = vpack.c.b16 %v863, %v862
        %v867 = vpack.c.b16 %v865, %v864
        %v871 = vsel %vm787, %v854, 0
        %873 = vmatpush.bf16.msra.mxu0 0
        %874 = vmatpush.bf16.msra.mxu0 0
        %875 = vmatpush.bf16.msra.mxu0 0
        %876 = vmatpush.bf16.msra.mxu0 0
        %877 = vmatpush.bf16.msra.mxu0 0
        %878 = vmatpush.bf16.msra.mxu0 0
        %879 = vmatpush.bf16.msra.mxu0 %v867
        %880 = vmatpush.bf16.msra.mxu0 %v866
        %881 = vmatmul.bf16.gmra.mxu0 %v871
        %v882 = vpop.f32.mrf.mxu0
        %v883 = vadd.f32 %v856, %v882
        %v884 = vpop.f32.mrf.mxu0
        %v885 = vadd.f32 %v856, %v884
        %886 = vdwg.mxu0
        %888 = vset.pattern.permute.xlu0 0
        %889 = vperm.xlu0 %888, %v781
        %v890 = vpop.permute.xlu0 %889
        %893 = vset.pattern.permute.xlu0 0
        %894 = vperm.xlu0 %893, %v782
        %v895 = vpop.permute.xlu0 %894
        %v897 = vmul.f32 %v883, %v890
        %v898 = vmul.f32 %v885, %v895
        %v901 = vrot.slane %v897, 1
        %v902 = vrot.slane %v897, 2
        %v903 = vrot.slane %v897, 3
        %v904 = vrot.slane %v897, 4
        %v905 = vrot.slane %v897, 5
        %v906 = vrot.slane %v897, 6
        %v907 = vrot.slane %v897, 7
        %v908 = vrot.slane %v898, 1
        %v909 = vrot.slane %v898, 2
        %v910 = vrot.slane %v898, 3
        %v911 = vrot.slane %v898, 4
        %v912 = vrot.slane %v898, 5
        %v913 = vrot.slane %v898, 6
        %v914 = vrot.slane %v898, 7
        %v917 = vrot.slane %v883, 1
        %v918 = vrot.slane %v883, 2
        %v919 = vrot.slane %v883, 3
        %v920 = vrot.slane %v883, 4
        %v921 = vrot.slane %v883, 5
        %v922 = vrot.slane %v883, 6
        %v923 = vrot.slane %v883, 7
        %v924 = vrot.slane %v885, 1
        %v925 = vrot.slane %v885, 2
        %v926 = vrot.slane %v885, 3
        %v927 = vrot.slane %v885, 4
        %v928 = vrot.slane %v885, 5
        %v929 = vrot.slane %v885, 6
        %v930 = vrot.slane %v885, 7
        %v931 = vld [vmem:[%s779] sm:$0xff]
        %v932 = vld [vmem:[%s766] sm:$0xff]
        %v933 = vsel %vm787, %v932, 0.0
        %934 = vadd.xlane.f32.xlu0 %v933
        %v935 = vpop.xlane.xlu0 %934
        %v936 = vmul.f32 %v935, %v800
        %v937 = vsub.f32 %v932, %v936
        %v938 = vmul.f32 %v937, %v937
        %v939 = vsel %vm787, %v938, 0.0
        %940 = vadd.xlane.f32.xlu0 %v939
        %v941 = vpop.xlane.xlu0 %940
        %v942 = vmul.f32 %v941, %v800
        %v943 = vadd.f32 %v942, 1e-05
        %v944 = vrsqrt.pop %v943
        %v945 = vmul.f32 %v944, %v943
        %v946 = vmul.f32 %v945, %v944
        %v947 = vmul.f32 0.5, %v946
        %v948 = vsub.f32 1.5, %v947
        %v949 = vmul.f32 %v944, %v948
        %vm950 = vweird.f32 %v943
        %vm951 = vweird.f32 %v944
        %vm952 = vmor %vm950, %vm951
        %v953 = vsel %vm952, %v944, %v949
        %v954 = vmul.f32 %v937, %v953
        %v955 = vmul.f32 %v954, %v840
        %v956 = vadd.f32 %v955, %v845
        %v957 = vpack.c.bf16 %v956, %v956
        %v958 = vperm.slane %v853, 1
        %v960 = vunpack.c.h.b16 %v849
        %v961 = vunpack.c.h.b16 %v850
        %v962 = vunpack.c.h.b16 %v851
        %v963 = vunpack.c.h.b16 %v852
        %v964 = vpack.c.b16 %v961, %v960
        %v965 = vpack.c.b16 %v963, %v962
        %v969 = vsel %vm787, %v957, 0
        %971 = vmatpush.bf16.msra.mxu0 0
        %972 = vmatpush.bf16.msra.mxu0 0
        %973 = vmatpush.bf16.msra.mxu0 0
        %974 = vmatpush.bf16.msra.mxu0 0
        %975 = vmatpush.bf16.msra.mxu0 0
        %976 = vmatpush.bf16.msra.mxu0 0
        %977 = vmatpush.bf16.msra.mxu0 %v867
        %978 = vmatpush.bf16.msra.mxu0 %v866
        %979 = vmatmul.bf16.gmra.mxu0 %v969
        %v980 = vpop.f32.mrf.mxu0
        %v981 = vadd.f32 %v856, %v980
        %v982 = vpop.f32.mrf.mxu0
        %983 = vdwg.mxu0
        %984 = vmatpush.bf16.msra.mxu0 0
        %985 = vmatpush.bf16.msra.mxu0 0
        %986 = vmatpush.bf16.msra.mxu0 0
        %987 = vmatpush.bf16.msra.mxu0 0
        %988 = vmatpush.bf16.msra.mxu0 0
        %989 = vmatpush.bf16.msra.mxu0 0
        %990 = vmatpush.bf16.msra.mxu0 %v965
        %991 = vmatpush.bf16.msra.mxu0 %v964
        %992 = vmatmul.bf16.gmra.mxu0 %v969
        %v993 = vpop.f32.mrf.mxu0
        %v994 = vadd.f32 %v958, %v993
        %v995 = vpop.f32.mrf.mxu0
        %996 = vdwg.mxu0
        %998 = vset.pattern.permute.xlu0 0
        %999 = vperm.xlu0 %998, %v931
        %v1000 = vpop.permute.xlu0 %999
        %v1002 = vmul.f32 %v981, %v1000
        %v1003 = vld [vmem:[%s665] sm:$0xf]
        %v1004 = vld [vmem:[%s665 + $0x4] sm:$0xf]
        %v1005 = vld [vmem:[%s665 + $0x8] sm:$0xf]
        %v1006 = vld [vmem:[%s665 + $0xc] sm:$0xf]
        %v1007 = vld [vmem:[%s665 + $0x10] sm:$0xf]
        %v1008 = vld [vmem:[%s665 + $0x14] sm:$0xf]
        %v1009 = vld [vmem:[%s665 + $0x18] sm:$0xf]
        %v1010 = vld [vmem:[%s665 + $0x1c] sm:$0xf]
        %v1011 = vld [vmem:[%s665 + $0x20] sm:$0xf]
        %v1012 = vld [vmem:[%s665 + $0x24] sm:$0xf]
        %v1013 = vld [vmem:[%s665 + $0x28] sm:$0xf]
        %v1014 = vld [vmem:[%s665 + $0x2c] sm:$0xf]
        %v1015 = vld [vmem:[%s665 + $0x30] sm:$0xf]
        %v1016 = vld [vmem:[%s665 + $0x34] sm:$0xf]
        %v1017 = vld [vmem:[%s665 + $0x38] sm:$0xf]
        %v1018 = vld [vmem:[%s665 + $0x3c] sm:$0xf]
        %v1019 = vunpack.c.l.bf16 %v1003
        %v1020 = vunpack.c.l.bf16 %v1004
        %v1021 = vunpack.c.l.bf16 %v1005
        %v1022 = vunpack.c.l.bf16 %v1006
        %v1023 = vunpack.c.l.bf16 %v1007
        %v1024 = vunpack.c.l.bf16 %v1008
        %v1025 = vunpack.c.l.bf16 %v1009
        %v1026 = vunpack.c.l.bf16 %v1010
        %v1027 = vunpack.c.l.bf16 %v1011
        %v1028 = vunpack.c.l.bf16 %v1012
        %v1029 = vunpack.c.l.bf16 %v1013
        %v1030 = vunpack.c.l.bf16 %v1014
        %v1031 = vunpack.c.l.bf16 %v1015
        %v1032 = vunpack.c.l.bf16 %v1016
        %v1033 = vunpack.c.l.bf16 %v1017
        %v1034 = vunpack.c.l.bf16 %v1018
        %s1035 = scalar_lea.vmem %s5, 1
        %v1036 = vld [vmem:[%s1035] sm:$0x1]
        %s1037 = scalar_lea.vmem %s6, 1
        %v1038 = vld [vmem:[%s1037] sm:$0x1]
        %v1039 = vsel %vm787, %v1019, 0.0
        %1040 = vadd.xlane.f32.xlu0 %v1039
        %v1041 = vpop.xlane.xlu0 %1040
        %v1042 = vsel %vm787, %v1020, 0.0
        %1043 = vadd.xlane.f32.xlu0 %v1042
        %v1044 = vpop.xlane.xlu0 %1043
        %v1045 = vsel %vm787, %v1021, 0.0
        %1046 = vadd.xlane.f32.xlu0 %v1045
        %v1047 = vpop.xlane.xlu0 %1046
        %v1048 = vsel %vm787, %v1022, 0.0
        %1049 = vadd.xlane.f32.xlu0 %v1048
        %v1050 = vpop.xlane.xlu0 %1049
        %v1051 = vsel %vm787, %v1023, 0.0
        %1052 = vadd.xlane.f32.xlu0 %v1051
        %v1053 = vpop.xlane.xlu0 %1052
        %v1054 = vsel %vm787, %v1024, 0.0
        %1055 = vadd.xlane.f32.xlu0 %v1054
        %v1056 = vpop.xlane.xlu0 %1055
        %v1057 = vsel %vm787, %v1025, 0.0
        %1058 = vadd.xlane.f32.xlu0 %v1057
        %v1059 = vpop.xlane.xlu0 %1058
        %v1060 = vsel %vm787, %v1026, 0.0
        %1061 = vadd.xlane.f32.xlu0 %v1060
        %v1062 = vpop.xlane.xlu0 %1061
        %v1063 = vsel %vm787, %v1027, 0.0
        %1064 = vadd.xlane.f32.xlu0 %v1063
        %v1065 = vpop.xlane.xlu0 %1064
        %v1066 = vsel %vm787, %v1028, 0.0
        %1067 = vadd.xlane.f32.xlu0 %v1066
        %v1068 = vpop.xlane.xlu0 %1067
        %v1069 = vsel %vm787, %v1029, 0.0
        %1070 = vadd.xlane.f32.xlu0 %v1069
        %v1071 = vpop.xlane.xlu0 %1070
        %v1072 = vsel %vm787, %v1030, 0.0
        %1073 = vadd.xlane.f32.xlu0 %v1072
        %v1074 = vpop.xlane.xlu0 %1073
        %v1075 = vsel %vm787, %v1031, 0.0
        %1076 = vadd.xlane.f32.xlu0 %v1075
        %v1077 = vpop.xlane.xlu0 %1076
        %v1078 = vsel %vm787, %v1032, 0.0
        %1079 = vadd.xlane.f32.xlu0 %v1078
        %v1080 = vpop.xlane.xlu0 %1079
        %v1081 = vsel %vm787, %v1033, 0.0
        %1082 = vadd.xlane.f32.xlu0 %v1081
        %v1083 = vpop.xlane.xlu0 %1082
        %v1084 = vsel %vm787, %v1034, 0.0
        %1085 = vadd.xlane.f32.xlu0 %v1084
        %v1086 = vpop.xlane.xlu0 %1085
        %v1087 = vmul.f32 %v1041, %v800
        %v1088 = vmul.f32 %v1044, %v800
        %v1089 = vmul.f32 %v1047, %v800
        %v1090 = vmul.f32 %v1050, %v800
        %v1091 = vmul.f32 %v1053, %v800
        %v1092 = vmul.f32 %v1056, %v800
        %v1093 = vmul.f32 %v1059, %v800
        %v1094 = vmul.f32 %v1062, %v800
        %v1095 = vmul.f32 %v1065, %v800
        %v1096 = vmul.f32 %v1068, %v800
        %v1097 = vmul.f32 %v1071, %v800
        %v1098 = vmul.f32 %v1074, %v800
        %v1099 = vmul.f32 %v1077, %v800
        %v1100 = vmul.f32 %v1080, %v800
        %v1101 = vmul.f32 %v1083, %v800
        %v1102 = vmul.f32 %v1086, %v800
        %v1103 = vsub.f32 %v1019, %v1087
        %v1104 = vsub.f32 %v1020, %v1088
        %v1105 = vsub.f32 %v1021, %v1089
        %v1106 = vsub.f32 %v1022, %v1090
        %v1107 = vsub.f32 %v1023, %v1091
        %v1108 = vsub.f32 %v1024, %v1092
        %v1109 = vsub.f32 %v1025, %v1093
        %v1110 = vsub.f32 %v1026, %v1094
        %v1111 = vsub.f32 %v1027, %v1095
        %v1112 = vsub.f32 %v1028, %v1096
        %v1113 = vsub.f32 %v1029, %v1097
        %v1114 = vsub.f32 %v1030, %v1098
        %v1115 = vsub.f32 %v1031, %v1099
        %v1116 = vsub.f32 %v1032, %v1100
        %v1117 = vsub.f32 %v1033, %v1101
        %v1118 = vsub.f32 %v1034, %v1102
        %v1119 = vmul.f32 %v1103, %v1103
        %v1120 = vmul.f32 %v1104, %v1104
        %v1121 = vmul.f32 %v1105, %v1105
        %v1122 = vmul.f32 %v1106, %v1106
        %v1123 = vmul.f32 %v1107, %v1107
        %v1124 = vmul.f32 %v1108, %v1108
        %v1125 = vmul.f32 %v1109, %v1109
        %v1126 = vmul.f32 %v1110, %v1110
        %v1127 = vmul.f32 %v1111, %v1111
        %v1128 = vmul.f32 %v1112, %v1112
        %v1129 = vmul.f32 %v1113, %v1113
        %v1130 = vmul.f32 %v1114, %v1114
        %v1131 = vmul.f32 %v1115, %v1115
        %v1132 = vmul.f32 %v1116, %v1116
        %v1133 = vmul.f32 %v1117, %v1117
        %v1134 = vmul.f32 %v1118, %v1118
        %v1135 = vsel %vm787, %v1119, 0.0
        %1136 = vadd.xlane.f32.xlu0 %v1135
        %v1137 = vpop.xlane.xlu0 %1136
        %v1138 = vsel %vm787, %v1120, 0.0
        %1139 = vadd.xlane.f32.xlu0 %v1138
        %v1140 = vpop.xlane.xlu0 %1139
        %v1141 = vsel %vm787, %v1121, 0.0
        %1142 = vadd.xlane.f32.xlu0 %v1141
        %v1143 = vpop.xlane.xlu0 %1142
        %v1144 = vsel %vm787, %v1122, 0.0
        %1145 = vadd.xlane.f32.xlu0 %v1144
        %v1146 = vpop.xlane.xlu0 %1145
        %v1147 = vsel %vm787, %v1123, 0.0
        %1148 = vadd.xlane.f32.xlu0 %v1147
        %v1149 = vpop.xlane.xlu0 %1148
        %v1150 = vsel %vm787, %v1124, 0.0
        %1151 = vadd.xlane.f32.xlu0 %v1150
        %v1152 = vpop.xlane.xlu0 %1151
        %v1153 = vsel %vm787, %v1125, 0.0
        %1154 = vadd.xlane.f32.xlu0 %v1153
        %v1155 = vpop.xlane.xlu0 %1154
        %v1156 = vsel %vm787, %v1126, 0.0
        %1157 = vadd.xlane.f32.xlu0 %v1156
        %v1158 = vpop.xlane.xlu0 %1157
        %v1159 = vsel %vm787, %v1127, 0.0
        %1160 = vadd.xlane.f32.xlu0 %v1159
        %v1161 = vpop.xlane.xlu0 %1160
        %v1162 = vsel %vm787, %v1128, 0.0
        %1163 = vadd.xlane.f32.xlu0 %v1162
        %v1164 = vpop.xlane.xlu0 %1163
        %v1165 = vsel %vm787, %v1129, 0.0
        %1166 = vadd.xlane.f32.xlu0 %v1165
        %v1167 = vpop.xlane.xlu0 %1166
        %v1168 = vsel %vm787, %v1130, 0.0
        %1169 = vadd.xlane.f32.xlu0 %v1168
        %v1170 = vpop.xlane.xlu0 %1169
        %v1171 = vsel %vm787, %v1131, 0.0
        %1172 = vadd.xlane.f32.xlu0 %v1171
        %v1173 = vpop.xlane.xlu0 %1172
        %v1174 = vsel %vm787, %v1132, 0.0
        %1175 = vadd.xlane.f32.xlu0 %v1174
        %v1176 = vpop.xlane.xlu0 %1175
        %v1177 = vsel %vm787, %v1133, 0.0
        %1178 = vadd.xlane.f32.xlu0 %v1177
        %v1179 = vpop.xlane.xlu0 %1178
        %v1180 = vsel %vm787, %v1134, 0.0
        %1181 = vadd.xlane.f32.xlu0 %v1180
        %v1182 = vpop.xlane.xlu0 %1181
        %v1183 = vmul.f32 %v1137, %v800
        %v1184 = vmul.f32 %v1140, %v800
        %v1185 = vmul.f32 %v1143, %v800
        %v1186 = vmul.f32 %v1146, %v800
        %v1187 = vmul.f32 %v1149, %v800
        %v1188 = vmul.f32 %v1152, %v800
        %v1189 = vmul.f32 %v1155, %v800
        %v1190 = vmul.f32 %v1158, %v800
        %v1191 = vmul.f32 %v1161, %v800
        %v1192 = vmul.f32 %v1164, %v800
        %v1193 = vmul.f32 %v1167, %v800
        %v1194 = vmul.f32 %v1170, %v800
        %v1195 = vmul.f32 %v1173, %v800
        %v1196 = vmul.f32 %v1176, %v800
        %v1197 = vmul.f32 %v1179, %v800
        %v1198 = vmul.f32 %v1182, %v800
        %v1199 = vadd.f32 %v1183, 1e-05
        %v1200 = vadd.f32 %v1184, 1e-05
        %v1201 = vadd.f32 %v1185, 1e-05
        %v1202 = vadd.f32 %v1186, 1e-05
        %v1203 = vadd.f32 %v1187, 1e-05
        %v1204 = vadd.f32 %v1188, 1e-05
        %v1205 = vadd.f32 %v1189, 1e-05
        %v1206 = vadd.f32 %v1190, 1e-05
        %v1207 = vadd.f32 %v1191, 1e-05
        %v1208 = vadd.f32 %v1192, 1e-05
        %v1209 = vadd.f32 %v1193, 1e-05
        %v1210 = vadd.f32 %v1194, 1e-05
        %v1211 = vadd.f32 %v1195, 1e-05
        %v1212 = vadd.f32 %v1196, 1e-05
        %v1213 = vadd.f32 %v1197, 1e-05
        %v1214 = vadd.f32 %v1198, 1e-05
        %v1215 = vrsqrt.pop %v1199
        %v1216 = vmul.f32 %v1215, %v1199
        %v1217 = vmul.f32 %v1216, %v1215
        %v1218 = vmul.f32 0.5, %v1217
        %v1219 = vsub.f32 1.5, %v1218
        %v1220 = vmul.f32 %v1215, %v1219
        %vm1221 = vweird.f32 %v1199
        %vm1222 = vweird.f32 %v1215
        %vm1223 = vmor %vm1221, %vm1222
        %v1224 = vsel %vm1223, %v1215, %v1220
        %v1225 = vrsqrt.pop %v1200
        %v1226 = vmul.f32 %v1225, %v1200
        %v1227 = vmul.f32 %v1226, %v1225
        %v1228 = vmul.f32 0.5, %v1227
        %v1229 = vsub.f32 1.5, %v1228
        %v1230 = vmul.f32 %v1225, %v1229
        %vm1231 = vweird.f32 %v1200
        %vm1232 = vweird.f32 %v1225
        %vm1233 = vmor %vm1231, %vm1232
        %v1234 = vsel %vm1233, %v1225, %v1230
        %v1235 = vrsqrt.pop %v1201
        %v1236 = vmul.f32 %v1235, %v1201
        %v1237 = vmul.f32 %v1236, %v1235
        %v1238 = vmul.f32 0.5, %v1237
        %v1239 = vsub.f32 1.5, %v1238
        %v1240 = vmul.f32 %v1235, %v1239
        %vm1241 = vweird.f32 %v1201
        %vm1242 = vweird.f32 %v1235
        %vm1243 = vmor %vm1241, %vm1242
        %v1244 = vsel %vm1243, %v1235, %v1240
        %v1245 = vrsqrt.pop %v1202
        %v1246 = vmul.f32 %v1245, %v1202
        %v1247 = vmul.f32 %v1246, %v1245
        %v1248 = vmul.f32 0.5, %v1247
        %v1249 = vsub.f32 1.5, %v1248
        %v1250 = vmul.f32 %v1245, %v1249
        %vm1251 = vweird.f32 %v1202
        %vm1252 = vweird.f32 %v1245
        %vm1253 = vmor %vm1251, %vm1252
        %v1254 = vsel %vm1253, %v1245, %v1250
        %v1255 = vrsqrt.pop %v1203
        %v1256 = vmul.f32 %v1255, %v1203
        %v1257 = vmul.f32 %v1256, %v1255
        %v1258 = vmul.f32 0.5, %v1257
        %v1259 = vsub.f32 1.5, %v1258
        %v1260 = vmul.f32 %v1255, %v1259
        %vm1261 = vweird.f32 %v1203
        %vm1262 = vweird.f32 %v1255
        %vm1263 = vmor %vm1261, %vm1262
        %v1264 = vsel %vm1263, %v1255, %v1260
        %v1265 = vrsqrt.pop %v1204
        %v1266 = vmul.f32 %v1265, %v1204
        %v1267 = vmul.f32 %v1266, %v1265
        %v1268 = vmul.f32 0.5, %v1267
        %v1269 = vsub.f32 1.5, %v1268
        %v1270 = vmul.f32 %v1265, %v1269
        %vm1271 = vweird.f32 %v1204
        %vm1272 = vweird.f32 %v1265
        %vm1273 = vmor %vm1271, %vm1272
        %v1274 = vsel %vm1273, %v1265, %v1270
        %v1275 = vrsqrt.pop %v1205
        %v1276 = vmul.f32 %v1275, %v1205
        %v1277 = vmul.f32 %v1276, %v1275
        %v1278 = vmul.f32 0.5, %v1277
        %v1279 = vsub.f32 1.5, %v1278
        %v1280 = vmul.f32 %v1275, %v1279
        %vm1281 = vweird.f32 %v1205
        %vm1282 = vweird.f32 %v1275
        %vm1283 = vmor %vm1281, %vm1282
        %v1284 = vsel %vm1283, %v1275, %v1280
        %v1285 = vrsqrt.pop %v1206
        %v1286 = vmul.f32 %v1285, %v1206
        %v1287 = vmul.f32 %v1286, %v1285
        %v1288 = vmul.f32 0.5, %v1287
        %v1289 = vsub.f32 1.5, %v1288
        %v1290 = vmul.f32 %v1285, %v1289
        %vm1291 = vweird.f32 %v1206
        %vm1292 = vweird.f32 %v1285
        %vm1293 = vmor %vm1291, %vm1292
        %v1294 = vsel %vm1293, %v1285, %v1290
        %v1295 = vrsqrt.pop %v1207
        %v1296 = vmul.f32 %v1295, %v1207
        %v1297 = vmul.f32 %v1296, %v1295
        %v1298 = vmul.f32 0.5, %v1297
        %v1299 = vsub.f32 1.5, %v1298
        %v1300 = vmul.f32 %v1295, %v1299
        %vm1301 = vweird.f32 %v1207
        %vm1302 = vweird.f32 %v1295
        %vm1303 = vmor %vm1301, %vm1302
        %v1304 = vsel %vm1303, %v1295, %v1300
        %v1305 = vrsqrt.pop %v1208
        %v1306 = vmul.f32 %v1305, %v1208
        %v1307 = vmul.f32 %v1306, %v1305
        %v1308 = vmul.f32 0.5, %v1307
        %v1309 = vsub.f32 1.5, %v1308
        %v1310 = vmul.f32 %v1305, %v1309
        %vm1311 = vweird.f32 %v1208
        %vm1312 = vweird.f32 %v1305
        %vm1313 = vmor %vm1311, %vm1312
        %v1314 = vsel %vm1313, %v1305, %v1310
        %v1315 = vrsqrt.pop %v1209
        %v1316 = vmul.f32 %v1315, %v1209
        %v1317 = vmul.f32 %v1316, %v1315
        %v1318 = vmul.f32 0.5, %v1317
        %v1319 = vsub.f32 1.5, %v1318
        %v1320 = vmul.f32 %v1315, %v1319
        %vm1321 = vweird.f32 %v1209
        %vm1322 = vweird.f32 %v1315
        %vm1323 = vmor %vm1321, %vm1322
        %v1324 = vsel %vm1323, %v1315, %v1320
        %v1325 = vrsqrt.pop %v1210
        %v1326 = vmul.f32 %v1325, %v1210
        %v1327 = vmul.f32 %v1326, %v1325
        %v1328 = vmul.f32 0.5, %v1327
        %v1329 = vsub.f32 1.5, %v1328
        %v1330 = vmul.f32 %v1325, %v1329
        %vm1331 = vweird.f32 %v1210
        %vm1332 = vweird.f32 %v1325
        %vm1333 = vmor %vm1331, %vm1332
        %v1334 = vsel %vm1333, %v1325, %v1330
        %v1335 = vrsqrt.pop %v1211
        %v1336 = vmul.f32 %v1335, %v1211
        %v1337 = vmul.f32 %v1336, %v1335
        %v1338 = vmul.f32 0.5, %v1337
        %v1339 = vsub.f32 1.5, %v1338
        %v1340 = vmul.f32 %v1335, %v1339
        %vm1341 = vweird.f32 %v1211
        %vm1342 = vweird.f32 %v1335
        %vm1343 = vmor %vm1341, %vm1342
        %v1344 = vsel %vm1343, %v1335, %v1340
        %v1345 = vrsqrt.pop %v1212
        %v1346 = vmul.f32 %v1345, %v1212
        %v1347 = vmul.f32 %v1346, %v1345
        %v1348 = vmul.f32 0.5, %v1347
        %v1349 = vsub.f32 1.5, %v1348
        %v1350 = vmul.f32 %v1345, %v1349
        %vm1351 = vweird.f32 %v1212
        %vm1352 = vweird.f32 %v1345
        %vm1353 = vmor %vm1351, %vm1352
        %v1354 = vsel %vm1353, %v1345, %v1350
        %v1355 = vrsqrt.pop %v1213
        %v1356 = vmul.f32 %v1355, %v1213
        %v1357 = vmul.f32 %v1356, %v1355
        %v1358 = vmul.f32 0.5, %v1357
        %v1359 = vsub.f32 1.5, %v1358
        %v1360 = vmul.f32 %v1355, %v1359
        %vm1361 = vweird.f32 %v1213
        %vm1362 = vweird.f32 %v1355
        %vm1363 = vmor %vm1361, %vm1362
        %v1364 = vsel %vm1363, %v1355, %v1360
        %v1365 = vrsqrt.pop %v1214
        %v1366 = vmul.f32 %v1365, %v1214
        %v1367 = vmul.f32 %v1366, %v1365
        %v1368 = vmul.f32 0.5, %v1367
        %v1369 = vsub.f32 1.5, %v1368
        %v1370 = vmul.f32 %v1365, %v1369
        %vm1371 = vweird.f32 %v1214
        %vm1372 = vweird.f32 %v1365
        %vm1373 = vmor %vm1371, %vm1372
        %v1374 = vsel %vm1373, %v1365, %v1370
        %v1375 = vmul.f32 %v1103, %v1224
        %v1376 = vmul.f32 %v1104, %v1234
        %v1377 = vmul.f32 %v1105, %v1244
        %v1378 = vmul.f32 %v1106, %v1254
        %v1379 = vmul.f32 %v1107, %v1264
        %v1380 = vmul.f32 %v1108, %v1274
        %v1381 = vmul.f32 %v1109, %v1284
        %v1382 = vmul.f32 %v1110, %v1294
        %v1383 = vmul.f32 %v1111, %v1304
        %v1384 = vmul.f32 %v1112, %v1314
        %v1385 = vmul.f32 %v1113, %v1324
        %v1386 = vmul.f32 %v1114, %v1334
        %v1387 = vmul.f32 %v1115, %v1344
        %v1388 = vmul.f32 %v1116, %v1354
        %v1389 = vmul.f32 %v1117, %v1364
        %v1390 = vmul.f32 %v1118, %v1374
        %v1392 = vperm.slane %v1036, 0
        %v1394 = vmul.f32 %v1375, %v1392
        %v1395 = vmul.f32 %v1376, %v1392
        %v1396 = vmul.f32 %v1377, %v1392
        %v1397 = vmul.f32 %v1378, %v1392
        %v1398 = vmul.f32 %v1379, %v1392
        %v1399 = vmul.f32 %v1380, %v1392
        %v1400 = vmul.f32 %v1381, %v1392
        %v1401 = vmul.f32 %v1382, %v1392
        %v1402 = vmul.f32 %v1383, %v1392
        %v1403 = vmul.f32 %v1384, %v1392
        %v1404 = vmul.f32 %v1385, %v1392
        %v1405 = vmul.f32 %v1386, %v1392
        %v1406 = vmul.f32 %v1387, %v1392
        %v1407 = vmul.f32 %v1388, %v1392
        %v1408 = vmul.f32 %v1389, %v1392
        %v1409 = vmul.f32 %v1390, %v1392
        %v1411 = vperm.slane %v1038, 0
        %v1413 = vadd.f32 %v1394, %v1411
        %v1414 = vadd.f32 %v1395, %v1411
        %v1415 = vadd.f32 %v1396, %v1411
        %v1416 = vadd.f32 %v1397, %v1411
        %v1417 = vadd.f32 %v1398, %v1411
        %v1418 = vadd.f32 %v1399, %v1411
        %v1419 = vadd.f32 %v1400, %v1411
        %v1420 = vadd.f32 %v1401, %v1411
        %v1421 = vadd.f32 %v1402, %v1411
        %v1422 = vadd.f32 %v1403, %v1411
        %v1423 = vadd.f32 %v1404, %v1411
        %v1424 = vadd.f32 %v1405, %v1411
        %v1425 = vadd.f32 %v1406, %v1411
        %v1426 = vadd.f32 %v1407, %v1411
        %v1427 = vadd.f32 %v1408, %v1411
        %v1428 = vadd.f32 %v1409, %v1411
        %v1429 = vld [vmem:[%s9] sm:$0xf]
        %v1430 = vld [vmem:[%s9 + $0x4] sm:$0xf]
        %v1431 = vld [vmem:[%s9 + $0x8] sm:$0xf]
        %v1432 = vld [vmem:[%s9 + $0xc] sm:$0xf]
        %v1433 = vld [vmem:[%s10] sm:$0x1]
        %v1434 = vpack.c.bf16 %v1414, %v1413
        %v1435 = vpack.c.bf16 %v1416, %v1415
        %v1436 = vpack.c.bf16 %v1418, %v1417
        %v1437 = vpack.c.bf16 %v1420, %v1419
        %v1438 = vpack.c.bf16 %v1422, %v1421
        %v1439 = vpack.c.bf16 %v1424, %v1423
        %v1440 = vpack.c.bf16 %v1426, %v1425
        %v1441 = vpack.c.bf16 %v1428, %v1427
        %v1443 = vperm.slane %v1433, 0
        %v1449 = vunpack.c.l.b16 %v1429
        %v1450 = vunpack.c.l.b16 %v1430
        %v1451 = vunpack.c.l.b16 %v1431
        %v1452 = vunpack.c.l.b16 %v1432
        %v1453 = vpack.c.b16 %v1450, %v1449
        %v1454 = vpack.c.b16 %v1452, %v1451
        %v1458 = vsel %vm787, %v1434, 0
        %v1461 = vsel %vm787, %v1435, 0
        %v1464 = vsel %vm787, %v1436, 0
        %v1467 = vsel %vm787, %v1437, 0
        %v1470 = vsel %vm787, %v1438, 0
        %v1473 = vsel %vm787, %v1439, 0
        %v1476 = vsel %vm787, %v1440, 0
        %v1479 = vsel %vm787, %v1441, 0
        %1481 = vmatpush.bf16.msra.mxu0 0
        %1482 = vmatpush.bf16.msra.mxu0 0
        %1483 = vmatpush.bf16.msra.mxu0 0
        %1484 = vmatpush.bf16.msra.mxu0 0
        %1485 = vmatpush.bf16.msra.mxu0 0
        %1486 = vmatpush.bf16.msra.mxu0 0
        %1487 = vmatpush.bf16.msra.mxu0 %v1454
        %1488 = vmatpush.bf16.msra.mxu0 %v1453
        %1489 = vmatmul.bf16.gmra.mxu0 %v1458
        %v1490 = vpop.f32.mrf.mxu0
        %v1491 = vadd.f32 %v1443, %v1490
        %v1492 = vpop.f32.mrf.mxu0
        %v1493 = vadd.f32 %v1443, %v1492
        %1494 = vmatmul.bf16.gmra.mxu0 %v1461
        %v1495 = vpop.f32.mrf.mxu0
        %v1496 = vadd.f32 %v1443, %v1495
        %v1497 = vpop.f32.mrf.mxu0
        %v1498 = vadd.f32 %v1443, %v1497
        %1499 = vmatmul.bf16.gmra.mxu0 %v1464
        %v1500 = vpop.f32.mrf.mxu0
        %v1501 = vadd.f32 %v1443, %v1500
        %v1502 = vpop.f32.mrf.mxu0
        %v1503 = vadd.f32 %v1443, %v1502
        %1504 = vmatmul.bf16.gmra.mxu0 %v1467
        %v1505 = vpop.f32.mrf.mxu0
        %v1506 = vadd.f32 %v1443, %v1505
        %v1507 = vpop.f32.mrf.mxu0
        %v1508 = vadd.f32 %v1443, %v1507
        %1509 = vmatmul.bf16.gmra.mxu0 %v1470
        %v1510 = vpop.f32.mrf.mxu0
        %v1511 = vadd.f32 %v1443, %v1510
        %v1512 = vpop.f32.mrf.mxu0
        %v1513 = vadd.f32 %v1443, %v1512
        %1514 = vmatmul.bf16.gmra.mxu0 %v1473
        %v1515 = vpop.f32.mrf.mxu0
        %v1516 = vadd.f32 %v1443, %v1515
        %v1517 = vpop.f32.mrf.mxu0
        %v1518 = vadd.f32 %v1443, %v1517
        %1519 = vmatmul.bf16.gmra.mxu0 %v1476
        %v1520 = vpop.f32.mrf.mxu0
        %v1521 = vadd.f32 %v1443, %v1520
        %v1522 = vpop.f32.mrf.mxu0
        %v1523 = vadd.f32 %v1443, %v1522
        %1524 = vmatmul.bf16.gmra.mxu0 %v1479
        %v1525 = vpop.f32.mrf.mxu0
        %v1526 = vadd.f32 %v1443, %v1525
        %v1527 = vpop.f32.mrf.mxu0
        %v1528 = vadd.f32 %v1443, %v1527
        %1529 = vdwg.mxu0
        %v1530 = vrot.slane %v781, 1
        %v1531 = vrot.slane %v781, 2
        %v1532 = vrot.slane %v781, 3
        %v1533 = vrot.slane %v781, 4
        %v1534 = vrot.slane %v781, 5
        %v1535 = vrot.slane %v781, 6
        %v1536 = vrot.slane %v781, 7
        %v1537 = vrot.slane %v782, 1
        %v1538 = vrot.slane %v782, 2
        %v1539 = vrot.slane %v782, 3
        %v1540 = vrot.slane %v782, 4
        %v1541 = vrot.slane %v782, 5
        %v1542 = vrot.slane %v782, 6
        %v1543 = vrot.slane %v782, 7
        %v1544 = vperm.slane %v781, 0
        %v1545 = vperm.slane %v1530, 0
        %v1546 = vperm.slane %v1531, 0
        %v1547 = vperm.slane %v1532, 0
        %v1548 = vperm.slane %v1533, 0
        %v1549 = vperm.slane %v1534, 0
        %v1550 = vperm.slane %v1535, 0
        %v1551 = vperm.slane %v1536, 0
        %v1552 = vperm.slane %v782, 0
        %v1553 = vperm.slane %v1537, 0
        %v1554 = vperm.slane %v1538, 0
        %v1555 = vperm.slane %v1539, 0
        %v1556 = vperm.slane %v1540, 0
        %v1557 = vperm.slane %v1541, 0
        %v1558 = vperm.slane %v1542, 0
        %v1559 = vperm.slane %v1543, 0
        %v1576 = vmul.f32 %v1544, %v931
        %v1577 = vmul.f32 %v1545, %v931
        %v1578 = vmul.f32 %v1546, %v931
        %v1579 = vmul.f32 %v1547, %v931
        %v1580 = vmul.f32 %v1548, %v931
        %v1581 = vmul.f32 %v1549, %v931
        %v1582 = vmul.f32 %v1550, %v931
        %v1583 = vmul.f32 %v1551, %v931
        %v1584 = vmul.f32 %v1552, %v931
        %v1585 = vmul.f32 %v1553, %v931
        %v1586 = vmul.f32 %v1554, %v931
        %v1587 = vmul.f32 %v1555, %v931
        %v1588 = vmul.f32 %v1556, %v931
        %v1589 = vmul.f32 %v1557, %v931
        %v1590 = vmul.f32 %v1558, %v931
        %v1591 = vmul.f32 %v1559, %v931
        %v1592 = vperm.slane %v883, 0
        %v1593 = vperm.slane %v917, 0
        %v1594 = vperm.slane %v918, 0
        %v1595 = vperm.slane %v919, 0
        %v1596 = vperm.slane %v920, 0
        %v1597 = vperm.slane %v921, 0
        %v1598 = vperm.slane %v922, 0
        %v1599 = vperm.slane %v923, 0
        %v1600 = vperm.slane %v885, 0
        %v1601 = vperm.slane %v924, 0
        %v1602 = vperm.slane %v925, 0
        %v1603 = vperm.slane %v926, 0
        %v1604 = vperm.slane %v927, 0
        %v1605 = vperm.slane %v928, 0
        %v1606 = vperm.slane %v929, 0
        %v1607 = vperm.slane %v930, 0
        %1625 = vrot.lane.b32.xlu0 %v994, 96
        %v1626 = vpop.permute.xlu0 %1625
        %v1628 = vadd.f32 %v1592, %v1626
        %v1629 = vadd.f32 %v1593, %v1626
        %v1630 = vadd.f32 %v1594, %v1626
        %v1631 = vadd.f32 %v1595, %v1626
        %v1632 = vadd.f32 %v1596, %v1626
        %v1633 = vadd.f32 %v1597, %v1626
        %v1634 = vadd.f32 %v1598, %v1626
        %v1635 = vadd.f32 %v1599, %v1626
        %v1636 = vadd.f32 %v1600, %v1626
        %v1637 = vadd.f32 %v1601, %v1626
        %v1638 = vadd.f32 %v1602, %v1626
        %v1639 = vadd.f32 %v1603, %v1626
        %v1640 = vadd.f32 %v1604, %v1626
        %v1641 = vadd.f32 %v1605, %v1626
        %v1642 = vadd.f32 %v1606, %v1626
        %v1643 = vadd.f32 %v1607, %v1626
        %1660 = vrot.lane.b32.xlu0 %v1491, 96
        %v1661 = vpop.permute.xlu0 %1660
        %1662 = vrot.lane.b32.xlu0 %v1493, 96
        %v1663 = vpop.permute.xlu0 %1662
        %1664 = vrot.lane.b32.xlu0 %v1496, 96
        %v1665 = vpop.permute.xlu0 %1664
        %1666 = vrot.lane.b32.xlu0 %v1498, 96
        %v1667 = vpop.permute.xlu0 %1666
        %1668 = vrot.lane.b32.xlu0 %v1501, 96
        %v1669 = vpop.permute.xlu0 %1668
        %1670 = vrot.lane.b32.xlu0 %v1503, 96
        %v1671 = vpop.permute.xlu0 %1670
        %1672 = vrot.lane.b32.xlu0 %v1506, 96
        %v1673 = vpop.permute.xlu0 %1672
        %1674 = vrot.lane.b32.xlu0 %v1508, 96
        %v1675 = vpop.permute.xlu0 %1674
        %1676 = vrot.lane.b32.xlu0 %v1511, 96
        %v1677 = vpop.permute.xlu0 %1676
        %1678 = vrot.lane.b32.xlu0 %v1513, 96
        %v1679 = vpop.permute.xlu0 %1678
        %1680 = vrot.lane.b32.xlu0 %v1516, 96
        %v1681 = vpop.permute.xlu0 %1680
        %1682 = vrot.lane.b32.xlu0 %v1518, 96
        %v1683 = vpop.permute.xlu0 %1682
        %1684 = vrot.lane.b32.xlu0 %v1521, 96
        %v1685 = vpop.permute.xlu0 %1684
        %1686 = vrot.lane.b32.xlu0 %v1523, 96
        %v1687 = vpop.permute.xlu0 %1686
        %1688 = vrot.lane.b32.xlu0 %v1526, 96
        %v1689 = vpop.permute.xlu0 %1688
        %1690 = vrot.lane.b32.xlu0 %v1528, 96
        %v1691 = vpop.permute.xlu0 %1690
        %v1708 = vadd.f32 %v1628, %v1661
        %v1709 = vadd.f32 %v1629, %v1663
        %v1710 = vadd.f32 %v1630, %v1665
        %v1711 = vadd.f32 %v1631, %v1667
        %v1712 = vadd.f32 %v1632, %v1669
        %v1713 = vadd.f32 %v1633, %v1671
        %v1714 = vadd.f32 %v1634, %v1673
        %v1715 = vadd.f32 %v1635, %v1675
        %v1716 = vadd.f32 %v1636, %v1677
        %v1717 = vadd.f32 %v1637, %v1679
        %v1718 = vadd.f32 %v1638, %v1681
        %v1719 = vadd.f32 %v1639, %v1683
        %v1720 = vadd.f32 %v1640, %v1685
        %v1721 = vadd.f32 %v1641, %v1687
        %v1722 = vadd.f32 %v1642, %v1689
        %v1723 = vadd.f32 %v1643, %v1691
        %1725 = vset.pattern.permute.xlu0 0
        %1726 = vperm.xlu0 %1725, %v1576
        %v1727 = vpop.permute.xlu0 %1726
        %1730 = vset.pattern.permute.xlu0 0
        %1731 = vperm.xlu0 %1730, %v1577
        %v1732 = vpop.permute.xlu0 %1731
        %1735 = vset.pattern.permute.xlu0 0
        %1736 = vperm.xlu0 %1735, %v1578
        %v1737 = vpop.permute.xlu0 %1736
        %1740 = vset.pattern.permute.xlu0 0
        %1741 = vperm.xlu0 %1740, %v1579
        %v1742 = vpop.permute.xlu0 %1741
        %1745 = vset.pattern.permute.xlu0 0
        %1746 = vperm.xlu0 %1745, %v1580
        %v1747 = vpop.permute.xlu0 %1746
        %1750 = vset.pattern.permute.xlu0 0
        %1751 = vperm.xlu0 %1750, %v1581
        %v1752 = vpop.permute.xlu0 %1751
        %1755 = vset.pattern.permute.xlu0 0
        %1756 = vperm.xlu0 %1755, %v1582
        %v1757 = vpop.permute.xlu0 %1756
        %1760 = vset.pattern.permute.xlu0 0
        %1761 = vperm.xlu0 %1760, %v1583
        %v1762 = vpop.permute.xlu0 %1761
        %1765 = vset.pattern.permute.xlu0 0
        %1766 = vperm.xlu0 %1765, %v1584
        %v1767 = vpop.permute.xlu0 %1766
        %1770 = vset.pattern.permute.xlu0 0
        %1771 = vperm.xlu0 %1770, %v1585
        %v1772 = vpop.permute.xlu0 %1771
        %1775 = vset.pattern.permute.xlu0 0
        %1776 = vperm.xlu0 %1775, %v1586
        %v1777 = vpop.permute.xlu0 %1776
        %1780 = vset.pattern.permute.xlu0 0
        %1781 = vperm.xlu0 %1780, %v1587
        %v1782 = vpop.permute.xlu0 %1781
        %1785 = vset.pattern.permute.xlu0 0
        %1786 = vperm.xlu0 %1785, %v1588
        %v1787 = vpop.permute.xlu0 %1786
        %1790 = vset.pattern.permute.xlu0 0
        %1791 = vperm.xlu0 %1790, %v1589
        %v1792 = vpop.permute.xlu0 %1791
        %1795 = vset.pattern.permute.xlu0 0
        %1796 = vperm.xlu0 %1795, %v1590
        %v1797 = vpop.permute.xlu0 %1796
        %1800 = vset.pattern.permute.xlu0 0
        %1801 = vperm.xlu0 %1800, %v1591
        %v1802 = vpop.permute.xlu0 %1801
        %v1804 = vmul.f32 %v1708, %v1727
        %v1805 = vmul.f32 %v1709, %v1732
        %v1806 = vmul.f32 %v1710, %v1737
        %v1807 = vmul.f32 %v1711, %v1742
        %v1808 = vmul.f32 %v1712, %v1747
        %v1809 = vmul.f32 %v1713, %v1752
        %v1810 = vmul.f32 %v1714, %v1757
        %v1811 = vmul.f32 %v1715, %v1762
        %v1812 = vmul.f32 %v1716, %v1767
        %v1813 = vmul.f32 %v1717, %v1772
        %v1814 = vmul.f32 %v1718, %v1777
        %v1815 = vmul.f32 %v1719, %v1782
        %v1816 = vmul.f32 %v1720, %v1787
        %v1817 = vmul.f32 %v1721, %v1792
        %v1818 = vmul.f32 %v1722, %v1797
        %v1819 = vmul.f32 %v1723, %v1802
        %v1820 = vperm.slane %v897, 0
        %v1821 = vperm.slane %v901, 0
        %v1822 = vperm.slane %v902, 0
        %v1823 = vperm.slane %v903, 0
        %v1824 = vperm.slane %v904, 0
        %v1825 = vperm.slane %v905, 0
        %v1826 = vperm.slane %v906, 0
        %v1827 = vperm.slane %v907, 0
        %v1828 = vperm.slane %v898, 0
        %v1829 = vperm.slane %v908, 0
        %v1830 = vperm.slane %v909, 0
        %v1831 = vperm.slane %v910, 0
        %v1832 = vperm.slane %v911, 0
        %v1833 = vperm.slane %v912, 0
        %v1834 = vperm.slane %v913, 0
        %v1835 = vperm.slane %v914, 0
        %1868 = vrot.lane.b32.xlu0 %v1804, 32
        %v1869 = vpop.permute.xlu0 %1868
        %1870 = vrot.lane.b32.xlu0 %v1805, 32
        %v1871 = vpop.permute.xlu0 %1870
        %1872 = vrot.lane.b32.xlu0 %v1806, 32
        %v1873 = vpop.permute.xlu0 %1872
        %1874 = vrot.lane.b32.xlu0 %v1807, 32
        %v1875 = vpop.permute.xlu0 %1874
        %1876 = vrot.lane.b32.xlu0 %v1808, 32
        %v1877 = vpop.permute.xlu0 %1876
        %1878 = vrot.lane.b32.xlu0 %v1809, 32
        %v1879 = vpop.permute.xlu0 %1878
        %1880 = vrot.lane.b32.xlu0 %v1810, 32
        %v1881 = vpop.permute.xlu0 %1880
        %1882 = vrot.lane.b32.xlu0 %v1811, 32
        %v1883 = vpop.permute.xlu0 %1882
        %1884 = vrot.lane.b32.xlu0 %v1812, 32
        %v1885 = vpop.permute.xlu0 %1884
        %1886 = vrot.lane.b32.xlu0 %v1813, 32
        %v1887 = vpop.permute.xlu0 %1886
        %1888 = vrot.lane.b32.xlu0 %v1814, 32
        %v1889 = vpop.permute.xlu0 %1888
        %1890 = vrot.lane.b32.xlu0 %v1815, 32
        %v1891 = vpop.permute.xlu0 %1890
        %1892 = vrot.lane.b32.xlu0 %v1816, 32
        %v1893 = vpop.permute.xlu0 %1892
        %1894 = vrot.lane.b32.xlu0 %v1817, 32
        %v1895 = vpop.permute.xlu0 %1894
        %1896 = vrot.lane.b32.xlu0 %v1818, 32
        %v1897 = vpop.permute.xlu0 %1896
        %1898 = vrot.lane.b32.xlu0 %v1819, 32
        %v1899 = vpop.permute.xlu0 %1898
        %v1916 = vmul.f32 %v1820, %v1869
        %v1917 = vmul.f32 %v1821, %v1871
        %v1918 = vmul.f32 %v1822, %v1873
        %v1919 = vmul.f32 %v1823, %v1875
        %v1920 = vmul.f32 %v1824, %v1877
        %v1921 = vmul.f32 %v1825, %v1879
        %v1922 = vmul.f32 %v1826, %v1881
        %v1923 = vmul.f32 %v1827, %v1883
        %v1924 = vmul.f32 %v1828, %v1885
        %v1925 = vmul.f32 %v1829, %v1887
        %v1926 = vmul.f32 %v1830, %v1889
        %v1927 = vmul.f32 %v1831, %v1891
        %v1928 = vmul.f32 %v1832, %v1893
        %v1929 = vmul.f32 %v1833, %v1895
        %v1930 = vmul.f32 %v1834, %v1897
        %v1931 = vmul.f32 %v1835, %v1899
        %1933 = vrot.lane.b32.xlu0 %v1002, 96
        %v1934 = vpop.permute.xlu0 %1933
        %v1936 = vmul.f32 %v1916, %v1934
        %v1937 = vmul.f32 %v1917, %v1934
        %v1938 = vmul.f32 %v1918, %v1934
        %v1939 = vmul.f32 %v1919, %v1934
        %v1940 = vmul.f32 %v1920, %v1934
        %v1941 = vmul.f32 %v1921, %v1934
        %v1942 = vmul.f32 %v1922, %v1934
        %v1943 = vmul.f32 %v1923, %v1934
        %v1944 = vmul.f32 %v1924, %v1934
        %v1945 = vmul.f32 %v1925, %v1934
        %v1946 = vmul.f32 %v1926, %v1934
        %v1947 = vmul.f32 %v1927, %v1934
        %v1948 = vmul.f32 %v1928, %v1934
        %v1949 = vmul.f32 %v1929, %v1934
        %v1950 = vmul.f32 %v1930, %v1934
        %v1951 = vmul.f32 %v1931, %v1934
        %v1952 = vpack.c.bf16 %v1937, %v1936
        %v1953 = vpack.c.bf16 %v1939, %v1938
        %v1954 = vpack.c.bf16 %v1941, %v1940
        %v1955 = vpack.c.bf16 %v1943, %v1942
        %v1956 = vpack.c.bf16 %v1945, %v1944
        %v1957 = vpack.c.bf16 %v1947, %v1946
        %v1958 = vpack.c.bf16 %v1949, %v1948
        %v1959 = vpack.c.bf16 %v1951, %v1950
        %v1960 = vld [vmem:[%s17] sm:$0xf]
        %v1961 = vld [vmem:[%s17 + $0x4] sm:$0xf]
        %v1962 = vld [vmem:[%s17 + $0x8] sm:$0xf]
        %v1963 = vld [vmem:[%s17 + $0xc] sm:$0xf]
        %v1968 = vunpack.c.l.b16 %v1960
        %v1969 = vunpack.c.l.b16 %v1961
        %v1970 = vunpack.c.l.b16 %v1962
        %v1971 = vunpack.c.l.b16 %v1963
        %v1972 = vpack.c.b16 %v1969, %v1968
        %v1973 = vpack.c.b16 %v1971, %v1970
        %v1977 = vsel %vm787, %v1952, 0
        %v1980 = vsel %vm787, %v1953, 0
        %v1983 = vsel %vm787, %v1954, 0
        %v1986 = vsel %vm787, %v1955, 0
        %v1989 = vsel %vm787, %v1956, 0
        %v1992 = vsel %vm787, %v1957, 0
        %v1995 = vsel %vm787, %v1958, 0
        %v1998 = vsel %vm787, %v1959, 0
        %2000 = vmatpush.bf16.msra.mxu0 0
        %2001 = vmatpush.bf16.msra.mxu0 0
        %2002 = vmatpush.bf16.msra.mxu0 0
        %2003 = vmatpush.bf16.msra.mxu0 0
        %2004 = vmatpush.bf16.msra.mxu0 0
        %2005 = vmatpush.bf16.msra.mxu0 0
        %2006 = vmatpush.bf16.msra.mxu0 %v1973
        %2007 = vmatpush.bf16.msra.mxu0 %v1972
        %2008 = vmatmul.bf16.gmra.mxu0 %v1977
        %v2009 = vpop.f32.mrf.mxu0
        %v2010 = vadd.f32 0.0, %v2009
        %v2011 = vpop.f32.mrf.mxu0
        %v2012 = vadd.f32 0.0, %v2011
        %2013 = vmatmul.bf16.gmra.mxu0 %v1980
        %v2014 = vpop.f32.mrf.mxu0
        %v2015 = vadd.f32 0.0, %v2014
        %v2016 = vpop.f32.mrf.mxu0
        %v2017 = vadd.f32 0.0, %v2016
        %2018 = vmatmul.bf16.gmra.mxu0 %v1983
        %v2019 = vpop.f32.mrf.mxu0
        %v2020 = vadd.f32 0.0, %v2019
        %v2021 = vpop.f32.mrf.mxu0
        %v2022 = vadd.f32 0.0, %v2021
        %2023 = vmatmul.bf16.gmra.mxu0 %v1986
        %v2024 = vpop.f32.mrf.mxu0
        %v2025 = vadd.f32 0.0, %v2024
        %v2026 = vpop.f32.mrf.mxu0
        %v2027 = vadd.f32 0.0, %v2026
        %2028 = vmatmul.bf16.gmra.mxu0 %v1989
        %v2029 = vpop.f32.mrf.mxu0
        %v2030 = vadd.f32 0.0, %v2029
        %v2031 = vpop.f32.mrf.mxu0
        %v2032 = vadd.f32 0.0, %v2031
        %2033 = vmatmul.bf16.gmra.mxu0 %v1992
        %v2034 = vpop.f32.mrf.mxu0
        %v2035 = vadd.f32 0.0, %v2034
        %v2036 = vpop.f32.mrf.mxu0
        %v2037 = vadd.f32 0.0, %v2036
        %2038 = vmatmul.bf16.gmra.mxu0 %v1995
        %v2039 = vpop.f32.mrf.mxu0
        %v2040 = vadd.f32 0.0, %v2039
        %v2041 = vpop.f32.mrf.mxu0
        %v2042 = vadd.f32 0.0, %v2041
        %2043 = vmatmul.bf16.gmra.mxu0 %v1998
        %v2044 = vpop.f32.mrf.mxu0
        %v2045 = vadd.f32 0.0, %v2044
        %v2046 = vpop.f32.mrf.mxu0
        %v2047 = vadd.f32 0.0, %v2046
        %2048 = vdwg.mxu0
        %vm2049 = vcmp.gt.f32.partialorder %v1576, 0.0
        %vm2050 = vcmp.gt.f32.partialorder %v1577, 0.0
        %vm2051 = vcmp.gt.f32.partialorder %v1578, 0.0
        %vm2052 = vcmp.gt.f32.partialorder %v1579, 0.0
        %vm2053 = vcmp.gt.f32.partialorder %v1580, 0.0
        %vm2054 = vcmp.gt.f32.partialorder %v1581, 0.0
        %vm2055 = vcmp.gt.f32.partialorder %v1582, 0.0
        %vm2056 = vcmp.gt.f32.partialorder %v1583, 0.0
        %vm2057 = vcmp.gt.f32.partialorder %v1584, 0.0
        %vm2058 = vcmp.gt.f32.partialorder %v1585, 0.0
        %vm2059 = vcmp.gt.f32.partialorder %v1586, 0.0
        %vm2060 = vcmp.gt.f32.partialorder %v1587, 0.0
        %vm2061 = vcmp.gt.f32.partialorder %v1588, 0.0
        %vm2062 = vcmp.gt.f32.partialorder %v1589, 0.0
        %vm2063 = vcmp.gt.f32.partialorder %v1590, 0.0
        %vm2064 = vcmp.gt.f32.partialorder %v1591, 0.0
        %v2065 = vsel %vm2049, 1, 0
        %v2066 = vsel %vm2050, 1, 0
        %v2067 = vsel %vm2051, 1, 0
        %v2068 = vsel %vm2052, 1, 0
        %v2069 = vsel %vm2053, 1, 0
        %v2070 = vsel %vm2054, 1, 0
        %v2071 = vsel %vm2055, 1, 0
        %v2072 = vsel %vm2056, 1, 0
        %v2073 = vsel %vm2057, 1, 0
        %v2074 = vsel %vm2058, 1, 0
        %v2075 = vsel %vm2059, 1, 0
        %v2076 = vsel %vm2060, 1, 0
        %v2077 = vsel %vm2061, 1, 0
        %v2078 = vsel %vm2062, 1, 0
        %v2079 = vsel %vm2063, 1, 0
        %v2080 = vsel %vm2064, 1, 0
        %2081 = vset.pattern.permute.xlu0 0
        %2082 = vperm.xlu0 %2081, %v2065
        %v2083 = vpop.permute.xlu0 %2082
        %2084 = vset.pattern.permute.xlu0 0
        %2085 = vperm.xlu0 %2084, %v2066
        %v2086 = vpop.permute.xlu0 %2085
        %2087 = vset.pattern.permute.xlu0 0
        %2088 = vperm.xlu0 %2087, %v2067
        %v2089 = vpop.permute.xlu0 %2088
        %2090 = vset.pattern.permute.xlu0 0
        %2091 = vperm.xlu0 %2090, %v2068
        %v2092 = vpop.permute.xlu0 %2091
        %2093 = vset.pattern.permute.xlu0 0
        %2094 = vperm.xlu0 %2093, %v2069
        %v2095 = vpop.permute.xlu0 %2094
        %2096 = vset.pattern.permute.xlu0 0
        %2097 = vperm.xlu0 %2096, %v2070
        %v2098 = vpop.permute.xlu0 %2097
        %2099 = vset.pattern.permute.xlu0 0
        %2100 = vperm.xlu0 %2099, %v2071
        %v2101 = vpop.permute.xlu0 %2100
        %2102 = vset.pattern.permute.xlu0 0
        %2103 = vperm.xlu0 %2102, %v2072
        %v2104 = vpop.permute.xlu0 %2103
        %2105 = vset.pattern.permute.xlu0 0
        %2106 = vperm.xlu0 %2105, %v2073
        %v2107 = vpop.permute.xlu0 %2106
        %2108 = vset.pattern.permute.xlu0 0
        %2109 = vperm.xlu0 %2108, %v2074
        %v2110 = vpop.permute.xlu0 %2109
        %2111 = vset.pattern.permute.xlu0 0
        %2112 = vperm.xlu0 %2111, %v2075
        %v2113 = vpop.permute.xlu0 %2112
        %2114 = vset.pattern.permute.xlu0 0
        %2115 = vperm.xlu0 %2114, %v2076
        %v2116 = vpop.permute.xlu0 %2115
        %2117 = vset.pattern.permute.xlu0 0
        %2118 = vperm.xlu0 %2117, %v2077
        %v2119 = vpop.permute.xlu0 %2118
        %2120 = vset.pattern.permute.xlu0 0
        %2121 = vperm.xlu0 %2120, %v2078
        %v2122 = vpop.permute.xlu0 %2121
        %2123 = vset.pattern.permute.xlu0 0
        %2124 = vperm.xlu0 %2123, %v2079
        %v2125 = vpop.permute.xlu0 %2124
        %2126 = vset.pattern.permute.xlu0 0
        %2127 = vperm.xlu0 %2126, %v2080
        %v2128 = vpop.permute.xlu0 %2127
        %vm2129 = vcmp.eq.s32.totalorder %v2083, 1
        %vm2130 = vcmp.eq.s32.totalorder %v2086, 1
        %vm2131 = vcmp.eq.s32.totalorder %v2089, 1
        %vm2132 = vcmp.eq.s32.totalorder %v2092, 1
        %vm2133 = vcmp.eq.s32.totalorder %v2095, 1
        %vm2134 = vcmp.eq.s32.totalorder %v2098, 1
        %vm2135 = vcmp.eq.s32.totalorder %v2101, 1
        %vm2136 = vcmp.eq.s32.totalorder %v2104, 1
        %vm2137 = vcmp.eq.s32.totalorder %v2107, 1
        %vm2138 = vcmp.eq.s32.totalorder %v2110, 1
        %vm2139 = vcmp.eq.s32.totalorder %v2113, 1
        %vm2140 = vcmp.eq.s32.totalorder %v2116, 1
        %vm2141 = vcmp.eq.s32.totalorder %v2119, 1
        %vm2142 = vcmp.eq.s32.totalorder %v2122, 1
        %vm2143 = vcmp.eq.s32.totalorder %v2125, 1
        %vm2144 = vcmp.eq.s32.totalorder %v2128, 1
        %v2145 = vsel %vm2129, %v2010, -1e+09
        %v2146 = vsel %vm2130, %v2012, -1e+09
        %v2147 = vsel %vm2131, %v2015, -1e+09
        %v2148 = vsel %vm2132, %v2017, -1e+09
        %v2149 = vsel %vm2133, %v2020, -1e+09
        %v2150 = vsel %vm2134, %v2022, -1e+09
        %v2151 = vsel %vm2135, %v2025, -1e+09
        %v2152 = vsel %vm2136, %v2027, -1e+09
        %v2153 = vsel %vm2137, %v2030, -1e+09
        %v2154 = vsel %vm2138, %v2032, -1e+09
        %v2155 = vsel %vm2139, %v2035, -1e+09
        %v2156 = vsel %vm2140, %v2037, -1e+09
        %v2157 = vsel %vm2141, %v2040, -1e+09
        %v2158 = vsel %vm2142, %v2042, -1e+09
        %v2159 = vsel %vm2143, %v2045, -1e+09
        %v2160 = vsel %vm2144, %v2047, -1e+09
        %vm2161 = vcmask 31744
        %v2162 = vsel %vm2161, %v2145, -inf
        %v2163 = vsel %vm2161, %v2146, -inf
        %v2164 = vsel %vm2161, %v2147, -inf
        %v2165 = vsel %vm2161, %v2148, -inf
        %v2166 = vsel %vm2161, %v2149, -inf
        %v2167 = vmax.f32 %v2162, %v2166
        %v2168 = vsel %vm2161, %v2150, -inf
        %v2169 = vmax.f32 %v2163, %v2168
        %v2170 = vsel %vm2161, %v2151, -inf
        %v2171 = vmax.f32 %v2164, %v2170
        %v2172 = vsel %vm2161, %v2152, -inf
        %v2173 = vmax.f32 %v2165, %v2172
        %v2174 = vsel %vm2161, %v2153, -inf
        %v2175 = vmax.f32 %v2167, %v2174
        %v2176 = vsel %vm2161, %v2154, -inf
        %v2177 = vmax.f32 %v2169, %v2176
        %v2178 = vsel %vm2161, %v2155, -inf
        %v2179 = vmax.f32 %v2171, %v2178
        %v2180 = vsel %vm2161, %v2156, -inf
        %v2181 = vmax.f32 %v2173, %v2180
        %v2182 = vsel %vm2161, %v2157, -inf
        %v2183 = vmax.f32 %v2175, %v2182
        %v2184 = vsel %vm2161, %v2158, -inf
        %v2185 = vmax.f32 %v2177, %v2184
        %v2186 = vsel %vm2161, %v2159, -inf
        %v2187 = vmax.f32 %v2179, %v2186
        %v2188 = vsel %vm2161, %v2160, -inf
        %v2189 = vmax.f32 %v2181, %v2188
        %v2190 = vmax.f32 %v2183, %v2185
        %v2191 = vmax.f32 %v2187, %v2189
        %v2192 = vmax.f32 %v2190, %v2191
        %v2193 = vsub.f32 %v2145, %v2192
        %v2194 = vsub.f32 %v2146, %v2192
        %v2195 = vsub.f32 %v2147, %v2192
        %v2196 = vsub.f32 %v2148, %v2192
        %v2197 = vsub.f32 %v2149, %v2192
        %v2198 = vsub.f32 %v2150, %v2192
        %v2199 = vsub.f32 %v2151, %v2192
        %v2200 = vsub.f32 %v2152, %v2192
        %v2201 = vsub.f32 %v2153, %v2192
        %v2202 = vsub.f32 %v2154, %v2192
        %v2203 = vsub.f32 %v2155, %v2192
        %v2204 = vsub.f32 %v2156, %v2192
        %v2205 = vsub.f32 %v2157, %v2192
        %v2206 = vsub.f32 %v2158, %v2192
        %v2207 = vsub.f32 %v2159, %v2192
        %v2208 = vsub.f32 %v2160, %v2192
        %v2209 = vmul.f32 %v2193, 1.442695
        %v2210 = vpow.pop %v2209
        %v2211 = vmul.f32 %v2194, 1.442695
        %v2212 = vpow.pop %v2211
        %v2213 = vmul.f32 %v2195, 1.442695
        %v2214 = vpow.pop %v2213
        %v2215 = vmul.f32 %v2196, 1.442695
        %v2216 = vpow.pop %v2215
        %v2217 = vmul.f32 %v2197, 1.442695
        %v2218 = vpow.pop %v2217
        %v2219 = vmul.f32 %v2198, 1.442695
        %v2220 = vpow.pop %v2219
        %v2221 = vmul.f32 %v2199, 1.442695
        %v2222 = vpow.pop %v2221
        %v2223 = vmul.f32 %v2200, 1.442695
        %v2224 = vpow.pop %v2223
        %v2225 = vmul.f32 %v2201, 1.442695
        %v2226 = vpow.pop %v2225
        %v2227 = vmul.f32 %v2202, 1.442695
        %v2228 = vpow.pop %v2227
        %v2229 = vmul.f32 %v2203, 1.442695
        %v2230 = vpow.pop %v2229
        %v2231 = vmul.f32 %v2204, 1.442695
        %v2232 = vpow.pop %v2231
        %v2233 = vmul.f32 %v2205, 1.442695
        %v2234 = vpow.pop %v2233
        %v2235 = vmul.f32 %v2206, 1.442695
        %v2236 = vpow.pop %v2235
        %v2237 = vmul.f32 %v2207, 1.442695
        %v2238 = vpow.pop %v2237
        %v2239 = vmul.f32 %v2208, 1.442695
        %v2240 = vpow.pop %v2239
        %v2241 = vsel %vm2161, %v2210, 0.0
        %v2242 = vsel %vm2161, %v2212, 0.0
        %v2243 = vadd.f32 %v2241, %v2242
        %v2244 = vsel %vm2161, %v2214, 0.0
        %v2245 = vadd.f32 %v2243, %v2244
        %v2246 = vsel %vm2161, %v2216, 0.0
        %v2247 = vadd.f32 %v2245, %v2246
        %v2248 = vsel %vm2161, %v2218, 0.0
        %v2249 = vadd.f32 %v2247, %v2248
        %v2250 = vsel %vm2161, %v2220, 0.0
        %v2251 = vadd.f32 %v2249, %v2250
        %v2252 = vsel %vm2161, %v2222, 0.0
        %v2253 = vadd.f32 %v2251, %v2252
        %v2254 = vsel %vm2161, %v2224, 0.0
        %v2255 = vadd.f32 %v2253, %v2254
        %v2256 = vsel %vm2161, %v2226, 0.0
        %v2257 = vadd.f32 %v2255, %v2256
        %v2258 = vsel %vm2161, %v2228, 0.0
        %v2259 = vadd.f32 %v2257, %v2258
        %v2260 = vsel %vm2161, %v2230, 0.0
        %v2261 = vadd.f32 %v2259, %v2260
        %v2262 = vsel %vm2161, %v2232, 0.0
        %v2263 = vadd.f32 %v2261, %v2262
        %v2264 = vsel %vm2161, %v2234, 0.0
        %v2265 = vadd.f32 %v2263, %v2264
        %v2266 = vsel %vm2161, %v2236, 0.0
        %v2267 = vadd.f32 %v2265, %v2266
        %v2268 = vsel %vm2161, %v2238, 0.0
        %v2269 = vadd.f32 %v2267, %v2268
        %v2270 = vsel %vm2161, %v2240, 0.0
        %v2271 = vadd.f32 %v2269, %v2270
        %v2272 = vrcp.pop %v2271
        %v2273 = vmul.f32 %v2210, %v2272
        %v2274 = vmul.f32 %v2212, %v2272
        %v2275 = vmul.f32 %v2214, %v2272
        %v2276 = vmul.f32 %v2216, %v2272
        %v2277 = vmul.f32 %v2218, %v2272
        %v2278 = vmul.f32 %v2220, %v2272
        %v2279 = vmul.f32 %v2222, %v2272
        %v2280 = vmul.f32 %v2224, %v2272
        %v2281 = vmul.f32 %v2226, %v2272
        %v2282 = vmul.f32 %v2228, %v2272
        %v2283 = vmul.f32 %v2230, %v2272
        %v2284 = vmul.f32 %v2232, %v2272
        %v2285 = vmul.f32 %v2234, %v2272
        %v2286 = vmul.f32 %v2236, %v2272
        %v2287 = vmul.f32 %v2238, %v2272
        %v2288 = vmul.f32 %v2240, %v2272
        %v2289 = vpack.c.bf16 %v2274, %v2273
        %v2290 = vpack.c.bf16 %v2276, %v2275
        %v2291 = vpack.c.bf16 %v2278, %v2277
        %v2292 = vpack.c.bf16 %v2280, %v2279
        %v2293 = vpack.c.bf16 %v2282, %v2281
        %v2294 = vpack.c.bf16 %v2284, %v2283
        %v2295 = vpack.c.bf16 %v2286, %v2285
        %v2296 = vpack.c.bf16 %v2288, %v2287
        %v2297 = vld [vmem:[%s18] sm:$0x3]
        %v2299 = vsel %vm2161, %v2289, 0
        %v2302 = vsel %vm2161, %v2290, 0
        %v2305 = vsel %vm2161, %v2291, 0
        %v2308 = vsel %vm2161, %v2292, 0
        %v2311 = vsel %vm2161, %v2293, 0
        %v2314 = vsel %vm2161, %v2294, 0
        %v2317 = vsel %vm2161, %v2295, 0
        %v2320 = vsel %vm2161, %v2296, 0
        %vm2322 = vcmask 1041408
        %v2324 = vsel %vm2322, %v2297, 0
        %2326 = vmatpush.bf16.msra.mxu0 0
        %2327 = vmatpush.bf16.msra.mxu0 0
        %2328 = vmatpush.bf16.msra.mxu0 0
        %2329 = vmatpush.bf16.msra.mxu0 0
        %2330 = vmatpush.bf16.msra.mxu0 0
        %2331 = vmatpush.bf16.msra.mxu0 0
        %2332 = vmatpush.bf16.msra.mxu0 0
        %2333 = vmatpush.bf16.msra.mxu0 %v2324
        %2334 = vmatmul.bf16.gmra.mxu0 %v2299
        %v2335 = vpop.f32.mrf.mxu0
        %v2336 = vadd.f32 0.0, %v2335
        %v2337 = vpop.f32.mrf.mxu0
        %v2338 = vadd.f32 0.0, %v2337
        %2339 = vmatmul.bf16.gmra.mxu0 %v2302
        %v2340 = vpop.f32.mrf.mxu0
        %v2341 = vadd.f32 0.0, %v2340
        %v2342 = vpop.f32.mrf.mxu0
        %v2343 = vadd.f32 0.0, %v2342
        %2344 = vmatmul.bf16.gmra.mxu0 %v2305
        %v2345 = vpop.f32.mrf.mxu0
        %v2346 = vadd.f32 0.0, %v2345
        %v2347 = vpop.f32.mrf.mxu0
        %v2348 = vadd.f32 0.0, %v2347
        %2349 = vmatmul.bf16.gmra.mxu0 %v2308
        %v2350 = vpop.f32.mrf.mxu0
        %v2351 = vadd.f32 0.0, %v2350
        %v2352 = vpop.f32.mrf.mxu0
        %v2353 = vadd.f32 0.0, %v2352
        %2354 = vmatmul.bf16.gmra.mxu0 %v2311
        %v2355 = vpop.f32.mrf.mxu0
        %v2356 = vadd.f32 0.0, %v2355
        %v2357 = vpop.f32.mrf.mxu0
        %v2358 = vadd.f32 0.0, %v2357
        %2359 = vmatmul.bf16.gmra.mxu0 %v2314
        %v2360 = vpop.f32.mrf.mxu0
        %v2361 = vadd.f32 0.0, %v2360
        %v2362 = vpop.f32.mrf.mxu0
        %v2363 = vadd.f32 0.0, %v2362
        %2364 = vmatmul.bf16.gmra.mxu0 %v2317
        %v2365 = vpop.f32.mrf.mxu0
        %v2366 = vadd.f32 0.0, %v2365
        %v2367 = vpop.f32.mrf.mxu0
        %v2368 = vadd.f32 0.0, %v2367
        %2369 = vmatmul.bf16.gmra.mxu0 %v2320
        %v2370 = vpop.f32.mrf.mxu0
        %v2371 = vadd.f32 0.0, %v2370
        %v2372 = vpop.f32.mrf.mxu0
        %v2373 = vadd.f32 0.0, %v2372
        %2374 = vdwg.mxu0
        %2375 = vrot.lane.b32.xlu0 %v1002, 64
        %v2376 = vpop.permute.xlu0 %2375
        %v2378 = vmul.f32 %v2336, %v2376
        %v2379 = vmul.f32 %v2338, %v2376
        %v2380 = vmul.f32 %v2341, %v2376
        %v2381 = vmul.f32 %v2343, %v2376
        %v2382 = vmul.f32 %v2346, %v2376
        %v2383 = vmul.f32 %v2348, %v2376
        %v2384 = vmul.f32 %v2351, %v2376
        %v2385 = vmul.f32 %v2353, %v2376
        %v2386 = vmul.f32 %v2356, %v2376
        %v2387 = vmul.f32 %v2358, %v2376
        %v2388 = vmul.f32 %v2361, %v2376
        %v2389 = vmul.f32 %v2363, %v2376
        %v2390 = vmul.f32 %v2366, %v2376
        %v2391 = vmul.f32 %v2368, %v2376
        %v2392 = vmul.f32 %v2371, %v2376
        %v2393 = vmul.f32 %v2373, %v2376
        %v2394 = vsel %vm787, %v2378, 0.0
        %v2395 = vrot.slane %v2394, 4
        %v2396 = vadd.f32 %v2394, %v2395
        %v2397 = vrot.slane %v2396, 2
        %v2398 = vadd.f32 %v2396, %v2397
        %v2399 = vrot.slane %v2398, 1
        %v2400 = vadd.f32 %v2398, %v2399
        %v2401 = vsel %vm787, %v2379, 0.0
        %v2402 = vrot.slane %v2401, 4
        %v2403 = vadd.f32 %v2401, %v2402
        %v2404 = vrot.slane %v2403, 2
        %v2405 = vadd.f32 %v2403, %v2404
        %v2406 = vrot.slane %v2405, 1
        %v2407 = vadd.f32 %v2405, %v2406
        %v2408 = vsel %vm787, %v2380, 0.0
        %v2409 = vrot.slane %v2408, 4
        %v2410 = vadd.f32 %v2408, %v2409
        %v2411 = vrot.slane %v2410, 2
        %v2412 = vadd.f32 %v2410, %v2411
        %v2413 = vrot.slane %v2412, 1
        %v2414 = vadd.f32 %v2412, %v2413
        %v2415 = vsel %vm787, %v2381, 0.0
        %v2416 = vrot.slane %v2415, 4
        %v2417 = vadd.f32 %v2415, %v2416
        %v2418 = vrot.slane %v2417, 2
        %v2419 = vadd.f32 %v2417, %v2418
        %v2420 = vrot.slane %v2419, 1
        %v2421 = vadd.f32 %v2419, %v2420
        %v2422 = vsel %vm787, %v2382, 0.0
        %v2423 = vrot.slane %v2422, 4
        %v2424 = vadd.f32 %v2422, %v2423
        %v2425 = vrot.slane %v2424, 2
        %v2426 = vadd.f32 %v2424, %v2425
        %v2427 = vrot.slane %v2426, 1
        %v2428 = vadd.f32 %v2426, %v2427
        %v2429 = vsel %vm787, %v2383, 0.0
        %v2430 = vrot.slane %v2429, 4
        %v2431 = vadd.f32 %v2429, %v2430
        %v2432 = vrot.slane %v2431, 2
        %v2433 = vadd.f32 %v2431, %v2432
        %v2434 = vrot.slane %v2433, 1
        %v2435 = vadd.f32 %v2433, %v2434
        %v2436 = vsel %vm787, %v2384, 0.0
        %v2437 = vrot.slane %v2436, 4
        %v2438 = vadd.f32 %v2436, %v2437
        %v2439 = vrot.slane %v2438, 2
        %v2440 = vadd.f32 %v2438, %v2439
        %v2441 = vrot.slane %v2440, 1
        %v2442 = vadd.f32 %v2440, %v2441
        %v2443 = vsel %vm787, %v2385, 0.0
        %v2444 = vrot.slane %v2443, 4
        %v2445 = vadd.f32 %v2443, %v2444
        %v2446 = vrot.slane %v2445, 2
        %v2447 = vadd.f32 %v2445, %v2446
        %v2448 = vrot.slane %v2447, 1
        %v2449 = vadd.f32 %v2447, %v2448
        %v2450 = vsel %vm787, %v2386, 0.0
        %v2451 = vrot.slane %v2450, 4
        %v2452 = vadd.f32 %v2450, %v2451
        %v2453 = vrot.slane %v2452, 2
        %v2454 = vadd.f32 %v2452, %v2453
        %v2455 = vrot.slane %v2454, 1
        %v2456 = vadd.f32 %v2454, %v2455
        %v2457 = vsel %vm787, %v2387, 0.0
        %v2458 = vrot.slane %v2457, 4
        %v2459 = vadd.f32 %v2457, %v2458
        %v2460 = vrot.slane %v2459, 2
        %v2461 = vadd.f32 %v2459, %v2460
        %v2462 = vrot.slane %v2461, 1
        %v2463 = vadd.f32 %v2461, %v2462
        %v2464 = vsel %vm787, %v2388, 0.0
        %v2465 = vrot.slane %v2464, 4
        %v2466 = vadd.f32 %v2464, %v2465
        %v2467 = vrot.slane %v2466, 2
        %v2468 = vadd.f32 %v2466, %v2467
        %v2469 = vrot.slane %v2468, 1
        %v2470 = vadd.f32 %v2468, %v2469
        %v2471 = vsel %vm787, %v2389, 0.0
        %v2472 = vrot.slane %v2471, 4
        %v2473 = vadd.f32 %v2471, %v2472
        %v2474 = vrot.slane %v2473, 2
        %v2475 = vadd.f32 %v2473, %v2474
        %v2476 = vrot.slane %v2475, 1
        %v2477 = vadd.f32 %v2475, %v2476
        %v2478 = vsel %vm787, %v2390, 0.0
        %v2479 = vrot.slane %v2478, 4
        %v2480 = vadd.f32 %v2478, %v2479
        %v2481 = vrot.slane %v2480, 2
        %v2482 = vadd.f32 %v2480, %v2481
        %v2483 = vrot.slane %v2482, 1
        %v2484 = vadd.f32 %v2482, %v2483
        %v2485 = vsel %vm787, %v2391, 0.0
        %v2486 = vrot.slane %v2485, 4
        %v2487 = vadd.f32 %v2485, %v2486
        %v2488 = vrot.slane %v2487, 2
        %v2489 = vadd.f32 %v2487, %v2488
        %v2490 = vrot.slane %v2489, 1
        %v2491 = vadd.f32 %v2489, %v2490
        %v2492 = vsel %vm787, %v2392, 0.0
        %v2493 = vrot.slane %v2492, 4
        %v2494 = vadd.f32 %v2492, %v2493
        %v2495 = vrot.slane %v2494, 2
        %v2496 = vadd.f32 %v2494, %v2495
        %v2497 = vrot.slane %v2496, 1
        %v2498 = vadd.f32 %v2496, %v2497
        %v2499 = vsel %vm787, %v2393, 0.0
        %v2500 = vrot.slane %v2499, 4
        %v2501 = vadd.f32 %v2499, %v2500
        %v2502 = vrot.slane %v2501, 2
        %v2503 = vadd.f32 %v2501, %v2502
        %v2504 = vrot.slane %v2503, 1
        %v2505 = vadd.f32 %v2503, %v2504
        %p2506 = scmp.eq.s32.totalorder %s46, 0
        // Predicated region
        $region101: #{tpu_custom_call.1} parent=95 // pred_check
          %p2507 = pneg %p2506
        $region102: #{tpu_custom_call.1} parent=95 // pred_check_branch
          %2509 = sbr.rel (%p2507) target = $region104
        $region103: #{tpu_custom_call.1} parent=95 // pred_region
          %2510 = vst.msk [vmem:[#allocation2] sm:$0xff] %vm787, 0.0
          %2511 = vst.msk [vmem:[#allocation2 + $0x8] sm:$0xff] %vm787, 0.0
        $region104: #{tpu_custom_call.1} parent=95 // pred_fallthru
          _
        %v2512 = vld [vmem:[#allocation2] sm:$0xff]
        %v2513 = vld [vmem:[#allocation2 + $0x8] sm:$0xff]
        %vm2530 = vcmask 1041409
        %v2531 = vsel %vm2530, %v2407, %v2400
        %vm2532 = vcmask 1042434
        %v2533 = vsel %vm2532, %v2414, %v2531
        %vm2534 = vcmask 1043459
        %v2535 = vsel %vm2534, %v2421, %v2533
        %vm2536 = vcmask 1044484
        %v2537 = vsel %vm2536, %v2428, %v2535
        %vm2538 = vcmask 1045509
        %v2539 = vsel %vm2538, %v2435, %v2537
        %vm2540 = vcmask 1046534
        %v2541 = vsel %vm2540, %v2442, %v2539
        %vm2542 = vcmask 1047559
        %v2543 = vsel %vm2542, %v2449, %v2541
        %v2544 = vsel %vm2530, %v2463, %v2456
        %v2545 = vsel %vm2532, %v2470, %v2544
        %v2546 = vsel %vm2534, %v2477, %v2545
        %v2547 = vsel %vm2536, %v2484, %v2546
        %v2548 = vsel %vm2538, %v2491, %v2547
        %v2549 = vsel %vm2540, %v2498, %v2548
        %v2550 = vsel %vm2542, %v2505, %v2549
        %v2553 = vadd.f32 %v2512, %v2543
        %v2554 = vadd.f32 %v2513, %v2550
        %2555 = vst.msk [vmem:[#allocation2] sm:$0xff] %vm787, %v2553
        %2556 = vst.msk [vmem:[#allocation2 + $0x8] sm:$0xff] %vm787, %v2554
        %s2557 = scalar_lea.vmem %s11, 16
        %v2558 = vld [vmem:[%s2557] sm:$0xf]
        %v2559 = vld [vmem:[%s2557 + $0x4] sm:$0xf]
        %v2560 = vld [vmem:[%s2557 + $0x8] sm:$0xf]
        %v2561 = vld [vmem:[%s2557 + $0xc] sm:$0xf]
        %s2562 = scalar_lea.vmem %s12, 1
        %v2563 = vld [vmem:[%s2562] sm:$0x1]
        %v2564 = vpack.c.bf16 %v1805, %v1804
        %v2565 = vpack.c.bf16 %v1807, %v1806
        %v2566 = vpack.c.bf16 %v1809, %v1808
        %v2567 = vpack.c.bf16 %v1811, %v1810
        %v2568 = vpack.c.bf16 %v1813, %v1812
        %v2569 = vpack.c.bf16 %v1815, %v1814
        %v2570 = vpack.c.bf16 %v1817, %v1816
        %v2571 = vpack.c.bf16 %v1819, %v1818
        %v2573 = vperm.slane %v2563, 0
        %2583 = vrot.lane.b32.xlu0 %v2564, 32
        %v2584 = vpop.permute.xlu0 %2583
        %2585 = vrot.lane.b32.xlu0 %v2565, 32
        %v2586 = vpop.permute.xlu0 %2585
        %2587 = vrot.lane.b32.xlu0 %v2566, 32
        %v2588 = vpop.permute.xlu0 %2587
        %2589 = vrot.lane.b32.xlu0 %v2567, 32
        %v2590 = vpop.permute.xlu0 %2589
        %2591 = vrot.lane.b32.xlu0 %v2568, 32
        %v2592 = vpop.permute.xlu0 %2591
        %2593 = vrot.lane.b32.xlu0 %v2569, 32
        %v2594 = vpop.permute.xlu0 %2593
        %2595 = vrot.lane.b32.xlu0 %v2570, 32
        %v2596 = vpop.permute.xlu0 %2595
        %2597 = vrot.lane.b32.xlu0 %v2571, 32
        %v2598 = vpop.permute.xlu0 %2597
        %v2603 = vunpack.c.l.b16 %v2558
        %v2604 = vunpack.c.l.b16 %v2559
        %v2605 = vunpack.c.l.b16 %v2560
        %v2606 = vunpack.c.l.b16 %v2561
        %v2607 = vpack.c.b16 %v2604, %v2603
        %v2608 = vpack.c.b16 %v2606, %v2605
        %v2612 = vsel %vm787, %v2584, 0
        %v2615 = vsel %vm787, %v2586, 0
        %v2618 = vsel %vm787, %v2588, 0
        %v2621 = vsel %vm787, %v2590, 0
        %v2624 = vsel %vm787, %v2592, 0
        %v2627 = vsel %vm787, %v2594, 0
        %v2630 = vsel %vm787, %v2596, 0
        %v2633 = vsel %vm787, %v2598, 0
        %2635 = vmatpush.bf16.msra.mxu0 0
        %2636 = vmatpush.bf16.msra.mxu0 0
        %2637 = vmatpush.bf16.msra.mxu0 0
        %2638 = vmatpush.bf16.msra.mxu0 0
        %2639 = vmatpush.bf16.msra.mxu0 0
        %2640 = vmatpush.bf16.msra.mxu0 0
        %2641 = vmatpush.bf16.msra.mxu0 %v2608
        %2642 = vmatpush.bf16.msra.mxu0 %v2607
        %2643 = vmatmul.bf16.gmra.mxu0 %v2612
        %v2644 = vpop.f32.mrf.mxu0
        %v2645 = vadd.f32 %v2573, %v2644
        %v2646 = vpop.f32.mrf.mxu0
        %v2647 = vadd.f32 %v2573, %v2646
        %2648 = vmatmul.bf16.gmra.mxu0 %v2615
        %v2649 = vpop.f32.mrf.mxu0
        %v2650 = vadd.f32 %v2573, %v2649
        %v2651 = vpop.f32.mrf.mxu0
        %v2652 = vadd.f32 %v2573, %v2651
        %2653 = vmatmul.bf16.gmra.mxu0 %v2618
        %v2654 = vpop.f32.mrf.mxu0
        %v2655 = vadd.f32 %v2573, %v2654
        %v2656 = vpop.f32.mrf.mxu0
        %v2657 = vadd.f32 %v2573, %v2656
        %2658 = vmatmul.bf16.gmra.mxu0 %v2621
        %v2659 = vpop.f32.mrf.mxu0
        %v2660 = vadd.f32 %v2573, %v2659
        %v2661 = vpop.f32.mrf.mxu0
        %v2662 = vadd.f32 %v2573, %v2661
        %2663 = vmatmul.bf16.gmra.mxu0 %v2624
        %v2664 = vpop.f32.mrf.mxu0
        %v2665 = vadd.f32 %v2573, %v2664
        %v2666 = vpop.f32.mrf.mxu0
        %v2667 = vadd.f32 %v2573, %v2666
        %2668 = vmatmul.bf16.gmra.mxu0 %v2627
        %v2669 = vpop.f32.mrf.mxu0
        %v2670 = vadd.f32 %v2573, %v2669
        %v2671 = vpop.f32.mrf.mxu0
        %v2672 = vadd.f32 %v2573, %v2671
        %2673 = vmatmul.bf16.gmra.mxu0 %v2630
        %v2674 = vpop.f32.mrf.mxu0
        %v2675 = vadd.f32 %v2573, %v2674
        %v2676 = vpop.f32.mrf.mxu0
        %v2677 = vadd.f32 %v2573, %v2676
        %2678 = vmatmul.bf16.gmra.mxu0 %v2633
        %v2679 = vpop.f32.mrf.mxu0
        %v2680 = vadd.f32 %v2573, %v2679
        %v2681 = vpop.f32.mrf.mxu0
        %v2682 = vadd.f32 %v2573, %v2681
        %2683 = vdwg.mxu0
        %v2684 = vmul.f32 %v2645, %v1727
        %v2685 = vmul.f32 %v2647, %v1732
        %v2686 = vmul.f32 %v2650, %v1737
        %v2687 = vmul.f32 %v2652, %v1742
        %v2688 = vmul.f32 %v2655, %v1747
        %v2689 = vmul.f32 %v2657, %v1752
        %v2690 = vmul.f32 %v2660, %v1757
        %v2691 = vmul.f32 %v2662, %v1762
        %v2692 = vmul.f32 %v2665, %v1767
        %v2693 = vmul.f32 %v2667, %v1772
        %v2694 = vmul.f32 %v2670, %v1777
        %v2695 = vmul.f32 %v2672, %v1782
        %v2696 = vmul.f32 %v2675, %v1787
        %v2697 = vmul.f32 %v2677, %v1792
        %v2698 = vmul.f32 %v2680, %v1797
        %v2699 = vmul.f32 %v2682, %v1802
        %v2700 = vadd.f32 %v1413, %v2684
        %v2701 = vadd.f32 %v1414, %v2685
        %v2702 = vadd.f32 %v1415, %v2686
        %v2703 = vadd.f32 %v1416, %v2687
        %v2704 = vadd.f32 %v1417, %v2688
        %v2705 = vadd.f32 %v1418, %v2689
        %v2706 = vadd.f32 %v1419, %v2690
        %v2707 = vadd.f32 %v1420, %v2691
        %v2708 = vadd.f32 %v1421, %v2692
        %v2709 = vadd.f32 %v1422, %v2693
        %v2710 = vadd.f32 %v1423, %v2694
        %v2711 = vadd.f32 %v1424, %v2695
        %v2712 = vadd.f32 %v1425, %v2696
        %v2713 = vadd.f32 %v1426, %v2697
        %v2714 = vadd.f32 %v1427, %v2698
        %v2715 = vadd.f32 %v1428, %v2699
        %s2716 = scalar_lea.vmem %s5, 3
        %v2717 = vld [vmem:[%s2716] sm:$0x1]
        %s2718 = scalar_lea.vmem %s6, 3
        %v2719 = vld [vmem:[%s2718] sm:$0x1]
        %v2720 = vsel %vm787, %v2700, 0.0
        %2721 = vadd.xlane.f32.xlu0 %v2720
        %v2722 = vpop.xlane.xlu0 %2721
        %v2723 = vsel %vm787, %v2701, 0.0
        %2724 = vadd.xlane.f32.xlu0 %v2723
        %v2725 = vpop.xlane.xlu0 %2724
        %v2726 = vsel %vm787, %v2702, 0.0
        %2727 = vadd.xlane.f32.xlu0 %v2726
        %v2728 = vpop.xlane.xlu0 %2727
        %v2729 = vsel %vm787, %v2703, 0.0
        %2730 = vadd.xlane.f32.xlu0 %v2729
        %v2731 = vpop.xlane.xlu0 %2730
        %v2732 = vsel %vm787, %v2704, 0.0
        %2733 = vadd.xlane.f32.xlu0 %v2732
        %v2734 = vpop.xlane.xlu0 %2733
        %v2735 = vsel %vm787, %v2705, 0.0
        %2736 = vadd.xlane.f32.xlu0 %v2735
        %v2737 = vpop.xlane.xlu0 %2736
        %v2738 = vsel %vm787, %v2706, 0.0
        %2739 = vadd.xlane.f32.xlu0 %v2738
        %v2740 = vpop.xlane.xlu0 %2739
        %v2741 = vsel %vm787, %v2707, 0.0
        %2742 = vadd.xlane.f32.xlu0 %v2741
        %v2743 = vpop.xlane.xlu0 %2742
        %v2744 = vsel %vm787, %v2708, 0.0
        %2745 = vadd.xlane.f32.xlu0 %v2744
        %v2746 = vpop.xlane.xlu0 %2745
        %v2747 = vsel %vm787, %v2709, 0.0
        %2748 = vadd.xlane.f32.xlu0 %v2747
        %v2749 = vpop.xlane.xlu0 %2748
        %v2750 = vsel %vm787, %v2710, 0.0
        %2751 = vadd.xlane.f32.xlu0 %v2750
        %v2752 = vpop.xlane.xlu0 %2751
        %v2753 = vsel %vm787, %v2711, 0.0
        %2754 = vadd.xlane.f32.xlu0 %v2753
        %v2755 = vpop.xlane.xlu0 %2754
        %v2756 = vsel %vm787, %v2712, 0.0
        %2757 = vadd.xlane.f32.xlu0 %v2756
        %v2758 = vpop.xlane.xlu0 %2757
        %v2759 = vsel %vm787, %v2713, 0.0
        %2760 = vadd.xlane.f32.xlu0 %v2759
        %v2761 = vpop.xlane.xlu0 %2760
        %v2762 = vsel %vm787, %v2714, 0.0
        %2763 = vadd.xlane.f32.xlu0 %v2762
        %v2764 = vpop.xlane.xlu0 %2763
        %v2765 = vsel %vm787, %v2715, 0.0
        %2766 = vadd.xlane.f32.xlu0 %v2765
        %v2767 = vpop.xlane.xlu0 %2766
        %v2768 = vmul.f32 %v2722, %v800
        %v2769 = vmul.f32 %v2725, %v800
        %v2770 = vmul.f32 %v2728, %v800
        %v2771 = vmul.f32 %v2731, %v800
        %v2772 = vmul.f32 %v2734, %v800
        %v2773 = vmul.f32 %v2737, %v800
        %v2774 = vmul.f32 %v2740, %v800
        %v2775 = vmul.f32 %v2743, %v800
        %v2776 = vmul.f32 %v2746, %v800
        %v2777 = vmul.f32 %v2749, %v800
        %v2778 = vmul.f32 %v2752, %v800
        %v2779 = vmul.f32 %v2755, %v800
        %v2780 = vmul.f32 %v2758, %v800
        %v2781 = vmul.f32 %v2761, %v800
        %v2782 = vmul.f32 %v2764, %v800
        %v2783 = vmul.f32 %v2767, %v800
        %v2784 = vsub.f32 %v2700, %v2768
        %v2785 = vsub.f32 %v2701, %v2769
        %v2786 = vsub.f32 %v2702, %v2770
        %v2787 = vsub.f32 %v2703, %v2771
        %v2788 = vsub.f32 %v2704, %v2772
        %v2789 = vsub.f32 %v2705, %v2773
        %v2790 = vsub.f32 %v2706, %v2774
        %v2791 = vsub.f32 %v2707, %v2775
        %v2792 = vsub.f32 %v2708, %v2776
        %v2793 = vsub.f32 %v2709, %v2777
        %v2794 = vsub.f32 %v2710, %v2778
        %v2795 = vsub.f32 %v2711, %v2779
        %v2796 = vsub.f32 %v2712, %v2780
        %v2797 = vsub.f32 %v2713, %v2781
        %v2798 = vsub.f32 %v2714, %v2782
        %v2799 = vsub.f32 %v2715, %v2783
        %v2800 = vmul.f32 %v2784, %v2784
        %v2801 = vmul.f32 %v2785, %v2785
        %v2802 = vmul.f32 %v2786, %v2786
        %v2803 = vmul.f32 %v2787, %v2787
        %v2804 = vmul.f32 %v2788, %v2788
        %v2805 = vmul.f32 %v2789, %v2789
        %v2806 = vmul.f32 %v2790, %v2790
        %v2807 = vmul.f32 %v2791, %v2791
        %v2808 = vmul.f32 %v2792, %v2792
        %v2809 = vmul.f32 %v2793, %v2793
        %v2810 = vmul.f32 %v2794, %v2794
        %v2811 = vmul.f32 %v2795, %v2795
        %v2812 = vmul.f32 %v2796, %v2796
        %v2813 = vmul.f32 %v2797, %v2797
        %v2814 = vmul.f32 %v2798, %v2798
        %v2815 = vmul.f32 %v2799, %v2799
        %v2816 = vsel %vm787, %v2800, 0.0
        %2817 = vadd.xlane.f32.xlu0 %v2816
        %v2818 = vpop.xlane.xlu0 %2817
        %v2819 = vsel %vm787, %v2801, 0.0
        %2820 = vadd.xlane.f32.xlu0 %v2819
        %v2821 = vpop.xlane.xlu0 %2820
        %v2822 = vsel %vm787, %v2802, 0.0
        %2823 = vadd.xlane.f32.xlu0 %v2822
        %v2824 = vpop.xlane.xlu0 %2823
        %v2825 = vsel %vm787, %v2803, 0.0
        %2826 = vadd.xlane.f32.xlu0 %v2825
        %v2827 = vpop.xlane.xlu0 %2826
        %v2828 = vsel %vm787, %v2804, 0.0
        %2829 = vadd.xlane.f32.xlu0 %v2828
        %v2830 = vpop.xlane.xlu0 %2829
        %v2831 = vsel %vm787, %v2805, 0.0
        %2832 = vadd.xlane.f32.xlu0 %v2831
        %v2833 = vpop.xlane.xlu0 %2832
        %v2834 = vsel %vm787, %v2806, 0.0
        %2835 = vadd.xlane.f32.xlu0 %v2834
        %v2836 = vpop.xlane.xlu0 %2835
        %v2837 = vsel %vm787, %v2807, 0.0
        %2838 = vadd.xlane.f32.xlu0 %v2837
        %v2839 = vpop.xlane.xlu0 %2838
        %v2840 = vsel %vm787, %v2808, 0.0
        %2841 = vadd.xlane.f32.xlu0 %v2840
        %v2842 = vpop.xlane.xlu0 %2841
        %v2843 = vsel %vm787, %v2809, 0.0
        %2844 = vadd.xlane.f32.xlu0 %v2843
        %v2845 = vpop.xlane.xlu0 %2844
        %v2846 = vsel %vm787, %v2810, 0.0
        %2847 = vadd.xlane.f32.xlu0 %v2846
        %v2848 = vpop.xlane.xlu0 %2847
        %v2849 = vsel %vm787, %v2811, 0.0
        %2850 = vadd.xlane.f32.xlu0 %v2849
        %v2851 = vpop.xlane.xlu0 %2850
        %v2852 = vsel %vm787, %v2812, 0.0
        %2853 = vadd.xlane.f32.xlu0 %v2852
        %v2854 = vpop.xlane.xlu0 %2853
        %v2855 = vsel %vm787, %v2813, 0.0
        %2856 = vadd.xlane.f32.xlu0 %v2855
        %v2857 = vpop.xlane.xlu0 %2856
        %v2858 = vsel %vm787, %v2814, 0.0
        %2859 = vadd.xlane.f32.xlu0 %v2858
        %v2860 = vpop.xlane.xlu0 %2859
        %v2861 = vsel %vm787, %v2815, 0.0
        %2862 = vadd.xlane.f32.xlu0 %v2861
        %v2863 = vpop.xlane.xlu0 %2862
        %v2864 = vmul.f32 %v2818, %v800
        %v2865 = vmul.f32 %v2821, %v800
        %v2866 = vmul.f32 %v2824, %v800
        %v2867 = vmul.f32 %v2827, %v800
        %v2868 = vmul.f32 %v2830, %v800
        %v2869 = vmul.f32 %v2833, %v800
        %v2870 = vmul.f32 %v2836, %v800
        %v2871 = vmul.f32 %v2839, %v800
        %v2872 = vmul.f32 %v2842, %v800
        %v2873 = vmul.f32 %v2845, %v800
        %v2874 = vmul.f32 %v2848, %v800
        %v2875 = vmul.f32 %v2851, %v800
        %v2876 = vmul.f32 %v2854, %v800
        %v2877 = vmul.f32 %v2857, %v800
        %v2878 = vmul.f32 %v2860, %v800
        %v2879 = vmul.f32 %v2863, %v800
        %v2880 = vadd.f32 %v2864, 1e-05
        %v2881 = vadd.f32 %v2865, 1e-05
        %v2882 = vadd.f32 %v2866, 1e-05
        %v2883 = vadd.f32 %v2867, 1e-05
        %v2884 = vadd.f32 %v2868, 1e-05
        %v2885 = vadd.f32 %v2869, 1e-05
        %v2886 = vadd.f32 %v2870, 1e-05
        %v2887 = vadd.f32 %v2871, 1e-05
        %v2888 = vadd.f32 %v2872, 1e-05
        %v2889 = vadd.f32 %v2873, 1e-05
        %v2890 = vadd.f32 %v2874, 1e-05
        %v2891 = vadd.f32 %v2875, 1e-05
        %v2892 = vadd.f32 %v2876, 1e-05
        %v2893 = vadd.f32 %v2877, 1e-05
        %v2894 = vadd.f32 %v2878, 1e-05
        %v2895 = vadd.f32 %v2879, 1e-05
        %v2896 = vrsqrt.pop %v2880
        %v2897 = vmul.f32 %v2896, %v2880
        %v2898 = vmul.f32 %v2897, %v2896
        %v2899 = vmul.f32 0.5, %v2898
        %v2900 = vsub.f32 1.5, %v2899
        %v2901 = vmul.f32 %v2896, %v2900
        %vm2902 = vweird.f32 %v2880
        %vm2903 = vweird.f32 %v2896
        %vm2904 = vmor %vm2902, %vm2903
        %v2905 = vsel %vm2904, %v2896, %v2901
        %v2906 = vrsqrt.pop %v2881
        %v2907 = vmul.f32 %v2906, %v2881
        %v2908 = vmul.f32 %v2907, %v2906
        %v2909 = vmul.f32 0.5, %v2908
        %v2910 = vsub.f32 1.5, %v2909
        %v2911 = vmul.f32 %v2906, %v2910
        %vm2912 = vweird.f32 %v2881
        %vm2913 = vweird.f32 %v2906
        %vm2914 = vmor %vm2912, %vm2913
        %v2915 = vsel %vm2914, %v2906, %v2911
        %v2916 = vrsqrt.pop %v2882
        %v2917 = vmul.f32 %v2916, %v2882
        %v2918 = vmul.f32 %v2917, %v2916
        %v2919 = vmul.f32 0.5, %v2918
        %v2920 = vsub.f32 1.5, %v2919
        %v2921 = vmul.f32 %v2916, %v2920
        %vm2922 = vweird.f32 %v2882
        %vm2923 = vweird.f32 %v2916
        %vm2924 = vmor %vm2922, %vm2923
        %v2925 = vsel %vm2924, %v2916, %v2921
        %v2926 = vrsqrt.pop %v2883
        %v2927 = vmul.f32 %v2926, %v2883
        %v2928 = vmul.f32 %v2927, %v2926
        %v2929 = vmul.f32 0.5, %v2928
        %v2930 = vsub.f32 1.5, %v2929
        %v2931 = vmul.f32 %v2926, %v2930
        %vm2932 = vweird.f32 %v2883
        %vm2933 = vweird.f32 %v2926
        %vm2934 = vmor %vm2932, %vm2933
        %v2935 = vsel %vm2934, %v2926, %v2931
        %v2936 = vrsqrt.pop %v2884
        %v2937 = vmul.f32 %v2936, %v2884
        %v2938 = vmul.f32 %v2937, %v2936
        %v2939 = vmul.f32 0.5, %v2938
        %v2940 = vsub.f32 1.5, %v2939
        %v2941 = vmul.f32 %v2936, %v2940
        %vm2942 = vweird.f32 %v2884
        %vm2943 = vweird.f32 %v2936
        %vm2944 = vmor %vm2942, %vm2943
        %v2945 = vsel %vm2944, %v2936, %v2941
        %v2946 = vrsqrt.pop %v2885
        %v2947 = vmul.f32 %v2946, %v2885
        %v2948 = vmul.f32 %v2947, %v2946
        %v2949 = vmul.f32 0.5, %v2948
        %v2950 = vsub.f32 1.5, %v2949
        %v2951 = vmul.f32 %v2946, %v2950
        %vm2952 = vweird.f32 %v2885
        %vm2953 = vweird.f32 %v2946
        %vm2954 = vmor %vm2952, %vm2953
        %v2955 = vsel %vm2954, %v2946, %v2951
        %v2956 = vrsqrt.pop %v2886
        %v2957 = vmul.f32 %v2956, %v2886
        %v2958 = vmul.f32 %v2957, %v2956
        %v2959 = vmul.f32 0.5, %v2958
        %v2960 = vsub.f32 1.5, %v2959
        %v2961 = vmul.f32 %v2956, %v2960
        %vm2962 = vweird.f32 %v2886
        %vm2963 = vweird.f32 %v2956
        %vm2964 = vmor %vm2962, %vm2963
        %v2965 = vsel %vm2964, %v2956, %v2961
        %v2966 = vrsqrt.pop %v2887
        %v2967 = vmul.f32 %v2966, %v2887
        %v2968 = vmul.f32 %v2967, %v2966
        %v2969 = vmul.f32 0.5, %v2968
        %v2970 = vsub.f32 1.5, %v2969
        %v2971 = vmul.f32 %v2966, %v2970
        %vm2972 = vweird.f32 %v2887
        %vm2973 = vweird.f32 %v2966
        %vm2974 = vmor %vm2972, %vm2973
        %v2975 = vsel %vm2974, %v2966, %v2971
        %v2976 = vrsqrt.pop %v2888
        %v2977 = vmul.f32 %v2976, %v2888
        %v2978 = vmul.f32 %v2977, %v2976
        %v2979 = vmul.f32 0.5, %v2978
        %v2980 = vsub.f32 1.5, %v2979
        %v2981 = vmul.f32 %v2976, %v2980
        %vm2982 = vweird.f32 %v2888
        %vm2983 = vweird.f32 %v2976
        %vm2984 = vmor %vm2982, %vm2983
        %v2985 = vsel %vm2984, %v2976, %v2981
        %v2986 = vrsqrt.pop %v2889
        %v2987 = vmul.f32 %v2986, %v2889
        %v2988 = vmul.f32 %v2987, %v2986
        %v2989 = vmul.f32 0.5, %v2988
        %v2990 = vsub.f32 1.5, %v2989
        %v2991 = vmul.f32 %v2986, %v2990
        %vm2992 = vweird.f32 %v2889
        %vm2993 = vweird.f32 %v2986
        %vm2994 = vmor %vm2992, %vm2993
        %v2995 = vsel %vm2994, %v2986, %v2991
        %v2996 = vrsqrt.pop %v2890
        %v2997 = vmul.f32 %v2996, %v2890
        %v2998 = vmul.f32 %v2997, %v2996
        %v2999 = vmul.f32 0.5, %v2998
        %v3000 = vsub.f32 1.5, %v2999
        %v3001 = vmul.f32 %v2996, %v3000
        %vm3002 = vweird.f32 %v2890
        %vm3003 = vweird.f32 %v2996
        %vm3004 = vmor %vm3002, %vm3003
        %v3005 = vsel %vm3004, %v2996, %v3001
        %v3006 = vrsqrt.pop %v2891
        %v3007 = vmul.f32 %v3006, %v2891
        %v3008 = vmul.f32 %v3007, %v3006
        %v3009 = vmul.f32 0.5, %v3008
        %v3010 = vsub.f32 1.5, %v3009
        %v3011 = vmul.f32 %v3006, %v3010
        %vm3012 = vweird.f32 %v2891
        %vm3013 = vweird.f32 %v3006
        %vm3014 = vmor %vm3012, %vm3013
        %v3015 = vsel %vm3014, %v3006, %v3011
        %v3016 = vrsqrt.pop %v2892
        %v3017 = vmul.f32 %v3016, %v2892
        %v3018 = vmul.f32 %v3017, %v3016
        %v3019 = vmul.f32 0.5, %v3018
        %v3020 = vsub.f32 1.5, %v3019
        %v3021 = vmul.f32 %v3016, %v3020
        %vm3022 = vweird.f32 %v2892
        %vm3023 = vweird.f32 %v3016
        %vm3024 = vmor %vm3022, %vm3023
        %v3025 = vsel %vm3024, %v3016, %v3021
        %v3026 = vrsqrt.pop %v2893
        %v3027 = vmul.f32 %v3026, %v2893
        %v3028 = vmul.f32 %v3027, %v3026
        %v3029 = vmul.f32 0.5, %v3028
        %v3030 = vsub.f32 1.5, %v3029
        %v3031 = vmul.f32 %v3026, %v3030
        %vm3032 = vweird.f32 %v2893
        %vm3033 = vweird.f32 %v3026
        %vm3034 = vmor %vm3032, %vm3033
        %v3035 = vsel %vm3034, %v3026, %v3031
        %v3036 = vrsqrt.pop %v2894
        %v3037 = vmul.f32 %v3036, %v2894
        %v3038 = vmul.f32 %v3037, %v3036
        %v3039 = vmul.f32 0.5, %v3038
        %v3040 = vsub.f32 1.5, %v3039
        %v3041 = vmul.f32 %v3036, %v3040
        %vm3042 = vweird.f32 %v2894
        %vm3043 = vweird.f32 %v3036
        %vm3044 = vmor %vm3042, %vm3043
        %v3045 = vsel %vm3044, %v3036, %v3041
        %v3046 = vrsqrt.pop %v2895
        %v3047 = vmul.f32 %v3046, %v2895
        %v3048 = vmul.f32 %v3047, %v3046
        %v3049 = vmul.f32 0.5, %v3048
        %v3050 = vsub.f32 1.5, %v3049
        %v3051 = vmul.f32 %v3046, %v3050
        %vm3052 = vweird.f32 %v2895
        %vm3053 = vweird.f32 %v3046
        %vm3054 = vmor %vm3052, %vm3053
        %v3055 = vsel %vm3054, %v3046, %v3051
        %v3056 = vmul.f32 %v2784, %v2905
        %v3057 = vmul.f32 %v2785, %v2915
        %v3058 = vmul.f32 %v2786, %v2925
        %v3059 = vmul.f32 %v2787, %v2935
        %v3060 = vmul.f32 %v2788, %v2945
        %v3061 = vmul.f32 %v2789, %v2955
        %v3062 = vmul.f32 %v2790, %v2965
        %v3063 = vmul.f32 %v2791, %v2975
        %v3064 = vmul.f32 %v2792, %v2985
        %v3065 = vmul.f32 %v2793, %v2995
        %v3066 = vmul.f32 %v2794, %v3005
        %v3067 = vmul.f32 %v2795, %v3015
        %v3068 = vmul.f32 %v2796, %v3025
        %v3069 = vmul.f32 %v2797, %v3035
        %v3070 = vmul.f32 %v2798, %v3045
        %v3071 = vmul.f32 %v2799, %v3055
        %v3073 = vperm.slane %v2717, 0
        %v3075 = vmul.f32 %v3056, %v3073
        %v3076 = vmul.f32 %v3057, %v3073
        %v3077 = vmul.f32 %v3058, %v3073
        %v3078 = vmul.f32 %v3059, %v3073
        %v3079 = vmul.f32 %v3060, %v3073
        %v3080 = vmul.f32 %v3061, %v3073
        %v3081 = vmul.f32 %v3062, %v3073
        %v3082 = vmul.f32 %v3063, %v3073
        %v3083 = vmul.f32 %v3064, %v3073
        %v3084 = vmul.f32 %v3065, %v3073
        %v3085 = vmul.f32 %v3066, %v3073
        %v3086 = vmul.f32 %v3067, %v3073
        %v3087 = vmul.f32 %v3068, %v3073
        %v3088 = vmul.f32 %v3069, %v3073
        %v3089 = vmul.f32 %v3070, %v3073
        %v3090 = vmul.f32 %v3071, %v3073
        %v3092 = vperm.slane %v2719, 0
        %v3094 = vadd.f32 %v3075, %v3092
        %v3095 = vadd.f32 %v3076, %v3092
        %v3096 = vadd.f32 %v3077, %v3092
        %v3097 = vadd.f32 %v3078, %v3092
        %v3098 = vadd.f32 %v3079, %v3092
        %v3099 = vadd.f32 %v3080, %v3092
        %v3100 = vadd.f32 %v3081, %v3092
        %v3101 = vadd.f32 %v3082, %v3092
        %v3102 = vadd.f32 %v3083, %v3092
        %v3103 = vadd.f32 %v3084, %v3092
        %v3104 = vadd.f32 %v3085, %v3092
        %v3105 = vadd.f32 %v3086, %v3092
        %v3106 = vadd.f32 %v3087, %v3092
        %v3107 = vadd.f32 %v3088, %v3092
        %v3108 = vadd.f32 %v3089, %v3092
        %v3109 = vadd.f32 %v3090, %v3092
        %s3110 = scalar_lea.vmem %s13, 16
        %v3111 = vld [vmem:[%s3110] sm:$0xf]
        %v3112 = vld [vmem:[%s3110 + $0x4] sm:$0xf]
        %v3113 = vld [vmem:[%s3110 + $0x8] sm:$0xf]
        %v3114 = vld [vmem:[%s3110 + $0xc] sm:$0xf]
        %s3115 = scalar_lea.vmem %s14, 1
        %v3116 = vld [vmem:[%s3115] sm:$0x1]
        %v3117 = vpack.c.bf16 %v3095, %v3094
        %v3118 = vpack.c.bf16 %v3097, %v3096
        %v3119 = vpack.c.bf16 %v3099, %v3098
        %v3120 = vpack.c.bf16 %v3101, %v3100
        %v3121 = vpack.c.bf16 %v3103, %v3102
        %v3122 = vpack.c.bf16 %v3105, %v3104
        %v3123 = vpack.c.bf16 %v3107, %v3106
        %v3124 = vpack.c.bf16 %v3109, %v3108
        %v3126 = vperm.slane %v3116, 0
        %v3132 = vunpack.c.l.b16 %v3111
        %v3133 = vunpack.c.l.b16 %v3112
        %v3134 = vunpack.c.l.b16 %v3113
        %v3135 = vunpack.c.l.b16 %v3114
        %v3136 = vpack.c.b16 %v3133, %v3132
        %v3137 = vpack.c.b16 %v3135, %v3134
        %v3141 = vsel %vm787, %v3117, 0
        %v3144 = vsel %vm787, %v3118, 0
        %v3147 = vsel %vm787, %v3119, 0
        %v3150 = vsel %vm787, %v3120, 0
        %v3153 = vsel %vm787, %v3121, 0
        %v3156 = vsel %vm787, %v3122, 0
        %v3159 = vsel %vm787, %v3123, 0
        %v3162 = vsel %vm787, %v3124, 0
        %3164 = vmatpush.bf16.msra.mxu0 0
        %3165 = vmatpush.bf16.msra.mxu0 0
        %3166 = vmatpush.bf16.msra.mxu0 0
        %3167 = vmatpush.bf16.msra.mxu0 0
        %3168 = vmatpush.bf16.msra.mxu0 0
        %3169 = vmatpush.bf16.msra.mxu0 0
        %3170 = vmatpush.bf16.msra.mxu0 %v3137
        %3171 = vmatpush.bf16.msra.mxu0 %v3136
        %3172 = vmatmul.bf16.gmra.mxu0 %v3141
        %v3173 = vpop.f32.mrf.mxu0
        %v3174 = vadd.f32 %v3126, %v3173
        %v3175 = vpop.f32.mrf.mxu0
        %v3176 = vadd.f32 %v3126, %v3175
        %3177 = vmatmul.bf16.gmra.mxu0 %v3144
        %v3178 = vpop.f32.mrf.mxu0
        %v3179 = vadd.f32 %v3126, %v3178
        %v3180 = vpop.f32.mrf.mxu0
        %v3181 = vadd.f32 %v3126, %v3180
        %3182 = vmatmul.bf16.gmra.mxu0 %v3147
        %v3183 = vpop.f32.mrf.mxu0
        %v3184 = vadd.f32 %v3126, %v3183
        %v3185 = vpop.f32.mrf.mxu0
        %v3186 = vadd.f32 %v3126, %v3185
        %3187 = vmatmul.bf16.gmra.mxu0 %v3150
        %v3188 = vpop.f32.mrf.mxu0
        %v3189 = vadd.f32 %v3126, %v3188
        %v3190 = vpop.f32.mrf.mxu0
        %v3191 = vadd.f32 %v3126, %v3190
        %3192 = vmatmul.bf16.gmra.mxu0 %v3153
        %v3193 = vpop.f32.mrf.mxu0
        %v3194 = vadd.f32 %v3126, %v3193
        %v3195 = vpop.f32.mrf.mxu0
        %v3196 = vadd.f32 %v3126, %v3195
        %3197 = vmatmul.bf16.gmra.mxu0 %v3156
        %v3198 = vpop.f32.mrf.mxu0
        %v3199 = vadd.f32 %v3126, %v3198
        %v3200 = vpop.f32.mrf.mxu0
        %v3201 = vadd.f32 %v3126, %v3200
        %3202 = vmatmul.bf16.gmra.mxu0 %v3159
        %v3203 = vpop.f32.mrf.mxu0
        %v3204 = vadd.f32 %v3126, %v3203
        %v3205 = vpop.f32.mrf.mxu0
        %v3206 = vadd.f32 %v3126, %v3205
        %3207 = vmatmul.bf16.gmra.mxu0 %v3162
        %v3208 = vpop.f32.mrf.mxu0
        %v3209 = vadd.f32 %v3126, %v3208
        %v3210 = vpop.f32.mrf.mxu0
        %v3211 = vadd.f32 %v3126, %v3210
        %3212 = vdwg.mxu0
        %vm3213 = vcmp.gt.f32.partialorder %v3174, 0.0
        %vm3214 = vcmp.gt.f32.partialorder %v3176, 0.0
        %vm3215 = vcmp.gt.f32.partialorder %v3179, 0.0
        %vm3216 = vcmp.gt.f32.partialorder %v3181, 0.0
        %vm3217 = vcmp.gt.f32.partialorder %v3184, 0.0
        %vm3218 = vcmp.gt.f32.partialorder %v3186, 0.0
        %vm3219 = vcmp.gt.f32.partialorder %v3189, 0.0
        %vm3220 = vcmp.gt.f32.partialorder %v3191, 0.0
        %vm3221 = vcmp.gt.f32.partialorder %v3194, 0.0
        %vm3222 = vcmp.gt.f32.partialorder %v3196, 0.0
        %vm3223 = vcmp.gt.f32.partialorder %v3199, 0.0
        %vm3224 = vcmp.gt.f32.partialorder %v3201, 0.0
        %vm3225 = vcmp.gt.f32.partialorder %v3204, 0.0
        %vm3226 = vcmp.gt.f32.partialorder %v3206, 0.0
        %vm3227 = vcmp.gt.f32.partialorder %v3209, 0.0
        %vm3228 = vcmp.gt.f32.partialorder %v3211, 0.0
        %v3229 = vmul.f32 %v3174, 0.01
        %v3230 = vmul.f32 %v3176, 0.01
        %v3231 = vmul.f32 %v3179, 0.01
        %v3232 = vmul.f32 %v3181, 0.01
        %v3233 = vmul.f32 %v3184, 0.01
        %v3234 = vmul.f32 %v3186, 0.01
        %v3235 = vmul.f32 %v3189, 0.01
        %v3236 = vmul.f32 %v3191, 0.01
        %v3237 = vmul.f32 %v3194, 0.01
        %v3238 = vmul.f32 %v3196, 0.01
        %v3239 = vmul.f32 %v3199, 0.01
        %v3240 = vmul.f32 %v3201, 0.01
        %v3241 = vmul.f32 %v3204, 0.01
        %v3242 = vmul.f32 %v3206, 0.01
        %v3243 = vmul.f32 %v3209, 0.01
        %v3244 = vmul.f32 %v3211, 0.01
        %v3245 = vsel %vm3213, %v3174, %v3229
        %v3246 = vsel %vm3214, %v3176, %v3230
        %v3247 = vsel %vm3215, %v3179, %v3231
        %v3248 = vsel %vm3216, %v3181, %v3232
        %v3249 = vsel %vm3217, %v3184, %v3233
        %v3250 = vsel %vm3218, %v3186, %v3234
        %v3251 = vsel %vm3219, %v3189, %v3235
        %v3252 = vsel %vm3220, %v3191, %v3236
        %v3253 = vsel %vm3221, %v3194, %v3237
        %v3254 = vsel %vm3222, %v3196, %v3238
        %v3255 = vsel %vm3223, %v3199, %v3239
        %v3256 = vsel %vm3224, %v3201, %v3240
        %v3257 = vsel %vm3225, %v3204, %v3241
        %v3258 = vsel %vm3226, %v3206, %v3242
        %v3259 = vsel %vm3227, %v3209, %v3243
        %v3260 = vsel %vm3228, %v3211, %v3244
        %s3261 = scalar_lea.vmem %s15, 64
        %v3262 = vld [vmem:[%s3261] sm:$0xf]
        %v3263 = vld [vmem:[%s3261 + $0x4] sm:$0xf]
        %v3264 = vld [vmem:[%s3261 + $0x8] sm:$0xf]
        %v3265 = vld [vmem:[%s3261 + $0xc] sm:$0xf]
        %v3266 = vld [vmem:[%s3261 + $0x10] sm:$0xf]
        %v3267 = vld [vmem:[%s3261 + $0x14] sm:$0xf]
        %v3268 = vld [vmem:[%s3261 + $0x18] sm:$0xf]
        %v3269 = vld [vmem:[%s3261 + $0x1c] sm:$0xf]
        %v3270 = vld [vmem:[%s3261 + $0x20] sm:$0xf]
        %v3271 = vld [vmem:[%s3261 + $0x24] sm:$0xf]
        %v3272 = vld [vmem:[%s3261 + $0x28] sm:$0xf]
        %v3273 = vld [vmem:[%s3261 + $0x2c] sm:$0xf]
        %v3274 = vld [vmem:[%s3261 + $0x30] sm:$0xf]
        %v3275 = vld [vmem:[%s3261 + $0x34] sm:$0xf]
        %v3276 = vld [vmem:[%s3261 + $0x38] sm:$0xf]
        %v3277 = vld [vmem:[%s3261 + $0x3c] sm:$0xf]
        %s3278 = scalar_lea.vmem %s16, 1
        %v3279 = vld [vmem:[%s3278] sm:$0x1]
        %v3280 = vpack.c.bf16 %v3246, %v3245
        %v3281 = vpack.c.bf16 %v3248, %v3247
        %v3282 = vpack.c.bf16 %v3250, %v3249
        %v3283 = vpack.c.bf16 %v3252, %v3251
        %v3284 = vpack.c.bf16 %v3254, %v3253
        %v3285 = vpack.c.bf16 %v3256, %v3255
        %v3286 = vpack.c.bf16 %v3258, %v3257
        %v3287 = vpack.c.bf16 %v3260, %v3259
        %v3289 = vperm.slane %v3279, 0
        %v3307 = vunpack.c.l.b16 %v3262
        %v3308 = vunpack.c.l.b16 %v3263
        %v3309 = vunpack.c.l.b16 %v3264
        %v3310 = vunpack.c.l.b16 %v3265
        %v3311 = vunpack.c.l.b16 %v3266
        %v3312 = vunpack.c.l.b16 %v3267
        %v3313 = vunpack.c.l.b16 %v3268
        %v3314 = vunpack.c.l.b16 %v3269
        %v3315 = vunpack.c.l.b16 %v3270
        %v3316 = vunpack.c.l.b16 %v3271
        %v3317 = vunpack.c.l.b16 %v3272
        %v3318 = vunpack.c.l.b16 %v3273
        %v3319 = vunpack.c.l.b16 %v3274
        %v3320 = vunpack.c.l.b16 %v3275
        %v3321 = vunpack.c.l.b16 %v3276
        %v3322 = vunpack.c.l.b16 %v3277
        %v3323 = vpack.c.b16 %v3308, %v3307
        %v3324 = vpack.c.b16 %v3310, %v3309
        %v3325 = vpack.c.b16 %v3312, %v3311
        %v3326 = vpack.c.b16 %v3314, %v3313
        %v3327 = vpack.c.b16 %v3316, %v3315
        %v3328 = vpack.c.b16 %v3318, %v3317
        %v3329 = vpack.c.b16 %v3320, %v3319
        %v3330 = vpack.c.b16 %v3322, %v3321
        %3339 = vmatpush.bf16.msra.mxu0 %v3330
        %3340 = vmatpush.bf16.msra.mxu0 %v3329
        %3341 = vmatpush.bf16.msra.mxu0 %v3328
        %3342 = vmatpush.bf16.msra.mxu0 %v3327
        %3343 = vmatpush.bf16.msra.mxu0 %v3326
        %3344 = vmatpush.bf16.msra.mxu0 %v3325
        %3345 = vmatpush.bf16.msra.mxu0 %v3324
        %3346 = vmatpush.bf16.msra.mxu0 %v3323
        %3347 = vmatmul.bf16.gmra.mxu0 %v3280
        %v3348 = vpop.f32.mrf.mxu0
        %v3349 = vadd.f32 %v3289, %v3348
        %v3350 = vpop.f32.mrf.mxu0
        %v3351 = vadd.f32 %v3289, %v3350
        %3352 = vmatmul.bf16.gmra.mxu0 %v3281
        %v3353 = vpop.f32.mrf.mxu0
        %v3354 = vadd.f32 %v3289, %v3353
        %v3355 = vpop.f32.mrf.mxu0
        %v3356 = vadd.f32 %v3289, %v3355
        %3357 = vmatmul.bf16.gmra.mxu0 %v3282
        %v3358 = vpop.f32.mrf.mxu0
        %v3359 = vadd.f32 %v3289, %v3358
        %v3360 = vpop.f32.mrf.mxu0
        %v3361 = vadd.f32 %v3289, %v3360
        %3362 = vmatmul.bf16.gmra.mxu0 %v3283
        %v3363 = vpop.f32.mrf.mxu0
        %v3364 = vadd.f32 %v3289, %v3363
        %v3365 = vpop.f32.mrf.mxu0
        %v3366 = vadd.f32 %v3289, %v3365
        %3367 = vmatmul.bf16.gmra.mxu0 %v3284
        %v3368 = vpop.f32.mrf.mxu0
        %v3369 = vadd.f32 %v3289, %v3368
        %v3370 = vpop.f32.mrf.mxu0
        %v3371 = vadd.f32 %v3289, %v3370
        %3372 = vmatmul.bf16.gmra.mxu0 %v3285
        %v3373 = vpop.f32.mrf.mxu0
        %v3374 = vadd.f32 %v3289, %v3373
        %v3375 = vpop.f32.mrf.mxu0
        %v3376 = vadd.f32 %v3289, %v3375
        %3377 = vmatmul.bf16.gmra.mxu0 %v3286
        %v3378 = vpop.f32.mrf.mxu0
        %v3379 = vadd.f32 %v3289, %v3378
        %v3380 = vpop.f32.mrf.mxu0
        %v3381 = vadd.f32 %v3289, %v3380
        %3382 = vmatmul.bf16.gmra.mxu0 %v3287
        %v3383 = vpop.f32.mrf.mxu0
        %v3384 = vadd.f32 %v3289, %v3383
        %v3385 = vpop.f32.mrf.mxu0
        %v3386 = vadd.f32 %v3289, %v3385
        %3387 = vdwg.mxu0
        %v3388 = vmul.f32 %v3349, %v1727
        %v3389 = vmul.f32 %v3351, %v1732
        %v3390 = vmul.f32 %v3354, %v1737
        %v3391 = vmul.f32 %v3356, %v1742
        %v3392 = vmul.f32 %v3359, %v1747
        %v3393 = vmul.f32 %v3361, %v1752
        %v3394 = vmul.f32 %v3364, %v1757
        %v3395 = vmul.f32 %v3366, %v1762
        %v3396 = vmul.f32 %v3369, %v1767
        %v3397 = vmul.f32 %v3371, %v1772
        %v3398 = vmul.f32 %v3374, %v1777
        %v3399 = vmul.f32 %v3376, %v1782
        %v3400 = vmul.f32 %v3379, %v1787
        %v3401 = vmul.f32 %v3381, %v1792
        %v3402 = vmul.f32 %v3384, %v1797
        %v3403 = vmul.f32 %v3386, %v1802
        %v3404 = vadd.f32 %v2700, %v3388
        %v3405 = vadd.f32 %v2701, %v3389
        %v3406 = vadd.f32 %v2702, %v3390
        %v3407 = vadd.f32 %v2703, %v3391
        %v3408 = vadd.f32 %v2704, %v3392
        %v3409 = vadd.f32 %v2705, %v3393
        %v3410 = vadd.f32 %v2706, %v3394
        %v3411 = vadd.f32 %v2707, %v3395
        %v3412 = vadd.f32 %v2708, %v3396
        %v3413 = vadd.f32 %v2709, %v3397
        %v3414 = vadd.f32 %v2710, %v3398
        %v3415 = vadd.f32 %v2711, %v3399
        %v3416 = vadd.f32 %v2712, %v3400
        %v3417 = vadd.f32 %v2713, %v3401
        %v3418 = vadd.f32 %v2714, %v3402
        %v3419 = vadd.f32 %v2715, %v3403
        %v3420 = vpack.c.bf16 %v3404, %v3404
        %v3421 = vpack.c.bf16 %v3405, %v3405
        %v3422 = vpack.c.bf16 %v3406, %v3406
        %v3423 = vpack.c.bf16 %v3407, %v3407
        %v3424 = vpack.c.bf16 %v3408, %v3408
        %v3425 = vpack.c.bf16 %v3409, %v3409
        %v3426 = vpack.c.bf16 %v3410, %v3410
        %v3427 = vpack.c.bf16 %v3411, %v3411
        %v3428 = vpack.c.bf16 %v3412, %v3412
        %v3429 = vpack.c.bf16 %v3413, %v3413
        %v3430 = vpack.c.bf16 %v3414, %v3414
        %v3431 = vpack.c.bf16 %v3415, %v3415
        %v3432 = vpack.c.bf16 %v3416, %v3416
        %v3433 = vpack.c.bf16 %v3417, %v3417
        %v3434 = vpack.c.bf16 %v3418, %v3418
        %v3435 = vpack.c.bf16 %v3419, %v3419
        %vm3436 = vcmask 257024
        %3437 = vst.msk [vmem:[%s753] sm:$0xf] %vm3436, %v3420
        %3438 = vst.msk [vmem:[%s753 + $0x4] sm:$0xf] %vm3436, %v3421
        %3439 = vst.msk [vmem:[%s753 + $0x8] sm:$0xf] %vm3436, %v3422
        %3440 = vst.msk [vmem:[%s753 + $0xc] sm:$0xf] %vm3436, %v3423
        %3441 = vst.msk [vmem:[%s753 + $0x10] sm:$0xf] %vm3436, %v3424
        %3442 = vst.msk [vmem:[%s753 + $0x14] sm:$0xf] %vm3436, %v3425
        %3443 = vst.msk [vmem:[%s753 + $0x18] sm:$0xf] %vm3436, %v3426
        %3444 = vst.msk [vmem:[%s753 + $0x1c] sm:$0xf] %vm3436, %v3427
        %3445 = vst.msk [vmem:[%s753 + $0x20] sm:$0xf] %vm3436, %v3428
        %3446 = vst.msk [vmem:[%s753 + $0x24] sm:$0xf] %vm3436, %v3429
        %3447 = vst.msk [vmem:[%s753 + $0x28] sm:$0xf] %vm3436, %v3430
        %3448 = vst.msk [vmem:[%s753 + $0x2c] sm:$0xf] %vm3436, %v3431
        %3449 = vst.msk [vmem:[%s753 + $0x30] sm:$0xf] %vm3436, %v3432
        %3450 = vst.msk [vmem:[%s753 + $0x34] sm:$0xf] %vm3436, %v3433
        %3451 = vst.msk [vmem:[%s753 + $0x38] sm:$0xf] %vm3436, %v3434
        %3452 = vst.msk [vmem:[%s753 + $0x3c] sm:$0xf] %vm3436, %v3435
        %p3453 = scmp.eq.s32.totalorder %s46, 1
        // Predicated region
        $region105: #{tpu_custom_call.1} parent=95 // pred_check
          %p3454 = pneg %p3453
        $region106: #{tpu_custom_call.1} parent=95 // pred_check_branch
          %3456 = sbr.rel (%p3454) target = $region108
        $region107: #{tpu_custom_call.1} parent=95 // pred_region
          %v3457 = vld [vmem:[#allocation2] sm:$0xff]
          %v3458 = vld [vmem:[#allocation2 + $0x8] sm:$0xff]
          %v3459 = vld [vmem:[%s11] sm:$0xf]
          %v3460 = vld [vmem:[%s11 + $0x4] sm:$0xf]
          %v3461 = vld [vmem:[%s11 + $0x8] sm:$0xf]
          %v3462 = vld [vmem:[%s11 + $0xc] sm:$0xf]
          %v3463 = vld [vmem:[%s12] sm:$0x1]
          %v3464 = vpack.c.bf16 %v3458, %v3457
          %v3466 = vperm.slane %v3463, 0
          %v3472 = vunpack.c.l.b16 %v3459
          %v3473 = vunpack.c.l.b16 %v3460
          %v3474 = vunpack.c.l.b16 %v3461
          %v3475 = vunpack.c.l.b16 %v3462
          %v3476 = vpack.c.b16 %v3473, %v3472
          %v3477 = vpack.c.b16 %v3475, %v3474
          %v3481 = vsel %vm787, %v3464, 0
          %3483 = vmatpush.bf16.msra.mxu0 0
          %3484 = vmatpush.bf16.msra.mxu0 0
          %3485 = vmatpush.bf16.msra.mxu0 0
          %3486 = vmatpush.bf16.msra.mxu0 0
          %3487 = vmatpush.bf16.msra.mxu0 0
          %3488 = vmatpush.bf16.msra.mxu0 0
          %3489 = vmatpush.bf16.msra.mxu0 %v3477
          %3490 = vmatpush.bf16.msra.mxu0 %v3476
          %3491 = vmatmul.bf16.gmra.mxu0 %v3481
          %v3492 = vpop.f32.mrf.mxu0
          %v3493 = vadd.f32 %v3466, %v3492
          %v3494 = vpop.f32.mrf.mxu0
          %v3495 = vadd.f32 %v3466, %v3494
          %3496 = vdwg.mxu0
          %v3497 = vmul.f32 %v3493, %v890
          %v3498 = vmul.f32 %v3495, %v895
          %v3499 = vadd.f32 %v847, %v3497
          %v3500 = vadd.f32 %v848, %v3498
          %s3501 = scalar_lea.vmem %s5, 2
          %v3502 = vld [vmem:[%s3501] sm:$0x1]
          %s3503 = scalar_lea.vmem %s6, 2
          %v3504 = vld [vmem:[%s3503] sm:$0x1]
          %v3505 = vsel %vm787, %v3499, 0.0
          %3506 = vadd.xlane.f32.xlu0 %v3505
          %v3507 = vpop.xlane.xlu0 %3506
          %v3508 = vsel %vm787, %v3500, 0.0
          %3509 = vadd.xlane.f32.xlu0 %v3508
          %v3510 = vpop.xlane.xlu0 %3509
          %v3511 = vmul.f32 %v3507, %v800
          %v3512 = vmul.f32 %v3510, %v800
          %v3513 = vsub.f32 %v3499, %v3511
          %v3514 = vsub.f32 %v3500, %v3512
          %v3515 = vmul.f32 %v3513, %v3513
          %v3516 = vmul.f32 %v3514, %v3514
          %v3517 = vsel %vm787, %v3515, 0.0
          %3518 = vadd.xlane.f32.xlu0 %v3517
          %v3519 = vpop.xlane.xlu0 %3518
          %v3520 = vsel %vm787, %v3516, 0.0
          %3521 = vadd.xlane.f32.xlu0 %v3520
          %v3522 = vpop.xlane.xlu0 %3521
          %v3523 = vmul.f32 %v3519, %v800
          %v3524 = vmul.f32 %v3522, %v800
          %v3525 = vadd.f32 %v3523, 1e-05
          %v3526 = vadd.f32 %v3524, 1e-05
          %v3527 = vrsqrt.pop %v3525
          %v3528 = vmul.f32 %v3527, %v3525
          %v3529 = vmul.f32 %v3528, %v3527
          %v3530 = vmul.f32 0.5, %v3529
          %v3531 = vsub.f32 1.5, %v3530
          %v3532 = vmul.f32 %v3527, %v3531
          %vm3533 = vweird.f32 %v3525
          %vm3534 = vweird.f32 %v3527
          %vm3535 = vmor %vm3533, %vm3534
          %v3536 = vsel %vm3535, %v3527, %v3532
          %v3537 = vrsqrt.pop %v3526
          %v3538 = vmul.f32 %v3537, %v3526
          %v3539 = vmul.f32 %v3538, %v3537
          %v3540 = vmul.f32 0.5, %v3539
          %v3541 = vsub.f32 1.5, %v3540
          %v3542 = vmul.f32 %v3537, %v3541
          %vm3543 = vweird.f32 %v3526
          %vm3544 = vweird.f32 %v3537
          %vm3545 = vmor %vm3543, %vm3544
          %v3546 = vsel %vm3545, %v3537, %v3542
          %v3547 = vmul.f32 %v3513, %v3536
          %v3548 = vmul.f32 %v3514, %v3546
          %v3550 = vperm.slane %v3502, 0
          %v3552 = vmul.f32 %v3547, %v3550
          %v3553 = vmul.f32 %v3548, %v3550
          %v3555 = vperm.slane %v3504, 0
          %v3557 = vadd.f32 %v3552, %v3555
          %v3558 = vadd.f32 %v3553, %v3555
          %v3559 = vld [vmem:[%s13] sm:$0xf]
          %v3560 = vld [vmem:[%s13 + $0x4] sm:$0xf]
          %v3561 = vld [vmem:[%s13 + $0x8] sm:$0xf]
          %v3562 = vld [vmem:[%s13 + $0xc] sm:$0xf]
          %v3563 = vld [vmem:[%s14] sm:$0x1]
          %v3564 = vpack.c.bf16 %v3558, %v3557
          %v3566 = vperm.slane %v3563, 0
          %v3572 = vunpack.c.l.b16 %v3559
          %v3573 = vunpack.c.l.b16 %v3560
          %v3574 = vunpack.c.l.b16 %v3561
          %v3575 = vunpack.c.l.b16 %v3562
          %v3576 = vpack.c.b16 %v3573, %v3572
          %v3577 = vpack.c.b16 %v3575, %v3574
          %v3581 = vsel %vm787, %v3564, 0
          %3583 = vmatpush.bf16.msra.mxu0 0
          %3584 = vmatpush.bf16.msra.mxu0 0
          %3585 = vmatpush.bf16.msra.mxu0 0
          %3586 = vmatpush.bf16.msra.mxu0 0
          %3587 = vmatpush.bf16.msra.mxu0 0
          %3588 = vmatpush.bf16.msra.mxu0 0
          %3589 = vmatpush.bf16.msra.mxu0 %v3577
          %3590 = vmatpush.bf16.msra.mxu0 %v3576
          %3591 = vmatmul.bf16.gmra.mxu0 %v3581
          %v3592 = vpop.f32.mrf.mxu0
          %v3593 = vadd.f32 %v3566, %v3592
          %v3594 = vpop.f32.mrf.mxu0
          %v3595 = vadd.f32 %v3566, %v3594
          %3596 = vdwg.mxu0
          %vm3597 = vcmp.gt.f32.partialorder %v3593, 0.0
          %vm3598 = vcmp.gt.f32.partialorder %v3595, 0.0
          %v3599 = vmul.f32 %v3593, 0.01
          %v3600 = vmul.f32 %v3595, 0.01
          %v3601 = vsel %vm3597, %v3593, %v3599
          %v3602 = vsel %vm3598, %v3595, %v3600
          %v3603 = vld [vmem:[%s15] sm:$0xf]
          %v3604 = vld [vmem:[%s15 + $0x4] sm:$0xf]
          %v3605 = vld [vmem:[%s15 + $0x8] sm:$0xf]
          %v3606 = vld [vmem:[%s15 + $0xc] sm:$0xf]
          %v3607 = vld [vmem:[%s15 + $0x10] sm:$0xf]
          %v3608 = vld [vmem:[%s15 + $0x14] sm:$0xf]
          %v3609 = vld [vmem:[%s15 + $0x18] sm:$0xf]
          %v3610 = vld [vmem:[%s15 + $0x1c] sm:$0xf]
          %v3611 = vld [vmem:[%s15 + $0x20] sm:$0xf]
          %v3612 = vld [vmem:[%s15 + $0x24] sm:$0xf]
          %v3613 = vld [vmem:[%s15 + $0x28] sm:$0xf]
          %v3614 = vld [vmem:[%s15 + $0x2c] sm:$0xf]
          %v3615 = vld [vmem:[%s15 + $0x30] sm:$0xf]
          %v3616 = vld [vmem:[%s15 + $0x34] sm:$0xf]
          %v3617 = vld [vmem:[%s15 + $0x38] sm:$0xf]
          %v3618 = vld [vmem:[%s15 + $0x3c] sm:$0xf]
          %v3619 = vld [vmem:[%s16] sm:$0x1]
          %v3620 = vpack.c.bf16 %v3602, %v3601
          %v3622 = vperm.slane %v3619, 0
          %v3640 = vunpack.c.l.b16 %v3603
          %v3641 = vunpack.c.l.b16 %v3604
          %v3642 = vunpack.c.l.b16 %v3605
          %v3643 = vunpack.c.l.b16 %v3606
          %v3644 = vunpack.c.l.b16 %v3607
          %v3645 = vunpack.c.l.b16 %v3608
          %v3646 = vunpack.c.l.b16 %v3609
          %v3647 = vunpack.c.l.b16 %v3610
          %v3648 = vunpack.c.l.b16 %v3611
          %v3649 = vunpack.c.l.b16 %v3612
          %v3650 = vunpack.c.l.b16 %v3613
          %v3651 = vunpack.c.l.b16 %v3614
          %v3652 = vunpack.c.l.b16 %v3615
          %v3653 = vunpack.c.l.b16 %v3616
          %v3654 = vunpack.c.l.b16 %v3617
          %v3655 = vunpack.c.l.b16 %v3618
          %v3656 = vpack.c.b16 %v3641, %v3640
          %v3657 = vpack.c.b16 %v3643, %v3642
          %v3658 = vpack.c.b16 %v3645, %v3644
          %v3659 = vpack.c.b16 %v3647, %v3646
          %v3660 = vpack.c.b16 %v3649, %v3648
          %v3661 = vpack.c.b16 %v3651, %v3650
          %v3662 = vpack.c.b16 %v3653, %v3652
          %v3663 = vpack.c.b16 %v3655, %v3654
          %3672 = vmatpush.bf16.msra.mxu0 %v3663
          %3673 = vmatpush.bf16.msra.mxu0 %v3662
          %3674 = vmatpush.bf16.msra.mxu0 %v3661
          %3675 = vmatpush.bf16.msra.mxu0 %v3660
          %3676 = vmatpush.bf16.msra.mxu0 %v3659
          %3677 = vmatpush.bf16.msra.mxu0 %v3658
          %3678 = vmatpush.bf16.msra.mxu0 %v3657
          %3679 = vmatpush.bf16.msra.mxu0 %v3656
          %3680 = vmatmul.bf16.gmra.mxu0 %v3620
          %v3681 = vpop.f32.mrf.mxu0
          %v3682 = vadd.f32 %v3622, %v3681
          %v3683 = vpop.f32.mrf.mxu0
          %v3684 = vadd.f32 %v3622, %v3683
          %3685 = vdwg.mxu0
          %v3686 = vmul.f32 %v3682, %v890
          %v3687 = vmul.f32 %v3684, %v895
          %v3688 = vadd.f32 %v3499, %v3686
          %v3689 = vadd.f32 %v3500, %v3687
          %3690 = vst.msk [vmem:[%s746] sm:$0xff] %vm787, %v3688
          %3691 = vst.msk [vmem:[%s746 + $0x8] sm:$0xff] %vm787, %v3689
        $region108: #{tpu_custom_call.1} parent=95 // pred_fallthru
          _
        %s3692 = sand.u32 %s491, 1
        %s3693 = scalar_lea.sflag [#allocation5], %s3692
        %s3694 = sand.u32 %s491, 1
        %s3695 = smul.addr %s3694, 16
        %s3696 = scalar_lea.vmem [#allocation6], %s3695
        %s3697 = sand.u32 %s519, 1
        %s3698 = scalar_lea.sflag [#allocation8], %s3697
        %s3699 = sand.u32 %s519, 1
        %s3700 = smul.addr %s3699, 64
        %s3701 = scalar_lea.vmem [#allocation7], %s3700
        // Predicated region
        $region109: #{tpu_custom_call.1} parent=95 // pred_check
          %p3702 = pneg %p501
        $region110: #{tpu_custom_call.1} parent=95 // pred_check_branch
          %3704 = sbr.rel (%p3702) target = $region112
        $region111: #{tpu_custom_call.1} parent=95 // pred_region
          %3706 = vsyncadd %s3693, 0
          %s3707 = smul.addr %s45, 2
          %s3708 = smul.addr %s3707, 8
          %s3709 = scalar_lea.hbm %s19, %s3708
          %s3710 = sshll.u32 %s3696, 4
          %s3711 = int_to_ptr.vmem [resolvable:$true] %s3710
          %s3712 = sshll.u32 %s3709, 4
          %s3713 = int_to_ptr.hbm [resolvable:$true] %s3712
          %3718 = dma.vmem_to_hbm [thread:$0]  %s3711, 256, %s3713, %s3693, 128, 128, 8
        $region112: #{tpu_custom_call.1} parent=95 // pred_fallthru
          _
        // Predicated region
        $region113: #{tpu_custom_call.1} parent=95 // pred_check
          %p3719 = pneg %p529
        $region114: #{tpu_custom_call.1} parent=95 // pred_check_branch
          %3721 = sbr.rel (%p3719) target = $region116
        $region115: #{tpu_custom_call.1} parent=95 // pred_region
          %3723 = vsyncadd %s3698, 0
          %s3724 = smul.addr %s45, 32
          %s3725 = sadd.s32 %s46, %s3724
          %s3726 = smul.addr %s3725, 4
          %s3727 = scalar_lea.hbm %s20, %s3726
          %s3728 = sshll.u32 %s3701, 4
          %s3729 = int_to_ptr.vmem [resolvable:$true] %s3728
          %s3730 = sshll.u32 %s3727, 4
          %s3731 = int_to_ptr.hbm [resolvable:$true] %s3730
          %3736 = dma.vmem_to_hbm [thread:$0]  %s3729, 1024, %s3731, %s3698, 64, 128, 4
        $region116: #{tpu_custom_call.1} parent=95 // pred_fallthru
          _
      $region96: #{tpu_custom_call.1} parent=5 // pred_fallthru
        _
      %p3737 = scmp.le.s32.totalorder 2, %s36
      // Predicated region
      $region117: #{tpu_custom_call.1} parent=5 // pred_check
        %p3738 = pneg %p3737
      $region118: #{tpu_custom_call.1} parent=5 // pred_check_branch
        %3740 = sbr.rel (%p3738) target = $region120
      $region119: #{tpu_custom_call.1} parent=5 // pred_region
        %s3741 = ssub.s32 %s36, 2
        // Predicated region
        $region121: #{tpu_custom_call.1} parent=119 // pred_check
          %p3742 = pneg %p507
        $region122: #{tpu_custom_call.1} parent=119 // pred_check_branch
          %3744 = sbr.rel (%p3742) target = $region124
        $region123: #{tpu_custom_call.1} parent=119 // pred_region
          %s3745 = sand.u32 %s492, 1
          %s3746 = scalar_lea.sflag [#allocation5], %s3745
          %s3747 = sand.u32 %s492, 1
          %s3748 = smul.addr %s3747, 16
          %s3749 = scalar_lea.vmem [#allocation6], %s3748
          %3751 = dma.done %s3746, 256
        $region124: #{tpu_custom_call.1} parent=119 // pred_fallthru
          _
        // Predicated region
        $region125: #{tpu_custom_call.1} parent=119 // pred_check
          %p3752 = pneg %p535
        $region126: #{tpu_custom_call.1} parent=119 // pred_check_branch
          %3754 = sbr.rel (%p3752) target = $region128
        $region127: #{tpu_custom_call.1} parent=119 // pred_region
          %s3755 = sand.u32 %s520, 1
          %s3756 = scalar_lea.sflag [#allocation8], %s3755
          %s3757 = sand.u32 %s520, 1
          %s3758 = smul.addr %s3757, 64
          %s3759 = scalar_lea.vmem [#allocation7], %s3758
          %3761 = dma.done %s3756, 1024
        $region128: #{tpu_custom_call.1} parent=119 // pred_fallthru
          _
      $region120: #{tpu_custom_call.1} parent=5 // pred_fallthru
        _
    $region6: #{tpu_custom_call.1} parent=1 // loop_footer
      %s40 = sadd.s32 1, %s36
    $region7: #{tpu_custom_call.1} parent=1 // loop_footer_branch
      %35 = sbr.rel target = $region3
    $region8: #{tpu_custom_call.1} parent=1 // loop_exit
      _
    %3762 = vsyncpa [#allocation4], 1
    %s3763 = scalar_lea.sflag [#allocation4], 1
    %3764 = vsyncpa %s3763, 1
    %3765 = vsyncpa [#allocation5], 1
    %s3766 = scalar_lea.sflag [#allocation5], 1
    %3767 = vsyncpa %s3766, 1
    %3768 = vsyncpa [#allocation8], 1
    %s3769 = scalar_lea.sflag [#allocation8], 1
    %3770 = vsyncpa %s3769, 1

</llo_original>
